<compile_context>
chip_gen: v6e
topology: v6e:2x2x1
jax: 0.10.0
libtpu: 0.0.40
codegen_flags: <defaults>
</compile_context>

<pallas_src>
import jax
import jax.numpy as jnp
from jax import lax
from jax.experimental import pallas as pl
from jax.experimental.pallas import tpu as pltpu

# Module-consistent sizes (dim_val=64, n_heads=4 as in the spec); batch/seq
# kept small but chosen so B*S = 128 (one full lane-tile worth of token rows).
DIM_VAL = 64
N_HEADS = 4
HEAD_DIM = DIM_VAL // N_HEADS
SEQ_LEN = 32
BATCH = 4
GRID = 2            # 2-wide "parallel" grid over batch halves (v7x dual-TC)
EPS = 1e-5          # nn.LayerNorm default eps


# ------------------------------- Pallas wrapper ------------------------------


def run_decoder_layer(x, enc, packed):
    # `enc` is accepted for parity with DecoderLayer.forward(x, enc); the
    # PyTorch module never uses it (attn2 is still self-attention on x).
    del enc
    B, S, D = x.shape
    H = N_HEADS
    HD = D // H
    assert B % GRID == 0
    Bh = B // GRID          # batch elements per grid step
    R = Bh * S              # token rows per grid step
    BS = B * S
    w_qkv, b_qkv, w_aout, w_fc, vec = packed

    def kernel(x_ref, wqkv_ref, bqkv_ref, waout_ref, wfc_ref, vec_ref, o_ref):
        y = x_ref[...]                                  # (R, D) f32

        def layer_norm(z, row):
            g = vec_ref[row:row + 1, :]                 # (1, D)
            b = vec_ref[row + 1:row + 2, :]             # (1, D)
            mu = jnp.mean(z, axis=-1, keepdims=True)
            # Independent cross-lane reduces (overlap on XLU): var = E[z^2]-mu^2
            var = jnp.mean(z * z, axis=-1, keepdims=True) - mu * mu
            return (z - mu) * lax.rsqrt(var + EPS) * g + b

        def attention(z, l):
            # ONE lane-dense (R,64)@(64,192) MXU matmul for the whole q/k/v
            # projection (bf16 operands, f32 accumulation); bias added in f32.
            qkv = jnp.dot(z.astype(jnp.bfloat16), wqkv_ref[l],
                          preferred_element_type=jnp.float32) + bqkv_ref[l]
            # Head regroup: static lane slices -> leading (which*head) axis.
            parts = [qkv[:, i * HD:(i + 1) * HD] for i in range(3 * H)]
            qkvh = jnp.stack(parts, axis=0)             # (3H, R, HD)
            # Leading-only reshapes: (H, Bh*S, HD) -> (H*Bh, S, HD).
            q = qkvh[0 * H:1 * H].reshape(H * Bh, S, HD)  # softmax scale folded
            k = qkvh[1 * H:2 * H].reshape(H * Bh, S, HD)
            v = qkvh[2 * H:3 * H].reshape(H * Bh, S, HD)
            s = jnp.einsum("gqd,gkd->gqk",
                           q.astype(jnp.bfloat16), k.astype(jnp.bfloat16),
                           preferred_element_type=jnp.float32)  # (H*Bh, S, S)
            m = jnp.max(s, axis=-1, keepdims=True)
            e = jnp.exp(s - m)                                  # f32 softmax
            p = e * pl.reciprocal(jnp.sum(e, axis=-1, keepdims=True),
                                  approx=True)                  # EUP slot
            o = jnp.einsum("gqk,gkd->gqd",
                           p.astype(jnp.bfloat16), v.astype(jnp.bfloat16),
                           preferred_element_type=jnp.float32)  # (H*Bh, S, HD)
            o = o.reshape(H, Bh * S, HD)
            # Heads back onto the lane axis (head-major), then ONE fused
            # out-projection matmul (R,64)@(64,64) -- replaces the per-head
            # projection + head-sum pair.
            oc = jnp.concatenate([o[h] for h in range(H)], axis=-1)  # (R, D)
            return jnp.dot(oc.astype(jnp.bfloat16), waout_ref[l],
                           preferred_element_type=jnp.float32) + vec_ref[l:l + 1, :]

        a = attention(y, 0)                    # attn1
        y = layer_norm(a + y, 4)               # norm1
        a = attention(y, 1)                    # attn2 (kv=enc ignored upstream)
        y = layer_norm(a + y, 6)               # norm2
        # fc1(elu(fc2(x))) -- two lane-dense (R,64)@(64,64) matmuls.
        h = jnp.dot(y.astype(jnp.bfloat16), wfc_ref[0],
                    preferred_element_type=jnp.float32) + vec_ref[2:3, :]
        # F.elu (alpha=1); clamp keeps exp() finite on the untaken branch.
        h = jnp.where(h > 0, h, jnp.exp(jnp.minimum(h, 0.0)) - 1.0)
        a = jnp.dot(h.astype(jnp.bfloat16), wfc_ref[1],
                    preferred_element_type=jnp.float32) + vec_ref[3:4, :]
        y = layer_norm(y + a, 8)               # norm3
        o_ref[...] = y.astype(o_ref.dtype)

    def rep_spec(shape):
        nd = len(shape)
        return pl.BlockSpec(shape, lambda i, nd=nd: (0,) * nd)  # replicated

    x2d = x.reshape(BS, D)
    out2d = pl.pallas_call(
        kernel,
        out_shape=jax.ShapeDtypeStruct((BS, D), x.dtype),
        grid=(GRID,),
        in_specs=[
            pl.BlockSpec((R, D), lambda i: (i, 0)),     # token rows, split by batch half
            rep_spec(w_qkv.shape),
            rep_spec(b_qkv.shape),
            rep_spec(w_aout.shape),
            rep_spec(w_fc.shape),
            rep_spec(vec.shape),
        ],
        out_specs=pl.BlockSpec((R, D), lambda i: (i, 0)),
        compiler_params=pltpu.CompilerParams(
            dimension_semantics=("parallel",)),         # v7x: one half per TC
    )(x2d, w_qkv, b_qkv, w_aout, w_fc, vec)
    return out2d.reshape(B, S, D)


# --------------------------- deterministic parameters ------------------------


def make_raw_params(key, D):
    """PyTorch-layout parameters (weights as (out, in), biases as (out,))."""
    def linear(k, out_f, in_f):
        bound = 1.0 / (in_f ** 0.5)
        kw, kb = jax.random.split(k)
        w = jax.random.uniform(kw, (out_f, in_f), jnp.float32, -bound, bound)
        b = jax.random.uniform(kb, (out_f,), jnp.float32, -bound, bound)
        return w, b

    ks = jax.random.split(key, 12)
    p = {}
    p["attn1_in_w"], p["attn1_in_b"] = linear(ks[0], 3 * D, D)
    p["attn1_out_w"], p["attn1_out_b"] = linear(ks[1], D, D)
    p["attn2_in_w"], p["attn2_in_b"] = linear(ks[2], 3 * D, D)
    p["attn2_out_w"], p["attn2_out_b"] = linear(ks[3], D, D)
    p["fc1_w"], p["fc1_b"] = linear(ks[4], D, D)
    p["fc2_w"], p["fc2_b"] = linear(ks[5], D, D)
    for i, name in enumerate(("1", "2", "3")):
        p["g" + name] = 1.0 + 0.1 * jax.random.normal(ks[6 + 2 * i], (D,), jnp.float32)
        p["b" + name] = 0.1 * jax.random.normal(ks[7 + 2 * i], (D,), jnp.float32)
    return p


def pack_params(p, D, H):
    """Pack 18 tensors into 5 kernel-ready arrays.

    Matmul weights are bf16 (halve MXU passes + weight DMA bytes), biases and
    LayerNorm params stay f32.  Q weights/bias carry the 1/sqrt(head_dim)
    softmax scale.  QKV weights are packed lane-dense as (layer, D, 3*D) with
    column order [q(head-major) | k | v]; out-projection as (layer, D, D)
    whose row order matches the in-kernel head-major lane concat.
    """
    HD = D // H
    scale = HD ** -0.5

    def qkv_w(w_in):                          # (3D, D) -> (D, 3D) bf16
        w = w_in.reshape(3, D, D)             # [which, out, in]
        w = jnp.concatenate([w[0:1] * scale, w[1:3]], axis=0)   # pre-scale Q
        return jnp.transpose(w, (2, 0, 1)).reshape(D, 3 * D).astype(jnp.bfloat16)

    def qkv_b(b_in):                          # (3D,) -> (1, 3D) f32
        b = b_in.reshape(3, D)
        b = jnp.concatenate([b[0:1] * scale, b[1:3]], axis=0)
        return b.reshape(1, 3 * D)

    w_qkv = jnp.stack([qkv_w(p["attn1_in_w"]), qkv_w(p["attn2_in_w"])])      # (2,D,3D) bf16
    b_qkv = jnp.stack([qkv_b(p["attn1_in_b"]), qkv_b(p["attn2_in_b"])])      # (2,1,3D) f32
    w_aout = jnp.stack([p["attn1_out_w"].T, p["attn2_out_w"].T]).astype(jnp.bfloat16)  # (2,D,D)
    w_fc = jnp.stack([p["fc2_w"].T, p["fc1_w"].T]).astype(jnp.bfloat16)      # (2,D,D)
    vec = jnp.stack([p["attn1_out_b"], p["attn2_out_b"], p["fc2_b"], p["fc1_b"],
                     p["g1"], p["b1"], p["g2"], p["b2"], p["g3"], p["b3"]])  # (10,D) f32
    return w_qkv, b_qkv, w_aout, w_fc, vec


# ------------------------------- reference (plain JAX) -----------------------


def ref_decoder_layer(x, p, H):
    D = x.shape[-1]
    HD = D // H

    def ln(y, g, b):
        mu = jnp.mean(y, axis=-1, keepdims=True)
        yc = y - mu
        var = jnp.mean(yc * yc, axis=-1, keepdims=True)
        return yc * lax.rsqrt(var + EPS) * g + b

    def mha(y, w_in, b_in, w_out, b_out):
        B, S, _ = y.shape
        qkv = jnp.einsum("bsd,ed->bse", y, w_in) + b_in
        q = qkv[..., :D].reshape(B, S, H, HD) * (HD ** -0.5)
        k = qkv[..., D:2 * D].reshape(B, S, H, HD)
        v = qkv[..., 2 * D:].reshape(B, S, H, HD)
        s = jnp.einsum("bqhd,bkhd->bhqk", q, k)
        pr = jax.nn.softmax(s, axis=-1)
        o = jnp.einsum("bhqk,bkhd->bqhd", pr, v).reshape(B, S, D)
        return jnp.einsum("bsd,ed->bse", o, w_out) + b_out

    a = mha(x, p["attn1_in_w"], p["attn1_in_b"], p["attn1_out_w"], p["attn1_out_b"])
    x = ln(a + x, p["g1"], p["b1"])
    a = mha(x, p["attn2_in_w"], p["attn2_in_b"], p["attn2_out_w"], p["attn2_out_b"])
    x = ln(a + x, p["g2"], p["b2"])
    h = jnp.einsum("bsd,ed->bse", x, p["fc2_w"]) + p["fc2_b"]
    h = jnp.where(h > 0, h, jnp.expm1(h))       # F.elu, alpha=1
    a = jnp.einsum("bsd,ed->bse", h, p["fc1_w"]) + p["fc1_b"]
    return ln(x + a, p["g3"], p["b3"])


# ------------------------------------ main ------------------------------------


if __name__ == "__main__":
    key = jax.random.PRNGKey(0)
    kx, kenc, kp = jax.random.split(key, 3)
    x = jax.random.normal(kx, (BATCH, SEQ_LEN, DIM_VAL), jnp.float32)
    enc = jax.random.normal(kenc, (BATCH, SEQ_LEN, DIM_VAL), jnp.float32)

    raw = make_raw_params(kp, DIM_VAL)
    packed = pack_params(raw, DIM_VAL, N_HEADS)

    out = run_decoder_layer(x, enc, packed)
    out = jax.block_until_ready(out)

    with jax.default_matmul_precision("highest"):
        ref = ref_decoder_layer(x, raw, N_HEADS)
    ref = jax.block_until_ready(ref)

    assert out.shape == (BATCH, SEQ_LEN, DIM_VAL)
    assert bool(jnp.all(jnp.isfinite(out)))
    # MXU operands are bf16 (per perf review); elementwise math stays f32, so
    # a 2e-2 tolerance vs. the all-f32 reference comfortably bounds the
    # bf16-operand rounding accumulated over the layer's six matmul stages.
    assert jnp.allclose(out, ref, rtol=2e-2, atol=2e-2), \
        float(jnp.max(jnp.abs(out - ref)))
    print("KERNEL_OK")
</pallas_src>

<mosaic_0001>
module attributes {stable_mosaic.version = 11 : i64} {
  func.func @kernel(%arg0: i32, %arg1: memref<64x64xf32, #tpu.memory_space<vmem>>, %arg2: memref<2x64x192xbf16, #tpu.memory_space<vmem>>, %arg3: memref<2x1x192xf32, #tpu.memory_space<vmem>>, %arg4: memref<2x64x64xbf16, #tpu.memory_space<vmem>>, %arg5: memref<2x64x64xbf16, #tpu.memory_space<vmem>>, %arg6: memref<10x64xf32, #tpu.memory_space<vmem>>, %arg7: memref<64x64xf32, #tpu.memory_space<vmem>>) attributes {dimension_semantics = [#tpu.dimension_semantics<parallel>], iteration_bounds = array<i64: 2>, scalar_prefetch = 0 : i64, scratch_operands = 0 : i64, tpu.core_type = #tpu.core_type<tc>, window_params = [{transform_indices = @transform_0, window_bounds = array<i64: 64, 64>}, {pipeline_mode = #tpu.pipeline_mode<synchronous>, transform_indices = @transform_1, window_bounds = array<i64: 2, 64, 192>}, {pipeline_mode = #tpu.pipeline_mode<synchronous>, transform_indices = @transform_2, window_bounds = array<i64: 2, 1, 192>}, {pipeline_mode = #tpu.pipeline_mode<synchronous>, transform_indices = @transform_3, window_bounds = array<i64: 2, 64, 64>}, {pipeline_mode = #tpu.pipeline_mode<synchronous>, transform_indices = @transform_4, window_bounds = array<i64: 2, 64, 64>}, {pipeline_mode = #tpu.pipeline_mode<synchronous>, transform_indices = @transform_5, window_bounds = array<i64: 10, 64>}, {transform_indices = @transform_6, window_bounds = array<i64: 64, 64>}]} {
    %c0 = arith.constant 0 : index
    %c0_0 = arith.constant 0 : index
    %0 = vector.load %arg1[%c0, %c0_0] : memref<64x64xf32, #tpu.memory_space<vmem>>, vector<64x64xf32>
    %1 = arith.truncf %0 : vector<64x64xf32> to vector<64x64xbf16>
    %c0_1 = arith.constant 0 : index
    %c0_2 = arith.constant 0 : index
    %c0_3 = arith.constant 0 : index
    %2 = vector.load %arg2[%c0_1, %c0_2, %c0_3] : memref<2x64x192xbf16, #tpu.memory_space<vmem>>, vector<1x64x192xbf16>
    %3 = vector.shape_cast %2 : vector<1x64x192xbf16> to vector<64x192xbf16>
    %cst = arith.constant dense<0.000000e+00> : vector<64x192xf32>
    %4 = tpu.matmul %1, %3, %cst {dimension_numbers = #tpu.dot_dimension_numbers<[1], [0], [0], [1], [0, 0, 1, 1], [], []>} : vector<64x64xbf16>, vector<64x192xbf16>, vector<64x192xf32> -> vector<64x192xf32>
    %c0_4 = arith.constant 0 : index
    %c0_5 = arith.constant 0 : index
    %c0_6 = arith.constant 0 : index
    %5 = vector.load %arg3[%c0_4, %c0_5, %c0_6] : memref<2x1x192xf32, #tpu.memory_space<vmem>>, vector<1x1x192xf32>
    %6 = vector.shape_cast %5 : vector<1x1x192xf32> to vector<1x192xf32>
    %7 = vector.broadcast %6 : vector<1x192xf32> to vector<64x192xf32>
    %8 = arith.addf %4, %7 : vector<64x192xf32>
    %9 = vector.extract_strided_slice %8 {offsets = [0, 0], sizes = [64, 16], strides = [1, 1]} : vector<64x192xf32> to vector<64x16xf32>
    %10 = vector.extract_strided_slice %8 {offsets = [0, 16], sizes = [64, 16], strides = [1, 1]} : vector<64x192xf32> to vector<64x16xf32>
    %11 = vector.extract_strided_slice %8 {offsets = [0, 32], sizes = [64, 16], strides = [1, 1]} : vector<64x192xf32> to vector<64x16xf32>
    %12 = vector.extract_strided_slice %8 {offsets = [0, 48], sizes = [64, 16], strides = [1, 1]} : vector<64x192xf32> to vector<64x16xf32>
    %13 = vector.extract_strided_slice %8 {offsets = [0, 64], sizes = [64, 16], strides = [1, 1]} : vector<64x192xf32> to vector<64x16xf32>
    %14 = vector.extract_strided_slice %8 {offsets = [0, 80], sizes = [64, 16], strides = [1, 1]} : vector<64x192xf32> to vector<64x16xf32>
    %15 = vector.extract_strided_slice %8 {offsets = [0, 96], sizes = [64, 16], strides = [1, 1]} : vector<64x192xf32> to vector<64x16xf32>
    %16 = vector.extract_strided_slice %8 {offsets = [0, 112], sizes = [64, 16], strides = [1, 1]} : vector<64x192xf32> to vector<64x16xf32>
    %17 = vector.extract_strided_slice %8 {offsets = [0, 128], sizes = [64, 16], strides = [1, 1]} : vector<64x192xf32> to vector<64x16xf32>
    %18 = vector.extract_strided_slice %8 {offsets = [0, 144], sizes = [64, 16], strides = [1, 1]} : vector<64x192xf32> to vector<64x16xf32>
    %19 = vector.extract_strided_slice %8 {offsets = [0, 160], sizes = [64, 16], strides = [1, 1]} : vector<64x192xf32> to vector<64x16xf32>
    %20 = vector.extract_strided_slice %8 {offsets = [0, 176], sizes = [64, 16], strides = [1, 1]} : vector<64x192xf32> to vector<64x16xf32>
    %21 = vector.shape_cast %9 : vector<64x16xf32> to vector<1x64x16xf32>
    %22 = vector.shape_cast %10 : vector<64x16xf32> to vector<1x64x16xf32>
    %23 = vector.shape_cast %11 : vector<64x16xf32> to vector<1x64x16xf32>
    %24 = vector.shape_cast %12 : vector<64x16xf32> to vector<1x64x16xf32>
    %25 = vector.shape_cast %13 : vector<64x16xf32> to vector<1x64x16xf32>
    %26 = vector.shape_cast %14 : vector<64x16xf32> to vector<1x64x16xf32>
    %27 = vector.shape_cast %15 : vector<64x16xf32> to vector<1x64x16xf32>
    %28 = vector.shape_cast %16 : vector<64x16xf32> to vector<1x64x16xf32>
    %29 = vector.shape_cast %17 : vector<64x16xf32> to vector<1x64x16xf32>
    %30 = vector.shape_cast %18 : vector<64x16xf32> to vector<1x64x16xf32>
    %31 = vector.shape_cast %19 : vector<64x16xf32> to vector<1x64x16xf32>
    %32 = vector.shape_cast %20 : vector<64x16xf32> to vector<1x64x16xf32>
    %33 = tpu.concatenate %21, %22, %23, %24, %25, %26, %27, %28, %29, %30, %31, %32 in 0 : vector<1x64x16xf32>, vector<1x64x16xf32>, vector<1x64x16xf32>, vector<1x64x16xf32>, vector<1x64x16xf32>, vector<1x64x16xf32>, vector<1x64x16xf32>, vector<1x64x16xf32>, vector<1x64x16xf32>, vector<1x64x16xf32>, vector<1x64x16xf32>, vector<1x64x16xf32> -> vector<12x64x16xf32>
    %34 = vector.extract_strided_slice %33 {offsets = [0, 0, 0], sizes = [4, 64, 16], strides = [1, 1, 1]} : vector<12x64x16xf32> to vector<4x64x16xf32>
    %35 = vector.shape_cast %34 : vector<4x64x16xf32> to vector<8x32x16xf32>
    %36 = vector.extract_strided_slice %33 {offsets = [4, 0, 0], sizes = [4, 64, 16], strides = [1, 1, 1]} : vector<12x64x16xf32> to vector<4x64x16xf32>
    %37 = vector.shape_cast %36 : vector<4x64x16xf32> to vector<8x32x16xf32>
    %38 = vector.extract_strided_slice %33 {offsets = [8, 0, 0], sizes = [4, 64, 16], strides = [1, 1, 1]} : vector<12x64x16xf32> to vector<4x64x16xf32>
    %39 = vector.shape_cast %38 : vector<4x64x16xf32> to vector<8x32x16xf32>
    %40 = arith.truncf %35 : vector<8x32x16xf32> to vector<8x32x16xbf16>
    %41 = arith.truncf %37 : vector<8x32x16xf32> to vector<8x32x16xbf16>
    "tpu.trace_start"() <{level = 10 : i32, message = "gqd,gkd->gqk"}> : () -> ()
    %cst_7 = arith.constant dense<0.000000e+00> : vector<8x32x32xf32>
    %42 = tpu.matmul %40, %41, %cst_7 {dimension_numbers = #tpu.dot_dimension_numbers<[2], [2], [1], [1], [0, 0, 0, 1, 1, 1], [0], [0]>} : vector<8x32x16xbf16>, vector<8x32x16xbf16>, vector<8x32x32xf32> -> vector<8x32x32xf32>
    "tpu.trace_stop"() : () -> ()
    %cst_8 = arith.constant dense<0xFF800000> : vector<8x32xf32>
    %43 = vector.multi_reduction <maximumf>, %42, %cst_8 [2] : vector<8x32x32xf32> to vector<8x32xf32>
    %44 = vector.shape_cast %43 : vector<8x32xf32> to vector<8x32x1xf32>
    %45 = vector.broadcast %44 : vector<8x32x1xf32> to vector<8x32x32xf32>
    %46 = arith.subf %42, %45 : vector<8x32x32xf32>
    %47 = math.exp %46 : vector<8x32x32xf32>
    %cst_9 = arith.constant dense<0.000000e+00> : vector<8x32xf32>
    %48 = vector.multi_reduction <add>, %47, %cst_9 [2] : vector<8x32x32xf32> to vector<8x32xf32>
    %49 = vector.shape_cast %48 : vector<8x32xf32> to vector<8x32x1xf32>
    %50 = tpu.reciprocal %49 {approx = true} : vector<8x32x1xf32> -> vector<8x32x1xf32>
    %51 = vector.broadcast %50 : vector<8x32x1xf32> to vector<8x32x32xf32>
    %52 = arith.mulf %47, %51 : vector<8x32x32xf32>
    %53 = arith.truncf %52 : vector<8x32x32xf32> to vector<8x32x32xbf16>
    %54 = arith.truncf %39 : vector<8x32x16xf32> to vector<8x32x16xbf16>
    "tpu.trace_start"() <{level = 10 : i32, message = "gqk,gkd->gqd"}> : () -> ()
    %cst_10 = arith.constant dense<0.000000e+00> : vector<8x32x16xf32>
    %55 = tpu.matmul %53, %54, %cst_10 {dimension_numbers = #tpu.dot_dimension_numbers<[2], [1], [1], [2], [0, 0, 0, 1, 1, 2], [0], [0]>} : vector<8x32x32xbf16>, vector<8x32x16xbf16>, vector<8x32x16xf32> -> vector<8x32x16xf32>
    "tpu.trace_stop"() : () -> ()
    %56 = vector.shape_cast %55 : vector<8x32x16xf32> to vector<4x64x16xf32>
    %57 = vector.extract_strided_slice %56 {offsets = [0, 0, 0], sizes = [1, 64, 16], strides = [1, 1, 1]} : vector<4x64x16xf32> to vector<1x64x16xf32>
    %58 = vector.shape_cast %57 : vector<1x64x16xf32> to vector<64x16xf32>
    %59 = vector.extract_strided_slice %56 {offsets = [1, 0, 0], sizes = [1, 64, 16], strides = [1, 1, 1]} : vector<4x64x16xf32> to vector<1x64x16xf32>
    %60 = vector.shape_cast %59 : vector<1x64x16xf32> to vector<64x16xf32>
    %61 = vector.extract_strided_slice %56 {offsets = [2, 0, 0], sizes = [1, 64, 16], strides = [1, 1, 1]} : vector<4x64x16xf32> to vector<1x64x16xf32>
    %62 = vector.shape_cast %61 : vector<1x64x16xf32> to vector<64x16xf32>
    %63 = vector.extract_strided_slice %56 {offsets = [3, 0, 0], sizes = [1, 64, 16], strides = [1, 1, 1]} : vector<4x64x16xf32> to vector<1x64x16xf32>
    %64 = vector.shape_cast %63 : vector<1x64x16xf32> to vector<64x16xf32>
    %65 = tpu.concatenate %58, %60, %62, %64 in 1 : vector<64x16xf32>, vector<64x16xf32>, vector<64x16xf32>, vector<64x16xf32> -> vector<64x64xf32>
    %66 = arith.truncf %65 : vector<64x64xf32> to vector<64x64xbf16>
    %c0_11 = arith.constant 0 : index
    %c0_12 = arith.constant 0 : index
    %c0_13 = arith.constant 0 : index
    %67 = vector.load %arg4[%c0_11, %c0_12, %c0_13] : memref<2x64x64xbf16, #tpu.memory_space<vmem>>, vector<1x64x64xbf16>
    %68 = vector.shape_cast %67 : vector<1x64x64xbf16> to vector<64x64xbf16>
    %cst_14 = arith.constant dense<0.000000e+00> : vector<64x64xf32>
    %69 = tpu.matmul %66, %68, %cst_14 {dimension_numbers = #tpu.dot_dimension_numbers<[1], [0], [0], [1], [0, 0, 1, 1], [], []>} : vector<64x64xbf16>, vector<64x64xbf16>, vector<64x64xf32> -> vector<64x64xf32>
    %c0_15 = arith.constant 0 : index
    %c0_16 = arith.constant 0 : index
    %70 = vector.load %arg6[%c0_15, %c0_16] : memref<10x64xf32, #tpu.memory_space<vmem>>, vector<1x64xf32>
    %71 = vector.broadcast %70 : vector<1x64xf32> to vector<64x64xf32>
    %72 = arith.addf %69, %71 : vector<64x64xf32>
    %73 = arith.addf %72, %0 : vector<64x64xf32>
    %c4 = arith.constant 4 : index
    %c0_17 = arith.constant 0 : index
    %74 = vector.load %arg6[%c4, %c0_17] : memref<10x64xf32, #tpu.memory_space<vmem>>, vector<1x64xf32>
    %c5 = arith.constant 5 : index
    %c0_18 = arith.constant 0 : index
    %75 = vector.load %arg6[%c5, %c0_18] : memref<10x64xf32, #tpu.memory_space<vmem>>, vector<1x64xf32>
    %cst_19 = arith.constant dense<0.000000e+00> : vector<64xf32>
    %76 = vector.multi_reduction <add>, %73, %cst_19 [1] : vector<64x64xf32> to vector<64xf32>
    %77 = vector.shape_cast %76 : vector<64xf32> to vector<64x1xf32>
    %cst_20 = arith.constant 6.400000e+01 : f32
    %78 = vector.broadcast %cst_20 : f32 to vector<64x1xf32>
    %79 = arith.divf %77, %78 : vector<64x1xf32>
    %80 = arith.mulf %73, %73 : vector<64x64xf32>
    %cst_21 = arith.constant dense<0.000000e+00> : vector<64xf32>
    %81 = vector.multi_reduction <add>, %80, %cst_21 [1] : vector<64x64xf32> to vector<64xf32>
    %82 = vector.shape_cast %81 : vector<64xf32> to vector<64x1xf32>
    %cst_22 = arith.constant 6.400000e+01 : f32
    %83 = vector.broadcast %cst_22 : f32 to vector<64x1xf32>
    %84 = arith.divf %82, %83 : vector<64x1xf32>
    %85 = arith.mulf %79, %79 : vector<64x1xf32>
    %86 = arith.subf %84, %85 : vector<64x1xf32>
    %87 = vector.broadcast %79 : vector<64x1xf32> to vector<64x64xf32>
    %88 = arith.subf %73, %87 : vector<64x64xf32>
    %cst_23 = arith.constant 9.99999974E-6 : f32
    %89 = vector.broadcast %cst_23 : f32 to vector<64x1xf32>
    %90 = arith.addf %86, %89 : vector<64x1xf32>
    %91 = math.rsqrt %90 : vector<64x1xf32>
    %92 = vector.broadcast %91 : vector<64x1xf32> to vector<64x64xf32>
    %93 = arith.mulf %88, %92 : vector<64x64xf32>
    %94 = vector.broadcast %74 : vector<1x64xf32> to vector<64x64xf32>
    %95 = arith.mulf %93, %94 : vector<64x64xf32>
    %96 = vector.broadcast %75 : vector<1x64xf32> to vector<64x64xf32>
    %97 = arith.addf %95, %96 : vector<64x64xf32>
    %98 = arith.truncf %97 : vector<64x64xf32> to vector<64x64xbf16>
    %c1 = arith.constant 1 : index
    %c0_24 = arith.constant 0 : index
    %c0_25 = arith.constant 0 : index
    %99 = vector.load %arg2[%c1, %c0_24, %c0_25] : memref<2x64x192xbf16, #tpu.memory_space<vmem>>, vector<1x64x192xbf16>
    %100 = vector.shape_cast %99 : vector<1x64x192xbf16> to vector<64x192xbf16>
    %cst_26 = arith.constant dense<0.000000e+00> : vector<64x192xf32>
    %101 = tpu.matmul %98, %100, %cst_26 {dimension_numbers = #tpu.dot_dimension_numbers<[1], [0], [0], [1], [0, 0, 1, 1], [], []>} : vector<64x64xbf16>, vector<64x192xbf16>, vector<64x192xf32> -> vector<64x192xf32>
    %c1_27 = arith.constant 1 : index
    %c0_28 = arith.constant 0 : index
    %c0_29 = arith.constant 0 : index
    %102 = vector.load %arg3[%c1_27, %c0_28, %c0_29] : memref<2x1x192xf32, #tpu.memory_space<vmem>>, vector<1x1x192xf32>
    %103 = vector.shape_cast %102 : vector<1x1x192xf32> to vector<1x192xf32>
    %104 = vector.broadcast %103 : vector<1x192xf32> to vector<64x192xf32>
    %105 = arith.addf %101, %104 : vector<64x192xf32>
    %106 = vector.extract_strided_slice %105 {offsets = [0, 0], sizes = [64, 16], strides = [1, 1]} : vector<64x192xf32> to vector<64x16xf32>
    %107 = vector.extract_strided_slice %105 {offsets = [0, 16], sizes = [64, 16], strides = [1, 1]} : vector<64x192xf32> to vector<64x16xf32>
    %108 = vector.extract_strided_slice %105 {offsets = [0, 32], sizes = [64, 16], strides = [1, 1]} : vector<64x192xf32> to vector<64x16xf32>
    %109 = vector.extract_strided_slice %105 {offsets = [0, 48], sizes = [64, 16], strides = [1, 1]} : vector<64x192xf32> to vector<64x16xf32>
    %110 = vector.extract_strided_slice %105 {offsets = [0, 64], sizes = [64, 16], strides = [1, 1]} : vector<64x192xf32> to vector<64x16xf32>
    %111 = vector.extract_strided_slice %105 {offsets = [0, 80], sizes = [64, 16], strides = [1, 1]} : vector<64x192xf32> to vector<64x16xf32>
    %112 = vector.extract_strided_slice %105 {offsets = [0, 96], sizes = [64, 16], strides = [1, 1]} : vector<64x192xf32> to vector<64x16xf32>
    %113 = vector.extract_strided_slice %105 {offsets = [0, 112], sizes = [64, 16], strides = [1, 1]} : vector<64x192xf32> to vector<64x16xf32>
    %114 = vector.extract_strided_slice %105 {offsets = [0, 128], sizes = [64, 16], strides = [1, 1]} : vector<64x192xf32> to vector<64x16xf32>
    %115 = vector.extract_strided_slice %105 {offsets = [0, 144], sizes = [64, 16], strides = [1, 1]} : vector<64x192xf32> to vector<64x16xf32>
    %116 = vector.extract_strided_slice %105 {offsets = [0, 160], sizes = [64, 16], strides = [1, 1]} : vector<64x192xf32> to vector<64x16xf32>
    %117 = vector.extract_strided_slice %105 {offsets = [0, 176], sizes = [64, 16], strides = [1, 1]} : vector<64x192xf32> to vector<64x16xf32>
    %118 = vector.shape_cast %106 : vector<64x16xf32> to vector<1x64x16xf32>
    %119 = vector.shape_cast %107 : vector<64x16xf32> to vector<1x64x16xf32>
    %120 = vector.shape_cast %108 : vector<64x16xf32> to vector<1x64x16xf32>
    %121 = vector.shape_cast %109 : vector<64x16xf32> to vector<1x64x16xf32>
    %122 = vector.shape_cast %110 : vector<64x16xf32> to vector<1x64x16xf32>
    %123 = vector.shape_cast %111 : vector<64x16xf32> to vector<1x64x16xf32>
    %124 = vector.shape_cast %112 : vector<64x16xf32> to vector<1x64x16xf32>
    %125 = vector.shape_cast %113 : vector<64x16xf32> to vector<1x64x16xf32>
    %126 = vector.shape_cast %114 : vector<64x16xf32> to vector<1x64x16xf32>
    %127 = vector.shape_cast %115 : vector<64x16xf32> to vector<1x64x16xf32>
    %128 = vector.shape_cast %116 : vector<64x16xf32> to vector<1x64x16xf32>
    %129 = vector.shape_cast %117 : vector<64x16xf32> to vector<1x64x16xf32>
    %130 = tpu.concatenate %118, %119, %120, %121, %122, %123, %124, %125, %126, %127, %128, %129 in 0 : vector<1x64x16xf32>, vector<1x64x16xf32>, vector<1x64x16xf32>, vector<1x64x16xf32>, vector<1x64x16xf32>, vector<1x64x16xf32>, vector<1x64x16xf32>, vector<1x64x16xf32>, vector<1x64x16xf32>, vector<1x64x16xf32>, vector<1x64x16xf32>, vector<1x64x16xf32> -> vector<12x64x16xf32>
    %131 = vector.extract_strided_slice %130 {offsets = [0, 0, 0], sizes = [4, 64, 16], strides = [1, 1, 1]} : vector<12x64x16xf32> to vector<4x64x16xf32>
    %132 = vector.shape_cast %131 : vector<4x64x16xf32> to vector<8x32x16xf32>
    %133 = vector.extract_strided_slice %130 {offsets = [4, 0, 0], sizes = [4, 64, 16], strides = [1, 1, 1]} : vector<12x64x16xf32> to vector<4x64x16xf32>
    %134 = vector.shape_cast %133 : vector<4x64x16xf32> to vector<8x32x16xf32>
    %135 = vector.extract_strided_slice %130 {offsets = [8, 0, 0], sizes = [4, 64, 16], strides = [1, 1, 1]} : vector<12x64x16xf32> to vector<4x64x16xf32>
    %136 = vector.shape_cast %135 : vector<4x64x16xf32> to vector<8x32x16xf32>
    %137 = arith.truncf %132 : vector<8x32x16xf32> to vector<8x32x16xbf16>
    %138 = arith.truncf %134 : vector<8x32x16xf32> to vector<8x32x16xbf16>
    "tpu.trace_start"() <{level = 10 : i32, message = "gqd,gkd->gqk"}> : () -> ()
    %cst_30 = arith.constant dense<0.000000e+00> : vector<8x32x32xf32>
    %139 = tpu.matmul %137, %138, %cst_30 {dimension_numbers = #tpu.dot_dimension_numbers<[2], [2], [1], [1], [0, 0, 0, 1, 1, 1], [0], [0]>} : vector<8x32x16xbf16>, vector<8x32x16xbf16>, vector<8x32x32xf32> -> vector<8x32x32xf32>
    "tpu.trace_stop"() : () -> ()
    %cst_31 = arith.constant dense<0xFF800000> : vector<8x32xf32>
    %140 = vector.multi_reduction <maximumf>, %139, %cst_31 [2] : vector<8x32x32xf32> to vector<8x32xf32>
    %141 = vector.shape_cast %140 : vector<8x32xf32> to vector<8x32x1xf32>
    %142 = vector.broadcast %141 : vector<8x32x1xf32> to vector<8x32x32xf32>
    %143 = arith.subf %139, %142 : vector<8x32x32xf32>
    %144 = math.exp %143 : vector<8x32x32xf32>
    %cst_32 = arith.constant dense<0.000000e+00> : vector<8x32xf32>
    %145 = vector.multi_reduction <add>, %144, %cst_32 [2] : vector<8x32x32xf32> to vector<8x32xf32>
    %146 = vector.shape_cast %145 : vector<8x32xf32> to vector<8x32x1xf32>
    %147 = tpu.reciprocal %146 {approx = true} : vector<8x32x1xf32> -> vector<8x32x1xf32>
    %148 = vector.broadcast %147 : vector<8x32x1xf32> to vector<8x32x32xf32>
    %149 = arith.mulf %144, %148 : vector<8x32x32xf32>
    %150 = arith.truncf %149 : vector<8x32x32xf32> to vector<8x32x32xbf16>
    %151 = arith.truncf %136 : vector<8x32x16xf32> to vector<8x32x16xbf16>
    "tpu.trace_start"() <{level = 10 : i32, message = "gqk,gkd->gqd"}> : () -> ()
    %cst_33 = arith.constant dense<0.000000e+00> : vector<8x32x16xf32>
    %152 = tpu.matmul %150, %151, %cst_33 {dimension_numbers = #tpu.dot_dimension_numbers<[2], [1], [1], [2], [0, 0, 0, 1, 1, 2], [0], [0]>} : vector<8x32x32xbf16>, vector<8x32x16xbf16>, vector<8x32x16xf32> -> vector<8x32x16xf32>
    "tpu.trace_stop"() : () -> ()
    %153 = vector.shape_cast %152 : vector<8x32x16xf32> to vector<4x64x16xf32>
    %154 = vector.extract_strided_slice %153 {offsets = [0, 0, 0], sizes = [1, 64, 16], strides = [1, 1, 1]} : vector<4x64x16xf32> to vector<1x64x16xf32>
    %155 = vector.shape_cast %154 : vector<1x64x16xf32> to vector<64x16xf32>
    %156 = vector.extract_strided_slice %153 {offsets = [1, 0, 0], sizes = [1, 64, 16], strides = [1, 1, 1]} : vector<4x64x16xf32> to vector<1x64x16xf32>
    %157 = vector.shape_cast %156 : vector<1x64x16xf32> to vector<64x16xf32>
    %158 = vector.extract_strided_slice %153 {offsets = [2, 0, 0], sizes = [1, 64, 16], strides = [1, 1, 1]} : vector<4x64x16xf32> to vector<1x64x16xf32>
    %159 = vector.shape_cast %158 : vector<1x64x16xf32> to vector<64x16xf32>
    %160 = vector.extract_strided_slice %153 {offsets = [3, 0, 0], sizes = [1, 64, 16], strides = [1, 1, 1]} : vector<4x64x16xf32> to vector<1x64x16xf32>
    %161 = vector.shape_cast %160 : vector<1x64x16xf32> to vector<64x16xf32>
    %162 = tpu.concatenate %155, %157, %159, %161 in 1 : vector<64x16xf32>, vector<64x16xf32>, vector<64x16xf32>, vector<64x16xf32> -> vector<64x64xf32>
    %163 = arith.truncf %162 : vector<64x64xf32> to vector<64x64xbf16>
    %c1_34 = arith.constant 1 : index
    %c0_35 = arith.constant 0 : index
    %c0_36 = arith.constant 0 : index
    %164 = vector.load %arg4[%c1_34, %c0_35, %c0_36] : memref<2x64x64xbf16, #tpu.memory_space<vmem>>, vector<1x64x64xbf16>
    %165 = vector.shape_cast %164 : vector<1x64x64xbf16> to vector<64x64xbf16>
    %cst_37 = arith.constant dense<0.000000e+00> : vector<64x64xf32>
    %166 = tpu.matmul %163, %165, %cst_37 {dimension_numbers = #tpu.dot_dimension_numbers<[1], [0], [0], [1], [0, 0, 1, 1], [], []>} : vector<64x64xbf16>, vector<64x64xbf16>, vector<64x64xf32> -> vector<64x64xf32>
    %c1_38 = arith.constant 1 : index
    %c0_39 = arith.constant 0 : index
    %167 = vector.load %arg6[%c1_38, %c0_39] : memref<10x64xf32, #tpu.memory_space<vmem>>, vector<1x64xf32>
    %168 = vector.broadcast %167 : vector<1x64xf32> to vector<64x64xf32>
    %169 = arith.addf %166, %168 : vector<64x64xf32>
    %170 = arith.addf %169, %97 : vector<64x64xf32>
    %c6 = arith.constant 6 : index
    %c0_40 = arith.constant 0 : index
    %171 = vector.load %arg6[%c6, %c0_40] : memref<10x64xf32, #tpu.memory_space<vmem>>, vector<1x64xf32>
    %c7 = arith.constant 7 : index
    %c0_41 = arith.constant 0 : index
    %172 = vector.load %arg6[%c7, %c0_41] : memref<10x64xf32, #tpu.memory_space<vmem>>, vector<1x64xf32>
    %cst_42 = arith.constant dense<0.000000e+00> : vector<64xf32>
    %173 = vector.multi_reduction <add>, %170, %cst_42 [1] : vector<64x64xf32> to vector<64xf32>
    %174 = vector.shape_cast %173 : vector<64xf32> to vector<64x1xf32>
    %cst_43 = arith.constant 6.400000e+01 : f32
    %175 = vector.broadcast %cst_43 : f32 to vector<64x1xf32>
    %176 = arith.divf %174, %175 : vector<64x1xf32>
    %177 = arith.mulf %170, %170 : vector<64x64xf32>
    %cst_44 = arith.constant dense<0.000000e+00> : vector<64xf32>
    %178 = vector.multi_reduction <add>, %177, %cst_44 [1] : vector<64x64xf32> to vector<64xf32>
    %179 = vector.shape_cast %178 : vector<64xf32> to vector<64x1xf32>
    %cst_45 = arith.constant 6.400000e+01 : f32
    %180 = vector.broadcast %cst_45 : f32 to vector<64x1xf32>
    %181 = arith.divf %179, %180 : vector<64x1xf32>
    %182 = arith.mulf %176, %176 : vector<64x1xf32>
    %183 = arith.subf %181, %182 : vector<64x1xf32>
    %184 = vector.broadcast %176 : vector<64x1xf32> to vector<64x64xf32>
    %185 = arith.subf %170, %184 : vector<64x64xf32>
    %cst_46 = arith.constant 9.99999974E-6 : f32
    %186 = vector.broadcast %cst_46 : f32 to vector<64x1xf32>
    %187 = arith.addf %183, %186 : vector<64x1xf32>
    %188 = math.rsqrt %187 : vector<64x1xf32>
    %189 = vector.broadcast %188 : vector<64x1xf32> to vector<64x64xf32>
    %190 = arith.mulf %185, %189 : vector<64x64xf32>
    %191 = vector.broadcast %171 : vector<1x64xf32> to vector<64x64xf32>
    %192 = arith.mulf %190, %191 : vector<64x64xf32>
    %193 = vector.broadcast %172 : vector<1x64xf32> to vector<64x64xf32>
    %194 = arith.addf %192, %193 : vector<64x64xf32>
    %195 = arith.truncf %194 : vector<64x64xf32> to vector<64x64xbf16>
    %c0_47 = arith.constant 0 : index
    %c0_48 = arith.constant 0 : index
    %c0_49 = arith.constant 0 : index
    %196 = vector.load %arg5[%c0_47, %c0_48, %c0_49] : memref<2x64x64xbf16, #tpu.memory_space<vmem>>, vector<1x64x64xbf16>
    %197 = vector.shape_cast %196 : vector<1x64x64xbf16> to vector<64x64xbf16>
    %cst_50 = arith.constant dense<0.000000e+00> : vector<64x64xf32>
    %198 = tpu.matmul %195, %197, %cst_50 {dimension_numbers = #tpu.dot_dimension_numbers<[1], [0], [0], [1], [0, 0, 1, 1], [], []>} : vector<64x64xbf16>, vector<64x64xbf16>, vector<64x64xf32> -> vector<64x64xf32>
    %c2 = arith.constant 2 : index
    %c0_51 = arith.constant 0 : index
    %199 = vector.load %arg6[%c2, %c0_51] : memref<10x64xf32, #tpu.memory_space<vmem>>, vector<1x64xf32>
    %200 = vector.broadcast %199 : vector<1x64xf32> to vector<64x64xf32>
    %201 = arith.addf %198, %200 : vector<64x64xf32>
    %cst_52 = arith.constant 0.000000e+00 : f32
    %202 = vector.broadcast %cst_52 : f32 to vector<64x64xf32>
    %203 = arith.cmpf ogt, %201, %202 : vector<64x64xf32>
    %cst_53 = arith.constant 0.000000e+00 : f32
    %204 = vector.broadcast %cst_53 : f32 to vector<64x64xf32>
    %205 = arith.minimumf %201, %204 : vector<64x64xf32>
    %206 = math.exp %205 : vector<64x64xf32>
    %cst_54 = arith.constant 1.000000e+00 : f32
    %207 = vector.broadcast %cst_54 : f32 to vector<64x64xf32>
    %208 = arith.subf %206, %207 : vector<64x64xf32>
    %209 = arith.select %203, %201, %208 : vector<64x64xi1>, vector<64x64xf32>
    %210 = arith.truncf %209 : vector<64x64xf32> to vector<64x64xbf16>
    %c1_55 = arith.constant 1 : index
    %c0_56 = arith.constant 0 : index
    %c0_57 = arith.constant 0 : index
    %211 = vector.load %arg5[%c1_55, %c0_56, %c0_57] : memref<2x64x64xbf16, #tpu.memory_space<vmem>>, vector<1x64x64xbf16>
    %212 = vector.shape_cast %211 : vector<1x64x64xbf16> to vector<64x64xbf16>
    %cst_58 = arith.constant dense<0.000000e+00> : vector<64x64xf32>
    %213 = tpu.matmul %210, %212, %cst_58 {dimension_numbers = #tpu.dot_dimension_numbers<[1], [0], [0], [1], [0, 0, 1, 1], [], []>} : vector<64x64xbf16>, vector<64x64xbf16>, vector<64x64xf32> -> vector<64x64xf32>
    %c3 = arith.constant 3 : index
    %c0_59 = arith.constant 0 : index
    %214 = vector.load %arg6[%c3, %c0_59] : memref<10x64xf32, #tpu.memory_space<vmem>>, vector<1x64xf32>
    %215 = vector.broadcast %214 : vector<1x64xf32> to vector<64x64xf32>
    %216 = arith.addf %213, %215 : vector<64x64xf32>
    %217 = arith.addf %194, %216 : vector<64x64xf32>
    %c8 = arith.constant 8 : index
    %c0_60 = arith.constant 0 : index
    %218 = vector.load %arg6[%c8, %c0_60] : memref<10x64xf32, #tpu.memory_space<vmem>>, vector<1x64xf32>
    %c9 = arith.constant 9 : index
    %c0_61 = arith.constant 0 : index
    %219 = vector.load %arg6[%c9, %c0_61] : memref<10x64xf32, #tpu.memory_space<vmem>>, vector<1x64xf32>
    %cst_62 = arith.constant dense<0.000000e+00> : vector<64xf32>
    %220 = vector.multi_reduction <add>, %217, %cst_62 [1] : vector<64x64xf32> to vector<64xf32>
    %221 = vector.shape_cast %220 : vector<64xf32> to vector<64x1xf32>
    %cst_63 = arith.constant 6.400000e+01 : f32
    %222 = vector.broadcast %cst_63 : f32 to vector<64x1xf32>
    %223 = arith.divf %221, %222 : vector<64x1xf32>
    %224 = arith.mulf %217, %217 : vector<64x64xf32>
    %cst_64 = arith.constant dense<0.000000e+00> : vector<64xf32>
    %225 = vector.multi_reduction <add>, %224, %cst_64 [1] : vector<64x64xf32> to vector<64xf32>
    %226 = vector.shape_cast %225 : vector<64xf32> to vector<64x1xf32>
    %cst_65 = arith.constant 6.400000e+01 : f32
    %227 = vector.broadcast %cst_65 : f32 to vector<64x1xf32>
    %228 = arith.divf %226, %227 : vector<64x1xf32>
    %229 = arith.mulf %223, %223 : vector<64x1xf32>
    %230 = arith.subf %228, %229 : vector<64x1xf32>
    %231 = vector.broadcast %223 : vector<64x1xf32> to vector<64x64xf32>
    %232 = arith.subf %217, %231 : vector<64x64xf32>
    %cst_66 = arith.constant 9.99999974E-6 : f32
    %233 = vector.broadcast %cst_66 : f32 to vector<64x1xf32>
    %234 = arith.addf %230, %233 : vector<64x1xf32>
    %235 = math.rsqrt %234 : vector<64x1xf32>
    %236 = vector.broadcast %235 : vector<64x1xf32> to vector<64x64xf32>
    %237 = arith.mulf %232, %236 : vector<64x64xf32>
    %238 = vector.broadcast %218 : vector<1x64xf32> to vector<64x64xf32>
    %239 = arith.mulf %237, %238 : vector<64x64xf32>
    %240 = vector.broadcast %219 : vector<1x64xf32> to vector<64x64xf32>
    %241 = arith.addf %239, %240 : vector<64x64xf32>
    %c0_67 = arith.constant 0 : index
    %c0_68 = arith.constant 0 : index
    %242 = vector.load %arg7[%c0_67, %c0_68] : memref<64x64xf32, #tpu.memory_space<vmem>>, vector<64x64xf32>
    tpu.vector_store %arg7[%c0_67, %c0_68], %241 {strides = array<i32>} : memref<64x64xf32, #tpu.memory_space<vmem>>, vector<64x64xf32>,
    return
  }
  func.func @transform_0(%arg0: i32) -> (i32, i32) {
    %c0_i32 = arith.constant 0 : i32
    %c0_i32_0 = arith.constant 0 : i32
    return %arg0, %c0_i32 : i32, i32
  }
  func.func @transform_1(%arg0: i32) -> (i32, i32, i32) {
    %c0_i32 = arith.constant 0 : i32
    %c0_i32_0 = arith.constant 0 : i32
    %c0_i32_1 = arith.constant 0 : i32
    %c0_i32_2 = arith.constant 0 : i32
    return %c0_i32, %c0_i32_0, %c0_i32_1 : i32, i32, i32
  }
  func.func @transform_2(%arg0: i32) -> (i32, i32, i32) {
    %c0_i32 = arith.constant 0 : i32
    %c0_i32_0 = arith.constant 0 : i32
    %c0_i32_1 = arith.constant 0 : i32
    %c0_i32_2 = arith.constant 0 : i32
    return %c0_i32, %c0_i32_0, %c0_i32_1 : i32, i32, i32
  }
  func.func @transform_3(%arg0: i32) -> (i32, i32, i32) {
    %c0_i32 = arith.constant 0 : i32
    %c0_i32_0 = arith.constant 0 : i32
    %c0_i32_1 = arith.constant 0 : i32
    %c0_i32_2 = arith.constant 0 : i32
    return %c0_i32, %c0_i32_0, %c0_i32_1 : i32, i32, i32
  }
  func.func @transform_4(%arg0: i32) -> (i32, i32, i32) {
    %c0_i32 = arith.constant 0 : i32
    %c0_i32_0 = arith.constant 0 : i32
    %c0_i32_1 = arith.constant 0 : i32
    %c0_i32_2 = arith.constant 0 : i32
    return %c0_i32, %c0_i32_0, %c0_i32_1 : i32, i32, i32
  }
  func.func @transform_5(%arg0: i32) -> (i32, i32) {
    %c0_i32 = arith.constant 0 : i32
    %c0_i32_0 = arith.constant 0 : i32
    %c0_i32_1 = arith.constant 0 : i32
    return %c0_i32, %c0_i32_0 : i32, i32
  }
  func.func @transform_6(%arg0: i32) -> (i32, i32) {
    %c0_i32 = arith.constant 0 : i32
    %c0_i32_0 = arith.constant 0 : i32
    return %arg0, %c0_i32 : i32, i32
  }
}

</mosaic_0001>

<llo_original>
// kernel: tpu_custom_call.1
$region0: #{tpu_custom_call.1}
  #allocation0 [shape = 'u32[]', space=smem, size = 0x4, offset = 0x4, fixed_abs, tag = 'smem constant byte address 0x4 - core index']
  #allocation1 [shape = 'u32[144,128]{1,0:T(1,128)}', space=vmem, size = 0x12000, scoped, tag = 'internal scratch']
  %s0 = inlined_call_operand.vmem [shape: f32[128,64], index: 0, kind: input, shape index: {}]
  %s1 = inlined_call_operand.vmem [shape: bf16[2,64,192], index: 1, kind: input, shape index: {}]
  %s2 = inlined_call_operand.hbm [shape: f32[2,1,192], index: 2, kind: input, shape index: {}]
  %s3 = inlined_call_operand.vmem [shape: bf16[2,64,64], index: 3, kind: input, shape index: {}]
  %s4 = inlined_call_operand.hbm [shape: bf16[2,64,64], index: 4, kind: input, shape index: {}]
  %s5 = inlined_call_operand.hbm [shape: f32[10,64], index: 5, kind: input, shape index: {}]
  %s6 = inlined_call_operand.vmem [shape: f32[128,64], index: 6, kind: output, shape index: {}]
  %s7 = sld [smem:[#allocation0]]
  $region69: #{tpu_custom_call.1} parent=0
    _
  %s9 = ssub.s32 1, %s7
  %s10 = scalar_select 0, %s9, %s7
  $region1: #{tpu_custom_call.1} parent=0
    #allocation2 [shape = 'u8[2048]{0}', space=vmem, size = 0x800, scoped, tag = 'input window, operand 2, single buffered']
    #allocation3 [shape = 's32[2]{0}', space=sflag, size = 0x8, scoped, tag = 'scoped memory for tpu_custom_call.1']
    #allocation4 [shape = 'u8[32768]{0}', space=vmem, size = 0x8000, scoped, tag = 'input window, operand 4, single buffered']
    #allocation5 [shape = 's32[1]{0}', space=sflag, size = 0x4, scoped, tag = 'scoped memory for tpu_custom_call.1']
    #allocation6 [shape = 'u8[8192]{0}', space=vmem, size = 0x2000, scoped, tag = 'input window, operand 5, single buffered']
    %11 = vsyncpa [#allocation3], 0
    %12 = vsyncpa [#allocation5], 0
    loop: start=0, step=1, limit=4
    $region2: #{tpu_custom_call.1} parent=1 // loop_pre_header
      _
    $region3: #{tpu_custom_call.1} parent=1 // loop_header
      %s14 = sphi 0, %s18
      %p15 = scmp.ge.s32.totalorder %s14, 4
      %s24 = sphi 0, %s26
      %s27 = sphi 0, %s24
      %s28 = sphi 0, %s27
      %s44 = sphi 0, %s28
      %s48 = sphi 0, %s48
      %s50 = sphi 0, %s48
      %s51 = sphi 0, %s50
      %s65 = sphi 0, %s51
      %s69 = sphi 0, %s69
      %s71 = sphi 0, %s69
      %s72 = sphi 0, %s71
      %s86 = sphi 0, %s72
      %s90 = sphi 0, %s90
      %s92 = sphi 0, %s90
      %s93 = sphi 0, %s92
      %s107 = sphi 0, %s93
      %s111 = sphi 0, %s111
      %s113 = sphi 0, %s111
      %s114 = sphi 0, %s113
      %s128 = sphi 0, %s114
      %s132 = sphi 0, %s132
      %s134 = sphi 0, %s132
      %s135 = sphi 0, %s134
      %s149 = sphi 0, %s135
      %s155 = sphi 0, %s157
      %s158 = sphi 0, %s155
      %s159 = sphi 0, %s158
      %s175 = sphi 0, %s159
    $region4: #{tpu_custom_call.1} parent=1 // loop_header_branch
      %17 = sbr.rel (%p15) target = $region8
    $region5: #{tpu_custom_call.1} parent=1 // loop_body
      %s19 = ssub.s32 %s14, 1
      %s20 = ssub.s32 %s14, 2
      %s21 = sadd.s32 %s14, 1
      %s22 = ssub.s32 %s14, %s21
      %p23 = scmp.eq.s32.totalorder %s22, 0
      %s25 = sadd.s32 %s24, 1
      %s26 = scalar_select %p23, %s24, %s25
      %p29 = pneg %p23
      %p30 = scmp.eq.s32.totalorder %s14, 1
      %p31 = por %p29, %p30
      %p32 = scmp.ne.s32.totalorder %s24, %s27
      %p33 = scmp.eq.s32.totalorder %s14, 0
      %p34 = por %p32, %p33
      %p35 = scmp.ne.s32.totalorder %s24, %s27
      %p36 = scmp.eq.s32.totalorder %s19, 1
      %p37 = por %p35, %p36
      %p38 = scmp.ne.s32.totalorder %s27, %s28
      %p39 = scmp.eq.s32.totalorder %s19, 0
      %p40 = por %p38, %p39
      %p41 = scmp.ne.s32.totalorder %s27, %s28
      %p42 = scmp.eq.s32.totalorder %s20, 1
      %p43 = por %p41, %p42
      %p45 = scmp.ne.s32.totalorder %s28, %s44
      %p46 = scmp.eq.s32.totalorder %s20, 0
      %p47 = por %p45, %p46
      %s49 = sadd.s32 %s48, 1
      %p52 = scmp.eq.s32.totalorder %s14, 1
      %p53 = scmp.ne.s32.totalorder %s48, %s50
      %p54 = scmp.eq.s32.totalorder %s14, 0
      %p55 = por %p53, %p54
      %p56 = scmp.ne.s32.totalorder %s48, %s50
      %p57 = scmp.eq.s32.totalorder %s19, 1
      %p58 = por %p56, %p57
      %p59 = scmp.ne.s32.totalorder %s50, %s51
      %p60 = scmp.eq.s32.totalorder %s19, 0
      %p61 = por %p59, %p60
      %p62 = scmp.ne.s32.totalorder %s50, %s51
      %p63 = scmp.eq.s32.totalorder %s20, 1
      %p64 = por %p62, %p63
      %p66 = scmp.ne.s32.totalorder %s51, %s65
      %p67 = scmp.eq.s32.totalorder %s20, 0
      %p68 = por %p66, %p67
      %s70 = sadd.s32 %s69, 1
      %p73 = scmp.eq.s32.totalorder %s14, 1
      %p74 = scmp.ne.s32.totalorder %s69, %s71
      %p75 = scmp.eq.s32.totalorder %s14, 0
      %p76 = por %p74, %p75
      %p77 = scmp.ne.s32.totalorder %s69, %s71
      %p78 = scmp.eq.s32.totalorder %s19, 1
      %p79 = por %p77, %p78
      %p80 = scmp.ne.s32.totalorder %s71, %s72
      %p81 = scmp.eq.s32.totalorder %s19, 0
      %p82 = por %p80, %p81
      %p83 = scmp.ne.s32.totalorder %s71, %s72
      %p84 = scmp.eq.s32.totalorder %s20, 1
      %p85 = por %p83, %p84
      %p87 = scmp.ne.s32.totalorder %s72, %s86
      %p88 = scmp.eq.s32.totalorder %s20, 0
      %p89 = por %p87, %p88
      %s91 = sadd.s32 %s90, 1
      %p94 = scmp.eq.s32.totalorder %s14, 1
      %p95 = scmp.ne.s32.totalorder %s90, %s92
      %p96 = scmp.eq.s32.totalorder %s14, 0
      %p97 = por %p95, %p96
      %p98 = scmp.ne.s32.totalorder %s90, %s92
      %p99 = scmp.eq.s32.totalorder %s19, 1
      %p100 = por %p98, %p99
      %p101 = scmp.ne.s32.totalorder %s92, %s93
      %p102 = scmp.eq.s32.totalorder %s19, 0
      %p103 = por %p101, %p102
      %p104 = scmp.ne.s32.totalorder %s92, %s93
      %p105 = scmp.eq.s32.totalorder %s20, 1
      %p106 = por %p104, %p105
      %p108 = scmp.ne.s32.totalorder %s93, %s107
      %p109 = scmp.eq.s32.totalorder %s20, 0
      %p110 = por %p108, %p109
      %s112 = sadd.s32 %s111, 1
      %p115 = scmp.eq.s32.totalorder %s14, 1
      %p116 = scmp.ne.s32.totalorder %s111, %s113
      %p117 = scmp.eq.s32.totalorder %s14, 0
      %p118 = por %p116, %p117
      %p119 = scmp.ne.s32.totalorder %s111, %s113
      %p120 = scmp.eq.s32.totalorder %s19, 1
      %p121 = por %p119, %p120
      %p122 = scmp.ne.s32.totalorder %s113, %s114
      %p123 = scmp.eq.s32.totalorder %s19, 0
      %p124 = por %p122, %p123
      %p125 = scmp.ne.s32.totalorder %s113, %s114
      %p126 = scmp.eq.s32.totalorder %s20, 1
      %p127 = por %p125, %p126
      %p129 = scmp.ne.s32.totalorder %s114, %s128
      %p130 = scmp.eq.s32.totalorder %s20, 0
      %p131 = por %p129, %p130
      %s133 = sadd.s32 %s132, 1
      %p136 = scmp.eq.s32.totalorder %s14, 1
      %p137 = scmp.ne.s32.totalorder %s132, %s134
      %p138 = scmp.eq.s32.totalorder %s14, 0
      %p139 = por %p137, %p138
      %p140 = scmp.ne.s32.totalorder %s132, %s134
      %p141 = scmp.eq.s32.totalorder %s19, 1
      %p142 = por %p140, %p141
      %p143 = scmp.ne.s32.totalorder %s134, %s135
      %p144 = scmp.eq.s32.totalorder %s19, 0
      %p145 = por %p143, %p144
      %p146 = scmp.ne.s32.totalorder %s134, %s135
      %p147 = scmp.eq.s32.totalorder %s20, 1
      %p148 = por %p146, %p147
      %p150 = scmp.ne.s32.totalorder %s135, %s149
      %p151 = scmp.eq.s32.totalorder %s20, 0
      %p152 = por %p150, %p151
      %s153 = ssub.s32 %s14, %s21
      %p154 = scmp.eq.s32.totalorder %s153, 0
      %s156 = sadd.s32 %s155, 1
      %s157 = scalar_select %p154, %s155, %s156
      %p160 = pneg %p154
      %p161 = scmp.eq.s32.totalorder %s14, 1
      %p162 = por %p160, %p161
      %p163 = scmp.ne.s32.totalorder %s155, %s158
      %p164 = scmp.eq.s32.totalorder %s14, 0
      %p165 = por %p163, %p164
      %p166 = scmp.ne.s32.totalorder %s155, %s158
      %p167 = scmp.eq.s32.totalorder %s19, 1
      %p168 = por %p166, %p167
      %p169 = scmp.ne.s32.totalorder %s158, %s159
      %p170 = scmp.eq.s32.totalorder %s19, 0
      %p171 = por %p169, %p170
      %p172 = scmp.ne.s32.totalorder %s158, %s159
      %p173 = scmp.eq.s32.totalorder %s20, 1
      %p174 = por %p172, %p173
      %p176 = scmp.ne.s32.totalorder %s159, %s175
      %p177 = scmp.eq.s32.totalorder %s20, 0
      %p178 = por %p176, %p177
      %p179 = scmp.le.s32.totalorder 1, %s14
      %p180 = scmp.lt.s32.totalorder %s14, 3
      %p181 = pnand %p179, %p180
      %p182 = pneg %p181
      // Predicated region
      $region9: #{tpu_custom_call.1} parent=5 // pred_check
        _
      $region10: #{tpu_custom_call.1} parent=5 // pred_check_branch
        %184 = sbr.rel (%p181) target = $region12
      $region11: #{tpu_custom_call.1} parent=5 // pred_region
        %s185 = ssub.s32 %s14, 1
        // Predicated region
        $region13: #{tpu_custom_call.1} parent=11 // pred_check
          %p186 = pneg %p61
        $region14: #{tpu_custom_call.1} parent=11 // pred_check_branch
          %188 = sbr.rel (%p186) target = $region16
        $region15: #{tpu_custom_call.1} parent=11 // pred_region
          _
        $region16: #{tpu_custom_call.1} parent=11 // pred_fallthru
          _
        // Predicated region
        $region17: #{tpu_custom_call.1} parent=11 // pred_check
          %p189 = pneg %p82
        $region18: #{tpu_custom_call.1} parent=11 // pred_check_branch
          %191 = sbr.rel (%p189) target = $region20
        $region19: #{tpu_custom_call.1} parent=11 // pred_region
          %s193 = ssub.s32 64, 64
          %194 = vsyncadd [#allocation3], %s193
          %s195 = sshll.u32 [#allocation2], 4
          %s196 = int_to_ptr.vmem [resolvable:$true] %s195
          %201 = dma.hbm_to_vmem [thread:$0]  %s2, 64, %s196, [#allocation3], 32, 32, 2
        $region20: #{tpu_custom_call.1} parent=11 // pred_fallthru
          _
        // Predicated region
        $region21: #{tpu_custom_call.1} parent=11 // pred_check
          %p202 = pneg %p103
        $region22: #{tpu_custom_call.1} parent=11 // pred_check_branch
          %204 = sbr.rel (%p202) target = $region24
        $region23: #{tpu_custom_call.1} parent=11 // pred_region
          _
        $region24: #{tpu_custom_call.1} parent=11 // pred_fallthru
          _
        // Predicated region
        $region25: #{tpu_custom_call.1} parent=11 // pred_check
          %p205 = pneg %p124
        $region26: #{tpu_custom_call.1} parent=11 // pred_check_branch
          %207 = sbr.rel (%p205) target = $region28
        $region27: #{tpu_custom_call.1} parent=11 // pred_region
          %s209 = ssub.s32 1024, 1024
          %210 = vsyncadd [#allocation5], %s209
          %s211 = sshll.u32 [#allocation4], 4
          %s212 = int_to_ptr.vmem [resolvable:$true] %s211
          %217 = dma.hbm_to_vmem [thread:$0]  %s4, 1024, %s212, [#allocation5], 64, 64, 4
        $region28: #{tpu_custom_call.1} parent=11 // pred_fallthru
          _
        // Predicated region
        $region29: #{tpu_custom_call.1} parent=11 // pred_check
          %p218 = pneg %p145
        $region30: #{tpu_custom_call.1} parent=11 // pred_check_branch
          %220 = sbr.rel (%p218) target = $region32
        $region31: #{tpu_custom_call.1} parent=11 // pred_region
          %s222 = ssub.s32 256, 256
          %223 = vsyncadd [#allocation5], %s222
          %s224 = sshll.u32 [#allocation6], 4
          %s225 = int_to_ptr.vmem [resolvable:$true] %s224
          %230 = dma.hbm_to_vmem [thread:$0]  %s5, 256, %s225, [#allocation5], 128, 128, 8
        $region32: #{tpu_custom_call.1} parent=11 // pred_fallthru
          _
      $region12: #{tpu_custom_call.1} parent=5 // pred_fallthru
        _
      %p231 = scmp.lt.s32.totalorder %s14, 2
      // Predicated region
      $region33: #{tpu_custom_call.1} parent=5 // pred_check
        %p232 = pneg %p231
      $region34: #{tpu_custom_call.1} parent=5 // pred_check_branch
        %234 = sbr.rel (%p232) target = $region36
      $region35: #{tpu_custom_call.1} parent=5 // pred_region
        // Predicated region
        $region37: #{tpu_custom_call.1} parent=35 // pred_check
          %p235 = pneg %p34
        $region38: #{tpu_custom_call.1} parent=35 // pred_check_branch
          %237 = sbr.rel (%p235) target = $region40
        $region39: #{tpu_custom_call.1} parent=35 // pred_region
          %s238 = smul.u32 8, %s14
          %p239 = scmp.lt.s32.totalorder %s238, 15
          %s240 = scalar_select %p239, %s238, 15
          %s241 = smul.addr %s240, 8
          %s242 = scalar_lea.vmem %s0, %s241
          %s243 = smul.u32 8, %s14
        $region40: #{tpu_custom_call.1} parent=35 // pred_fallthru
          _
      $region36: #{tpu_custom_call.1} parent=5 // pred_fallthru
        _
      %p244 = scmp.le.s32.totalorder 1, %s14
      %p245 = scmp.lt.s32.totalorder %s14, 3
      %p246 = pnand %p244, %p245
      %p247 = pneg %p246
      // Predicated region
      $region41: #{tpu_custom_call.1} parent=5 // pred_check
        _
      $region42: #{tpu_custom_call.1} parent=5 // pred_check_branch
        %249 = sbr.rel (%p246) target = $region44
      $region43: #{tpu_custom_call.1} parent=5 // pred_region
        %s250 = ssub.s32 %s14, 1
        // Predicated region
        $region45: #{tpu_custom_call.1} parent=43 // pred_check
          %p251 = pneg %p82
        $region46: #{tpu_custom_call.1} parent=43 // pred_check_branch
          %253 = sbr.rel (%p251) target = $region48
        $region47: #{tpu_custom_call.1} parent=43 // pred_region
          %254 = dma.done [#allocation3], 64
        $region48: #{tpu_custom_call.1} parent=43 // pred_fallthru
          _
        // Predicated region
        $region49: #{tpu_custom_call.1} parent=43 // pred_check
          %p255 = pneg %p124
        $region50: #{tpu_custom_call.1} parent=43 // pred_check_branch
          %257 = sbr.rel (%p255) target = $region52
        $region51: #{tpu_custom_call.1} parent=43 // pred_region
          %258 = dma.done [#allocation5], 1024
        $region52: #{tpu_custom_call.1} parent=43 // pred_fallthru
          _
        // Predicated region
        $region53: #{tpu_custom_call.1} parent=43 // pred_check
          %p259 = pneg %p145
        $region54: #{tpu_custom_call.1} parent=43 // pred_check_branch
          %261 = sbr.rel (%p259) target = $region56
        $region55: #{tpu_custom_call.1} parent=43 // pred_region
          %262 = dma.done [#allocation5], 256
        $region56: #{tpu_custom_call.1} parent=43 // pred_fallthru
          _
        %s263 = smul.u32 8, %s19
        %p264 = scmp.lt.s32.totalorder %s263, 15
        %s265 = scalar_select %p264, %s263, 15
        %s266 = smul.addr %s265, 8
        %s267 = scalar_lea.vmem %s0, %s266
        %p268 = pneg %p40
        %p269 = pneg %p37
        %p270 = pneg %p61
        %p271 = pneg %p58
        %p272 = pneg %p82
        %p273 = pneg %p79
        %p274 = pneg %p103
        %p275 = pneg %p100
        %p276 = pneg %p124
        %p277 = pneg %p121
        %p278 = pneg %p145
        %p279 = pneg %p142
        %p280 = pneg %p171
        %p281 = pneg %p168
        %s282 = smul.u32 8, %s19
        %p283 = scmp.lt.s32.totalorder %s282, 15
        %s284 = scalar_select %p283, %s282, 15
        %s285 = smul.addr %s284, 8
        %s286 = scalar_lea.vmem %s6, %s285
        %s287 = smul.u32 8, %s19
        %p288 = scmp.lt.s32.totalorder %s287, 15
        %s289 = scalar_select %p288, %s287, 15
        %s290 = smul.addr %s289, 8
        %s291 = scalar_lea.vmem %s0, %s290
        %s292 = smul.u32 8, %s19
        %s293 = smul.u32 8, %s19
        %p294 = scmp.lt.s32.totalorder %s293, 15
        %s295 = scalar_select %p294, %s293, 15
        %s296 = smul.addr %s295, 8
        %s297 = scalar_lea.vmem %s6, %s296
        %s298 = smul.u32 8, %s19
        %v300 = vld [vmem:[%s291] sm:$0xff]
        %v301 = vld [vmem:[%s291 + $0x8] sm:$0xff]
        %v302 = vld [vmem:[%s291 + $0x10] sm:$0xff]
        %v303 = vld [vmem:[%s291 + $0x18] sm:$0xff]
        %v304 = vld [vmem:[%s291 + $0x20] sm:$0xff]
        %v305 = vld [vmem:[%s291 + $0x28] sm:$0xff]
        %v306 = vld [vmem:[%s291 + $0x30] sm:$0xff]
        %v307 = vld [vmem:[%s291 + $0x38] sm:$0xff]
        %v308 = vpack.c.bf16 %v301, %v300
        %v309 = vpack.c.bf16 %v303, %v302
        %v310 = vpack.c.bf16 %v305, %v304
        %v311 = vpack.c.bf16 %v307, %v306
        %v312 = vld [vmem:[%s1] sm:$0xff]
        %v313 = vld [vmem:[%s1 + $0x8] sm:$0xff]
        %v314 = vld [vmem:[%s1 + $0x10] sm:$0xff]
        %v315 = vld [vmem:[%s1 + $0x18] sm:$0xff]
        %v316 = vld [vmem:[%s1 + $0x20] sm:$0xff]
        %v317 = vld [vmem:[%s1 + $0x28] sm:$0xff]
        %v318 = vld [vmem:[%s1 + $0x30] sm:$0xff]
        %v319 = vld [vmem:[%s1 + $0x38] sm:$0xff]
        %v320 = vld [vmem:[#allocation2] sm:$0x3]
        %v322 = vlaneseq
        %v323 = vshrl.u32 %v322, 7
        %v324 = vsub.s32 0, %v323
        %v325 = vrot.slane %v320, %v324
        %v326 = vlaneseq
        %v327 = vshrl.u32 %v326, 7
        %v328 = vsub.s32 1, %v327
        %v329 = vrot.slane %v320, %v328
        %v340 = vunpack.c.l.b16 %v312
        %v341 = vunpack.c.h.b16 %v312
        %v342 = vunpack.c.l.b16 %v313
        %v343 = vunpack.c.h.b16 %v313
        %v344 = vunpack.c.l.b16 %v314
        %v345 = vunpack.c.h.b16 %v314
        %v346 = vunpack.c.l.b16 %v315
        %v347 = vunpack.c.h.b16 %v315
        %v348 = vunpack.c.l.b16 %v316
        %v349 = vunpack.c.h.b16 %v316
        %v350 = vunpack.c.l.b16 %v317
        %v351 = vunpack.c.h.b16 %v317
        %v352 = vunpack.c.l.b16 %v318
        %v353 = vunpack.c.h.b16 %v318
        %v354 = vunpack.c.l.b16 %v319
        %v355 = vunpack.c.h.b16 %v319
        %v356 = vpack.c.b16 %v342, %v340
        %v357 = vpack.c.b16 %v343, %v341
        %v358 = vpack.c.b16 %v346, %v344
        %v359 = vpack.c.b16 %v347, %v345
        %v360 = vpack.c.b16 %v350, %v348
        %v361 = vpack.c.b16 %v351, %v349
        %v362 = vpack.c.b16 %v354, %v352
        %v363 = vpack.c.b16 %v355, %v353
        %vm372 = vcmask 523264
        %v374 = vsel %vm372, %v308, 0
        %v377 = vsel %vm372, %v309, 0
        %v380 = vsel %vm372, %v310, 0
        %v383 = vsel %vm372, %v311, 0
        %385 = vmatprep.subr.bf16.mxu0 0
        %386 = vmatpush1.bf16.msra.mxu0 0
        %387 = vmatprep.subr.bf16.mxu0 0
        %388 = vmatpush1.bf16.msra.mxu0 0
        %389 = vmatprep.subr.bf16.mxu0 0
        %390 = vmatpush1.bf16.msra.mxu0 0
        %391 = vmatprep.subr.bf16.mxu0 0
        %392 = vmatpush1.bf16.msra.mxu0 0
        %393 = vmatprep.subr.bf16.mxu0 %v363
        %394 = vmatpush1.bf16.msra.mxu0 %v362
        %395 = vmatprep.subr.bf16.mxu0 %v361
        %396 = vmatpush1.bf16.msra.mxu0 %v360
        %397 = vmatprep.subr.bf16.mxu0 %v359
        %398 = vmatpush1.bf16.msra.mxu0 %v358
        %399 = vmatprep.subr.bf16.mxu0 %v357
        %400 = vmatpush1.bf16.msra.mxu0 %v356
        %401 = vmatprep.subr.bf16.mxu0 0
        %402 = vmatpush2.bf16.msra.mxu0 0
        %403 = vmatprep.subr.bf16.mxu0 0
        %404 = vmatpush2.bf16.msra.mxu0 0
        %405 = vmatprep.subr.bf16.mxu0 0
        %406 = vmatpush2.bf16.msra.mxu0 0
        %407 = vmatprep.subr.bf16.mxu0 0
        %408 = vmatpush2.bf16.msra.mxu0 0
        %409 = vmatprep.subr.bf16.mxu0 0
        %410 = vmatpush2.bf16.msra.mxu0 0
        %411 = vmatprep.subr.bf16.mxu0 0
        %412 = vmatpush2.bf16.msra.mxu0 0
        %413 = vmatprep.subr.bf16.mxu0 0
        %414 = vmatpush2.bf16.msra.mxu0 0
        %415 = vmatprep.subr.bf16.mxu0 0
        %416 = vmatpush2.bf16.msra.mxu0 0
        %417 = vmatprep.mubr.bf16.mxu0 0
        %418 = vmatmul.mubr.bf16.gmra.mxu0 %v374
        %v419 = vpop.f32.mrf.mxu0
        %v420 = vadd.f32 %v325, %v419
        %v421 = vpop.f32.mrf.mxu0
        %v422 = vadd.f32 %v329, %v421
        %v423 = vpop.f32.mrf.mxu0
        %v424 = vadd.f32 %v325, %v423
        %v425 = vpop.f32.mrf.mxu0
        %v426 = vadd.f32 %v329, %v425
        %427 = vmatprep.mubr.bf16.mxu0 0
        %428 = vmatmul.mubr.bf16.gmra.mxu0 %v377
        %v429 = vpop.f32.mrf.mxu0
        %v430 = vadd.f32 %v325, %v429
        %v431 = vpop.f32.mrf.mxu0
        %v432 = vadd.f32 %v329, %v431
        %v433 = vpop.f32.mrf.mxu0
        %v434 = vadd.f32 %v325, %v433
        %v435 = vpop.f32.mrf.mxu0
        %v436 = vadd.f32 %v329, %v435
        %437 = vmatprep.mubr.bf16.mxu0 0
        %438 = vmatmul.mubr.bf16.gmra.mxu0 %v380
        %v439 = vpop.f32.mrf.mxu0
        %v440 = vadd.f32 %v325, %v439
        %v441 = vpop.f32.mrf.mxu0
        %v442 = vadd.f32 %v329, %v441
        %v443 = vpop.f32.mrf.mxu0
        %v444 = vadd.f32 %v325, %v443
        %v445 = vpop.f32.mrf.mxu0
        %v446 = vadd.f32 %v329, %v445
        %447 = vmatprep.mubr.bf16.mxu0 0
        %448 = vmatmul.mubr.bf16.gmra.mxu0 %v383
        %v449 = vpop.f32.mrf.mxu0
        %v450 = vadd.f32 %v325, %v449
        %v451 = vpop.f32.mrf.mxu0
        %v452 = vadd.f32 %v329, %v451
        %v453 = vpop.f32.mrf.mxu0
        %v454 = vadd.f32 %v325, %v453
        %v455 = vpop.f32.mrf.mxu0
        %v456 = vadd.f32 %v329, %v455
        %457 = vdwg.mxu0
        %466 = vrot.lane.b32.xlu0 %v420, 112
        %v467 = vpop.permute.xlu0 %466
        %468 = vrot.lane.b32.xlu0 %v424, 112
        %v469 = vpop.permute.xlu0 %468
        %470 = vrot.lane.b32.xlu0 %v430, 112
        %v471 = vpop.permute.xlu0 %470
        %472 = vrot.lane.b32.xlu0 %v434, 112
        %v473 = vpop.permute.xlu0 %472
        %474 = vrot.lane.b32.xlu0 %v440, 112
        %v475 = vpop.permute.xlu0 %474
        %476 = vrot.lane.b32.xlu0 %v444, 112
        %v477 = vpop.permute.xlu0 %476
        %478 = vrot.lane.b32.xlu0 %v450, 112
        %v479 = vpop.permute.xlu0 %478
        %480 = vrot.lane.b32.xlu0 %v454, 112
        %v481 = vpop.permute.xlu0 %480
        %490 = vrot.lane.b32.xlu0 %v420, 96
        %v491 = vpop.permute.xlu0 %490
        %492 = vrot.lane.b32.xlu0 %v424, 96
        %v493 = vpop.permute.xlu0 %492
        %494 = vrot.lane.b32.xlu0 %v430, 96
        %v495 = vpop.permute.xlu0 %494
        %496 = vrot.lane.b32.xlu0 %v434, 96
        %v497 = vpop.permute.xlu0 %496
        %498 = vrot.lane.b32.xlu0 %v440, 96
        %v499 = vpop.permute.xlu0 %498
        %500 = vrot.lane.b32.xlu0 %v444, 96
        %v501 = vpop.permute.xlu0 %500
        %502 = vrot.lane.b32.xlu0 %v450, 96
        %v503 = vpop.permute.xlu0 %502
        %504 = vrot.lane.b32.xlu0 %v454, 96
        %v505 = vpop.permute.xlu0 %504
        %514 = vrot.lane.b32.xlu0 %v420, 80
        %v515 = vpop.permute.xlu0 %514
        %516 = vrot.lane.b32.xlu0 %v424, 80
        %v517 = vpop.permute.xlu0 %516
        %518 = vrot.lane.b32.xlu0 %v430, 80
        %v519 = vpop.permute.xlu0 %518
        %520 = vrot.lane.b32.xlu0 %v434, 80
        %v521 = vpop.permute.xlu0 %520
        %522 = vrot.lane.b32.xlu0 %v440, 80
        %v523 = vpop.permute.xlu0 %522
        %524 = vrot.lane.b32.xlu0 %v444, 80
        %v525 = vpop.permute.xlu0 %524
        %526 = vrot.lane.b32.xlu0 %v450, 80
        %v527 = vpop.permute.xlu0 %526
        %528 = vrot.lane.b32.xlu0 %v454, 80
        %v529 = vpop.permute.xlu0 %528
        %538 = vrot.lane.b32.xlu0 %v420, 64
        %v539 = vpop.permute.xlu0 %538
        %540 = vrot.lane.b32.xlu0 %v424, 64
        %v541 = vpop.permute.xlu0 %540
        %542 = vrot.lane.b32.xlu0 %v430, 64
        %v543 = vpop.permute.xlu0 %542
        %544 = vrot.lane.b32.xlu0 %v434, 64
        %v545 = vpop.permute.xlu0 %544
        %546 = vrot.lane.b32.xlu0 %v440, 64
        %v547 = vpop.permute.xlu0 %546
        %548 = vrot.lane.b32.xlu0 %v444, 64
        %v549 = vpop.permute.xlu0 %548
        %550 = vrot.lane.b32.xlu0 %v450, 64
        %v551 = vpop.permute.xlu0 %550
        %552 = vrot.lane.b32.xlu0 %v454, 64
        %v553 = vpop.permute.xlu0 %552
        %562 = vrot.lane.b32.xlu0 %v420, 48
        %v563 = vpop.permute.xlu0 %562
        %564 = vrot.lane.b32.xlu0 %v424, 48
        %v565 = vpop.permute.xlu0 %564
        %566 = vrot.lane.b32.xlu0 %v430, 48
        %v567 = vpop.permute.xlu0 %566
        %568 = vrot.lane.b32.xlu0 %v434, 48
        %v569 = vpop.permute.xlu0 %568
        %570 = vrot.lane.b32.xlu0 %v440, 48
        %v571 = vpop.permute.xlu0 %570
        %572 = vrot.lane.b32.xlu0 %v444, 48
        %v573 = vpop.permute.xlu0 %572
        %574 = vrot.lane.b32.xlu0 %v450, 48
        %v575 = vpop.permute.xlu0 %574
        %576 = vrot.lane.b32.xlu0 %v454, 48
        %v577 = vpop.permute.xlu0 %576
        %586 = vrot.lane.b32.xlu0 %v420, 32
        %v587 = vpop.permute.xlu0 %586
        %588 = vrot.lane.b32.xlu0 %v424, 32
        %v589 = vpop.permute.xlu0 %588
        %590 = vrot.lane.b32.xlu0 %v430, 32
        %v591 = vpop.permute.xlu0 %590
        %592 = vrot.lane.b32.xlu0 %v434, 32
        %v593 = vpop.permute.xlu0 %592
        %594 = vrot.lane.b32.xlu0 %v440, 32
        %v595 = vpop.permute.xlu0 %594
        %596 = vrot.lane.b32.xlu0 %v444, 32
        %v597 = vpop.permute.xlu0 %596
        %598 = vrot.lane.b32.xlu0 %v450, 32
        %v599 = vpop.permute.xlu0 %598
        %600 = vrot.lane.b32.xlu0 %v454, 32
        %v601 = vpop.permute.xlu0 %600
        %610 = vrot.lane.b32.xlu0 %v420, 16
        %v611 = vpop.permute.xlu0 %610
        %612 = vrot.lane.b32.xlu0 %v424, 16
        %v613 = vpop.permute.xlu0 %612
        %614 = vrot.lane.b32.xlu0 %v430, 16
        %v615 = vpop.permute.xlu0 %614
        %616 = vrot.lane.b32.xlu0 %v434, 16
        %v617 = vpop.permute.xlu0 %616
        %618 = vrot.lane.b32.xlu0 %v440, 16
        %v619 = vpop.permute.xlu0 %618
        %620 = vrot.lane.b32.xlu0 %v444, 16
        %v621 = vpop.permute.xlu0 %620
        %622 = vrot.lane.b32.xlu0 %v450, 16
        %v623 = vpop.permute.xlu0 %622
        %624 = vrot.lane.b32.xlu0 %v454, 16
        %v625 = vpop.permute.xlu0 %624
        %642 = vrot.lane.b32.xlu0 %v422, 112
        %v643 = vpop.permute.xlu0 %642
        %644 = vrot.lane.b32.xlu0 %v426, 112
        %v645 = vpop.permute.xlu0 %644
        %646 = vrot.lane.b32.xlu0 %v432, 112
        %v647 = vpop.permute.xlu0 %646
        %648 = vrot.lane.b32.xlu0 %v436, 112
        %v649 = vpop.permute.xlu0 %648
        %650 = vrot.lane.b32.xlu0 %v442, 112
        %v651 = vpop.permute.xlu0 %650
        %652 = vrot.lane.b32.xlu0 %v446, 112
        %v653 = vpop.permute.xlu0 %652
        %654 = vrot.lane.b32.xlu0 %v452, 112
        %v655 = vpop.permute.xlu0 %654
        %656 = vrot.lane.b32.xlu0 %v456, 112
        %v657 = vpop.permute.xlu0 %656
        %666 = vrot.lane.b32.xlu0 %v422, 96
        %v667 = vpop.permute.xlu0 %666
        %668 = vrot.lane.b32.xlu0 %v426, 96
        %v669 = vpop.permute.xlu0 %668
        %670 = vrot.lane.b32.xlu0 %v432, 96
        %v671 = vpop.permute.xlu0 %670
        %672 = vrot.lane.b32.xlu0 %v436, 96
        %v673 = vpop.permute.xlu0 %672
        %674 = vrot.lane.b32.xlu0 %v442, 96
        %v675 = vpop.permute.xlu0 %674
        %676 = vrot.lane.b32.xlu0 %v446, 96
        %v677 = vpop.permute.xlu0 %676
        %678 = vrot.lane.b32.xlu0 %v452, 96
        %v679 = vpop.permute.xlu0 %678
        %680 = vrot.lane.b32.xlu0 %v456, 96
        %v681 = vpop.permute.xlu0 %680
        %690 = vrot.lane.b32.xlu0 %v422, 80
        %v691 = vpop.permute.xlu0 %690
        %692 = vrot.lane.b32.xlu0 %v426, 80
        %v693 = vpop.permute.xlu0 %692
        %694 = vrot.lane.b32.xlu0 %v432, 80
        %v695 = vpop.permute.xlu0 %694
        %696 = vrot.lane.b32.xlu0 %v436, 80
        %v697 = vpop.permute.xlu0 %696
        %698 = vrot.lane.b32.xlu0 %v442, 80
        %v699 = vpop.permute.xlu0 %698
        %700 = vrot.lane.b32.xlu0 %v446, 80
        %v701 = vpop.permute.xlu0 %700
        %702 = vrot.lane.b32.xlu0 %v452, 80
        %v703 = vpop.permute.xlu0 %702
        %704 = vrot.lane.b32.xlu0 %v456, 80
        %v705 = vpop.permute.xlu0 %704
        %v714 = vpack.c.bf16 %v424, %v420
        %v715 = vpack.c.bf16 %v434, %v430
        %v716 = vpack.c.bf16 %v444, %v440
        %v717 = vpack.c.bf16 %v454, %v450
        %v718 = vpack.c.bf16 %v469, %v467
        %v719 = vpack.c.bf16 %v473, %v471
        %v720 = vpack.c.bf16 %v477, %v475
        %v721 = vpack.c.bf16 %v481, %v479
        %v722 = vpack.c.bf16 %v493, %v491
        %v723 = vpack.c.bf16 %v497, %v495
        %v724 = vpack.c.bf16 %v501, %v499
        %v725 = vpack.c.bf16 %v505, %v503
        %v726 = vpack.c.bf16 %v517, %v515
        %v727 = vpack.c.bf16 %v521, %v519
        %v728 = vpack.c.bf16 %v525, %v523
        %v729 = vpack.c.bf16 %v529, %v527
        %v730 = vpack.c.bf16 %v541, %v539
        %v731 = vpack.c.bf16 %v545, %v543
        %v732 = vpack.c.bf16 %v549, %v547
        %v733 = vpack.c.bf16 %v553, %v551
        %v734 = vpack.c.bf16 %v565, %v563
        %v735 = vpack.c.bf16 %v569, %v567
        %v736 = vpack.c.bf16 %v573, %v571
        %v737 = vpack.c.bf16 %v577, %v575
        %v738 = vpack.c.bf16 %v589, %v587
        %v739 = vpack.c.bf16 %v593, %v591
        %v740 = vpack.c.bf16 %v597, %v595
        %v741 = vpack.c.bf16 %v601, %v599
        %v742 = vpack.c.bf16 %v613, %v611
        %v743 = vpack.c.bf16 %v617, %v615
        %v744 = vpack.c.bf16 %v621, %v619
        %v745 = vpack.c.bf16 %v625, %v623
        %vm746 = vcmask 130048
        %v748 = vsel %vm746, %v714, 0
        %v751 = vsel %vm746, %v715, 0
        %v754 = vsel %vm746, %v730, 0
        %v757 = vsel %vm746, %v731, 0
        %759 = vmatprep.subr.bf16.mxu0 0
        %760 = vmatpush1.bf16.xpose.msra.mxu0 0
        %761 = vmatprep.subr.bf16.mxu0 0
        %762 = vmatpush1.bf16.xpose.msra.mxu0 0
        %763 = vmatprep.subr.bf16.mxu0 0
        %764 = vmatpush1.bf16.xpose.msra.mxu0 0
        %765 = vmatprep.subr.bf16.mxu0 0
        %766 = vmatpush1.bf16.xpose.msra.mxu0 0
        %767 = vmatprep.subr.bf16.mxu0 0
        %768 = vmatpush1.bf16.xpose.msra.mxu0 0
        %769 = vmatprep.subr.bf16.mxu0 0
        %770 = vmatpush1.bf16.xpose.msra.mxu0 0
        %771 = vmatprep.subr.bf16.mxu0 0
        %772 = vmatpush1.bf16.xpose.msra.mxu0 %v757
        %773 = vmatprep.subr.bf16.mxu0 0
        %774 = vmatpush1.bf16.xpose.msra.mxu0 %v754
        %775 = vmatprep.subr.bf16.mxu0 0
        %776 = vmatpush2.bf16.xpose.msra.mxu0 0
        %777 = vmatprep.subr.bf16.mxu0 0
        %778 = vmatpush2.bf16.xpose.msra.mxu0 0
        %779 = vmatprep.subr.bf16.mxu0 0
        %780 = vmatpush2.bf16.xpose.msra.mxu0 0
        %781 = vmatprep.subr.bf16.mxu0 0
        %782 = vmatpush2.bf16.xpose.msra.mxu0 0
        %783 = vmatprep.subr.bf16.mxu0 0
        %784 = vmatpush2.bf16.xpose.msra.mxu0 0
        %785 = vmatprep.subr.bf16.mxu0 0
        %786 = vmatpush2.bf16.xpose.msra.mxu0 0
        %787 = vmatprep.subr.bf16.mxu0 0
        %788 = vmatpush2.bf16.xpose.msra.mxu0 0
        %789 = vmatprep.subr.bf16.mxu0 0
        %790 = vmatpush2.bf16.xpose.msra.mxu0 0
        %791 = vmatprep.mubr.bf16.mxu0 0
        %792 = vmatmul.mubr.bf16.gmra.mxu0 %v748
        %v793 = vpop.f32.mrf.mxu0
        %v794 = vadd.f32 0.0, %v793
        %v795 = vpop.f32.mrf.mxu0
        %v796 = vpop.f32.mrf.mxu0
        %v797 = vadd.f32 0.0, %v796
        %v798 = vpop.f32.mrf.mxu0
        %799 = vmatprep.mubr.bf16.mxu0 0
        %800 = vmatmul.mubr.bf16.gmra.mxu0 %v751
        %v801 = vpop.f32.mrf.mxu0
        %v802 = vadd.f32 0.0, %v801
        %v803 = vpop.f32.mrf.mxu0
        %v804 = vpop.f32.mrf.mxu0
        %v805 = vadd.f32 0.0, %v804
        %v806 = vpop.f32.mrf.mxu0
        %807 = vdwg.mxu0
        %v809 = vsel %vm746, %v716, 0
        %v812 = vsel %vm746, %v717, 0
        %v815 = vsel %vm746, %v732, 0
        %v818 = vsel %vm746, %v733, 0
        %820 = vmatprep.subr.bf16.mxu0 0
        %821 = vmatpush1.bf16.xpose.msra.mxu0 0
        %822 = vmatprep.subr.bf16.mxu0 0
        %823 = vmatpush1.bf16.xpose.msra.mxu0 0
        %824 = vmatprep.subr.bf16.mxu0 0
        %825 = vmatpush1.bf16.xpose.msra.mxu0 0
        %826 = vmatprep.subr.bf16.mxu0 0
        %827 = vmatpush1.bf16.xpose.msra.mxu0 0
        %828 = vmatprep.subr.bf16.mxu0 0
        %829 = vmatpush1.bf16.xpose.msra.mxu0 0
        %830 = vmatprep.subr.bf16.mxu0 0
        %831 = vmatpush1.bf16.xpose.msra.mxu0 0
        %832 = vmatprep.subr.bf16.mxu0 0
        %833 = vmatpush1.bf16.xpose.msra.mxu0 %v818
        %834 = vmatprep.subr.bf16.mxu0 0
        %835 = vmatpush1.bf16.xpose.msra.mxu0 %v815
        %836 = vmatprep.subr.bf16.mxu0 0
        %837 = vmatpush2.bf16.xpose.msra.mxu0 0
        %838 = vmatprep.subr.bf16.mxu0 0
        %839 = vmatpush2.bf16.xpose.msra.mxu0 0
        %840 = vmatprep.subr.bf16.mxu0 0
        %841 = vmatpush2.bf16.xpose.msra.mxu0 0
        %842 = vmatprep.subr.bf16.mxu0 0
        %843 = vmatpush2.bf16.xpose.msra.mxu0 0
        %844 = vmatprep.subr.bf16.mxu0 0
        %845 = vmatpush2.bf16.xpose.msra.mxu0 0
        %846 = vmatprep.subr.bf16.mxu0 0
        %847 = vmatpush2.bf16.xpose.msra.mxu0 0
        %848 = vmatprep.subr.bf16.mxu0 0
        %849 = vmatpush2.bf16.xpose.msra.mxu0 0
        %850 = vmatprep.subr.bf16.mxu0 0
        %851 = vmatpush2.bf16.xpose.msra.mxu0 0
        %852 = vmatprep.mubr.bf16.mxu0 0
        %853 = vmatmul.mubr.bf16.gmra.mxu0 %v809
        %v854 = vpop.f32.mrf.mxu0
        %v855 = vadd.f32 0.0, %v854
        %v856 = vpop.f32.mrf.mxu0
        %v857 = vpop.f32.mrf.mxu0
        %v858 = vadd.f32 0.0, %v857
        %v859 = vpop.f32.mrf.mxu0
        %860 = vmatprep.mubr.bf16.mxu0 0
        %861 = vmatmul.mubr.bf16.gmra.mxu0 %v812
        %v862 = vpop.f32.mrf.mxu0
        %v863 = vadd.f32 0.0, %v862
        %v864 = vpop.f32.mrf.mxu0
        %v865 = vpop.f32.mrf.mxu0
        %v866 = vadd.f32 0.0, %v865
        %v867 = vpop.f32.mrf.mxu0
        %868 = vdwg.mxu0
        %v870 = vsel %vm746, %v718, 0
        %v873 = vsel %vm746, %v719, 0
        %v876 = vsel %vm746, %v734, 0
        %v879 = vsel %vm746, %v735, 0
        %881 = vmatprep.subr.bf16.mxu0 0
        %882 = vmatpush1.bf16.xpose.msra.mxu0 0
        %883 = vmatprep.subr.bf16.mxu0 0
        %884 = vmatpush1.bf16.xpose.msra.mxu0 0
        %885 = vmatprep.subr.bf16.mxu0 0
        %886 = vmatpush1.bf16.xpose.msra.mxu0 0
        %887 = vmatprep.subr.bf16.mxu0 0
        %888 = vmatpush1.bf16.xpose.msra.mxu0 0
        %889 = vmatprep.subr.bf16.mxu0 0
        %890 = vmatpush1.bf16.xpose.msra.mxu0 0
        %891 = vmatprep.subr.bf16.mxu0 0
        %892 = vmatpush1.bf16.xpose.msra.mxu0 0
        %893 = vmatprep.subr.bf16.mxu0 0
        %894 = vmatpush1.bf16.xpose.msra.mxu0 %v879
        %895 = vmatprep.subr.bf16.mxu0 0
        %896 = vmatpush1.bf16.xpose.msra.mxu0 %v876
        %897 = vmatprep.subr.bf16.mxu0 0
        %898 = vmatpush2.bf16.xpose.msra.mxu0 0
        %899 = vmatprep.subr.bf16.mxu0 0
        %900 = vmatpush2.bf16.xpose.msra.mxu0 0
        %901 = vmatprep.subr.bf16.mxu0 0
        %902 = vmatpush2.bf16.xpose.msra.mxu0 0
        %903 = vmatprep.subr.bf16.mxu0 0
        %904 = vmatpush2.bf16.xpose.msra.mxu0 0
        %905 = vmatprep.subr.bf16.mxu0 0
        %906 = vmatpush2.bf16.xpose.msra.mxu0 0
        %907 = vmatprep.subr.bf16.mxu0 0
        %908 = vmatpush2.bf16.xpose.msra.mxu0 0
        %909 = vmatprep.subr.bf16.mxu0 0
        %910 = vmatpush2.bf16.xpose.msra.mxu0 0
        %911 = vmatprep.subr.bf16.mxu0 0
        %912 = vmatpush2.bf16.xpose.msra.mxu0 0
        %913 = vmatprep.mubr.bf16.mxu0 0
        %914 = vmatmul.mubr.bf16.gmra.mxu0 %v870
        %v915 = vpop.f32.mrf.mxu0
        %v916 = vadd.f32 0.0, %v915
        %v917 = vpop.f32.mrf.mxu0
        %v918 = vpop.f32.mrf.mxu0
        %v919 = vadd.f32 0.0, %v918
        %v920 = vpop.f32.mrf.mxu0
        %921 = vmatprep.mubr.bf16.mxu0 0
        %922 = vmatmul.mubr.bf16.gmra.mxu0 %v873
        %v923 = vpop.f32.mrf.mxu0
        %v924 = vadd.f32 0.0, %v923
        %v925 = vpop.f32.mrf.mxu0
        %v926 = vpop.f32.mrf.mxu0
        %v927 = vadd.f32 0.0, %v926
        %v928 = vpop.f32.mrf.mxu0
        %929 = vdwg.mxu0
        %v931 = vsel %vm746, %v720, 0
        %v934 = vsel %vm746, %v721, 0
        %v937 = vsel %vm746, %v736, 0
        %v940 = vsel %vm746, %v737, 0
        %942 = vmatprep.subr.bf16.mxu0 0
        %943 = vmatpush1.bf16.xpose.msra.mxu0 0
        %944 = vmatprep.subr.bf16.mxu0 0
        %945 = vmatpush1.bf16.xpose.msra.mxu0 0
        %946 = vmatprep.subr.bf16.mxu0 0
        %947 = vmatpush1.bf16.xpose.msra.mxu0 0
        %948 = vmatprep.subr.bf16.mxu0 0
        %949 = vmatpush1.bf16.xpose.msra.mxu0 0
        %950 = vmatprep.subr.bf16.mxu0 0
        %951 = vmatpush1.bf16.xpose.msra.mxu0 0
        %952 = vmatprep.subr.bf16.mxu0 0
        %953 = vmatpush1.bf16.xpose.msra.mxu0 0
        %954 = vmatprep.subr.bf16.mxu0 0
        %955 = vmatpush1.bf16.xpose.msra.mxu0 %v940
        %956 = vmatprep.subr.bf16.mxu0 0
        %957 = vmatpush1.bf16.xpose.msra.mxu0 %v937
        %958 = vmatprep.subr.bf16.mxu0 0
        %959 = vmatpush2.bf16.xpose.msra.mxu0 0
        %960 = vmatprep.subr.bf16.mxu0 0
        %961 = vmatpush2.bf16.xpose.msra.mxu0 0
        %962 = vmatprep.subr.bf16.mxu0 0
        %963 = vmatpush2.bf16.xpose.msra.mxu0 0
        %964 = vmatprep.subr.bf16.mxu0 0
        %965 = vmatpush2.bf16.xpose.msra.mxu0 0
        %966 = vmatprep.subr.bf16.mxu0 0
        %967 = vmatpush2.bf16.xpose.msra.mxu0 0
        %968 = vmatprep.subr.bf16.mxu0 0
        %969 = vmatpush2.bf16.xpose.msra.mxu0 0
        %970 = vmatprep.subr.bf16.mxu0 0
        %971 = vmatpush2.bf16.xpose.msra.mxu0 0
        %972 = vmatprep.subr.bf16.mxu0 0
        %973 = vmatpush2.bf16.xpose.msra.mxu0 0
        %974 = vmatprep.mubr.bf16.mxu0 0
        %975 = vmatmul.mubr.bf16.gmra.mxu0 %v931
        %v976 = vpop.f32.mrf.mxu0
        %v977 = vadd.f32 0.0, %v976
        %v978 = vpop.f32.mrf.mxu0
        %v979 = vpop.f32.mrf.mxu0
        %v980 = vadd.f32 0.0, %v979
        %v981 = vpop.f32.mrf.mxu0
        %982 = vmatprep.mubr.bf16.mxu0 0
        %983 = vmatmul.mubr.bf16.gmra.mxu0 %v934
        %v984 = vpop.f32.mrf.mxu0
        %v985 = vadd.f32 0.0, %v984
        %v986 = vpop.f32.mrf.mxu0
        %v987 = vpop.f32.mrf.mxu0
        %v988 = vadd.f32 0.0, %v987
        %v989 = vpop.f32.mrf.mxu0
        %990 = vdwg.mxu0
        %v992 = vsel %vm746, %v722, 0
        %v995 = vsel %vm746, %v723, 0
        %v998 = vsel %vm746, %v738, 0
        %v1001 = vsel %vm746, %v739, 0
        %1003 = vmatprep.subr.bf16.mxu0 0
        %1004 = vmatpush1.bf16.xpose.msra.mxu0 0
        %1005 = vmatprep.subr.bf16.mxu0 0
        %1006 = vmatpush1.bf16.xpose.msra.mxu0 0
        %1007 = vmatprep.subr.bf16.mxu0 0
        %1008 = vmatpush1.bf16.xpose.msra.mxu0 0
        %1009 = vmatprep.subr.bf16.mxu0 0
        %1010 = vmatpush1.bf16.xpose.msra.mxu0 0
        %1011 = vmatprep.subr.bf16.mxu0 0
        %1012 = vmatpush1.bf16.xpose.msra.mxu0 0
        %1013 = vmatprep.subr.bf16.mxu0 0
        %1014 = vmatpush1.bf16.xpose.msra.mxu0 0
        %1015 = vmatprep.subr.bf16.mxu0 0
        %1016 = vmatpush1.bf16.xpose.msra.mxu0 %v1001
        %1017 = vmatprep.subr.bf16.mxu0 0
        %1018 = vmatpush1.bf16.xpose.msra.mxu0 %v998
        %1019 = vmatprep.subr.bf16.mxu0 0
        %1020 = vmatpush2.bf16.xpose.msra.mxu0 0
        %1021 = vmatprep.subr.bf16.mxu0 0
        %1022 = vmatpush2.bf16.xpose.msra.mxu0 0
        %1023 = vmatprep.subr.bf16.mxu0 0
        %1024 = vmatpush2.bf16.xpose.msra.mxu0 0
        %1025 = vmatprep.subr.bf16.mxu0 0
        %1026 = vmatpush2.bf16.xpose.msra.mxu0 0
        %1027 = vmatprep.subr.bf16.mxu0 0
        %1028 = vmatpush2.bf16.xpose.msra.mxu0 0
        %1029 = vmatprep.subr.bf16.mxu0 0
        %1030 = vmatpush2.bf16.xpose.msra.mxu0 0
        %1031 = vmatprep.subr.bf16.mxu0 0
        %1032 = vmatpush2.bf16.xpose.msra.mxu0 0
        %1033 = vmatprep.subr.bf16.mxu0 0
        %1034 = vmatpush2.bf16.xpose.msra.mxu0 0
        %1035 = vmatprep.mubr.bf16.mxu0 0
        %1036 = vmatmul.mubr.bf16.gmra.mxu0 %v992
        %v1037 = vpop.f32.mrf.mxu0
        %v1038 = vadd.f32 0.0, %v1037
        %v1039 = vpop.f32.mrf.mxu0
        %v1040 = vpop.f32.mrf.mxu0
        %v1041 = vadd.f32 0.0, %v1040
        %v1042 = vpop.f32.mrf.mxu0
        %1043 = vmatprep.mubr.bf16.mxu0 0
        %1044 = vmatmul.mubr.bf16.gmra.mxu0 %v995
        %v1045 = vpop.f32.mrf.mxu0
        %v1046 = vadd.f32 0.0, %v1045
        %v1047 = vpop.f32.mrf.mxu0
        %v1048 = vpop.f32.mrf.mxu0
        %v1049 = vadd.f32 0.0, %v1048
        %v1050 = vpop.f32.mrf.mxu0
        %1051 = vdwg.mxu0
        %v1053 = vsel %vm746, %v724, 0
        %v1056 = vsel %vm746, %v725, 0
        %v1059 = vsel %vm746, %v740, 0
        %v1062 = vsel %vm746, %v741, 0
        %1064 = vmatprep.subr.bf16.mxu0 0
        %1065 = vmatpush1.bf16.xpose.msra.mxu0 0
        %1066 = vmatprep.subr.bf16.mxu0 0
        %1067 = vmatpush1.bf16.xpose.msra.mxu0 0
        %1068 = vmatprep.subr.bf16.mxu0 0
        %1069 = vmatpush1.bf16.xpose.msra.mxu0 0
        %1070 = vmatprep.subr.bf16.mxu0 0
        %1071 = vmatpush1.bf16.xpose.msra.mxu0 0
        %1072 = vmatprep.subr.bf16.mxu0 0
        %1073 = vmatpush1.bf16.xpose.msra.mxu0 0
        %1074 = vmatprep.subr.bf16.mxu0 0
        %1075 = vmatpush1.bf16.xpose.msra.mxu0 0
        %1076 = vmatprep.subr.bf16.mxu0 0
        %1077 = vmatpush1.bf16.xpose.msra.mxu0 %v1062
        %1078 = vmatprep.subr.bf16.mxu0 0
        %1079 = vmatpush1.bf16.xpose.msra.mxu0 %v1059
        %1080 = vmatprep.subr.bf16.mxu0 0
        %1081 = vmatpush2.bf16.xpose.msra.mxu0 0
        %1082 = vmatprep.subr.bf16.mxu0 0
        %1083 = vmatpush2.bf16.xpose.msra.mxu0 0
        %1084 = vmatprep.subr.bf16.mxu0 0
        %1085 = vmatpush2.bf16.xpose.msra.mxu0 0
        %1086 = vmatprep.subr.bf16.mxu0 0
        %1087 = vmatpush2.bf16.xpose.msra.mxu0 0
        %1088 = vmatprep.subr.bf16.mxu0 0
        %1089 = vmatpush2.bf16.xpose.msra.mxu0 0
        %1090 = vmatprep.subr.bf16.mxu0 0
        %1091 = vmatpush2.bf16.xpose.msra.mxu0 0
        %1092 = vmatprep.subr.bf16.mxu0 0
        %1093 = vmatpush2.bf16.xpose.msra.mxu0 0
        %1094 = vmatprep.subr.bf16.mxu0 0
        %1095 = vmatpush2.bf16.xpose.msra.mxu0 0
        %1096 = vmatprep.mubr.bf16.mxu0 0
        %1097 = vmatmul.mubr.bf16.gmra.mxu0 %v1053
        %v1098 = vpop.f32.mrf.mxu0
        %v1099 = vadd.f32 0.0, %v1098
        %v1100 = vpop.f32.mrf.mxu0
        %v1101 = vpop.f32.mrf.mxu0
        %v1102 = vadd.f32 0.0, %v1101
        %v1103 = vpop.f32.mrf.mxu0
        %1104 = vmatprep.mubr.bf16.mxu0 0
        %1105 = vmatmul.mubr.bf16.gmra.mxu0 %v1056
        %v1106 = vpop.f32.mrf.mxu0
        %v1107 = vadd.f32 0.0, %v1106
        %v1108 = vpop.f32.mrf.mxu0
        %v1109 = vpop.f32.mrf.mxu0
        %v1110 = vadd.f32 0.0, %v1109
        %v1111 = vpop.f32.mrf.mxu0
        %1112 = vdwg.mxu0
        %v1114 = vsel %vm746, %v726, 0
        %v1117 = vsel %vm746, %v727, 0
        %v1120 = vsel %vm746, %v742, 0
        %v1123 = vsel %vm746, %v743, 0
        %1125 = vmatprep.subr.bf16.mxu0 0
        %1126 = vmatpush1.bf16.xpose.msra.mxu0 0
        %1127 = vmatprep.subr.bf16.mxu0 0
        %1128 = vmatpush1.bf16.xpose.msra.mxu0 0
        %1129 = vmatprep.subr.bf16.mxu0 0
        %1130 = vmatpush1.bf16.xpose.msra.mxu0 0
        %1131 = vmatprep.subr.bf16.mxu0 0
        %1132 = vmatpush1.bf16.xpose.msra.mxu0 0
        %1133 = vmatprep.subr.bf16.mxu0 0
        %1134 = vmatpush1.bf16.xpose.msra.mxu0 0
        %1135 = vmatprep.subr.bf16.mxu0 0
        %1136 = vmatpush1.bf16.xpose.msra.mxu0 0
        %1137 = vmatprep.subr.bf16.mxu0 0
        %1138 = vmatpush1.bf16.xpose.msra.mxu0 %v1123
        %1139 = vmatprep.subr.bf16.mxu0 0
        %1140 = vmatpush1.bf16.xpose.msra.mxu0 %v1120
        %1141 = vmatprep.subr.bf16.mxu0 0
        %1142 = vmatpush2.bf16.xpose.msra.mxu0 0
        %1143 = vmatprep.subr.bf16.mxu0 0
        %1144 = vmatpush2.bf16.xpose.msra.mxu0 0
        %1145 = vmatprep.subr.bf16.mxu0 0
        %1146 = vmatpush2.bf16.xpose.msra.mxu0 0
        %1147 = vmatprep.subr.bf16.mxu0 0
        %1148 = vmatpush2.bf16.xpose.msra.mxu0 0
        %1149 = vmatprep.subr.bf16.mxu0 0
        %1150 = vmatpush2.bf16.xpose.msra.mxu0 0
        %1151 = vmatprep.subr.bf16.mxu0 0
        %1152 = vmatpush2.bf16.xpose.msra.mxu0 0
        %1153 = vmatprep.subr.bf16.mxu0 0
        %1154 = vmatpush2.bf16.xpose.msra.mxu0 0
        %1155 = vmatprep.subr.bf16.mxu0 0
        %1156 = vmatpush2.bf16.xpose.msra.mxu0 0
        %1157 = vmatprep.mubr.bf16.mxu0 0
        %1158 = vmatmul.mubr.bf16.gmra.mxu0 %v1114
        %v1159 = vpop.f32.mrf.mxu0
        %v1160 = vadd.f32 0.0, %v1159
        %v1161 = vpop.f32.mrf.mxu0
        %v1162 = vpop.f32.mrf.mxu0
        %v1163 = vadd.f32 0.0, %v1162
        %v1164 = vpop.f32.mrf.mxu0
        %1165 = vmatprep.mubr.bf16.mxu0 0
        %1166 = vmatmul.mubr.bf16.gmra.mxu0 %v1117
        %v1167 = vpop.f32.mrf.mxu0
        %v1168 = vadd.f32 0.0, %v1167
        %v1169 = vpop.f32.mrf.mxu0
        %v1170 = vpop.f32.mrf.mxu0
        %v1171 = vadd.f32 0.0, %v1170
        %v1172 = vpop.f32.mrf.mxu0
        %1173 = vdwg.mxu0
        %v1175 = vsel %vm746, %v728, 0
        %v1178 = vsel %vm746, %v729, 0
        %v1181 = vsel %vm746, %v744, 0
        %v1184 = vsel %vm746, %v745, 0
        %1186 = vmatprep.subr.bf16.mxu0 0
        %1187 = vmatpush1.bf16.xpose.msra.mxu0 0
        %1188 = vmatprep.subr.bf16.mxu0 0
        %1189 = vmatpush1.bf16.xpose.msra.mxu0 0
        %1190 = vmatprep.subr.bf16.mxu0 0
        %1191 = vmatpush1.bf16.xpose.msra.mxu0 0
        %1192 = vmatprep.subr.bf16.mxu0 0
        %1193 = vmatpush1.bf16.xpose.msra.mxu0 0
        %1194 = vmatprep.subr.bf16.mxu0 0
        %1195 = vmatpush1.bf16.xpose.msra.mxu0 0
        %1196 = vmatprep.subr.bf16.mxu0 0
        %1197 = vmatpush1.bf16.xpose.msra.mxu0 0
        %1198 = vmatprep.subr.bf16.mxu0 0
        %1199 = vmatpush1.bf16.xpose.msra.mxu0 %v1184
        %1200 = vmatprep.subr.bf16.mxu0 0
        %1201 = vmatpush1.bf16.xpose.msra.mxu0 %v1181
        %1202 = vmatprep.subr.bf16.mxu0 0
        %1203 = vmatpush2.bf16.xpose.msra.mxu0 0
        %1204 = vmatprep.subr.bf16.mxu0 0
        %1205 = vmatpush2.bf16.xpose.msra.mxu0 0
        %1206 = vmatprep.subr.bf16.mxu0 0
        %1207 = vmatpush2.bf16.xpose.msra.mxu0 0
        %1208 = vmatprep.subr.bf16.mxu0 0
        %1209 = vmatpush2.bf16.xpose.msra.mxu0 0
        %1210 = vmatprep.subr.bf16.mxu0 0
        %1211 = vmatpush2.bf16.xpose.msra.mxu0 0
        %1212 = vmatprep.subr.bf16.mxu0 0
        %1213 = vmatpush2.bf16.xpose.msra.mxu0 0
        %1214 = vmatprep.subr.bf16.mxu0 0
        %1215 = vmatpush2.bf16.xpose.msra.mxu0 0
        %1216 = vmatprep.subr.bf16.mxu0 0
        %1217 = vmatpush2.bf16.xpose.msra.mxu0 0
        %1218 = vmatprep.mubr.bf16.mxu0 0
        %1219 = vmatmul.mubr.bf16.gmra.mxu0 %v1175
        %v1220 = vpop.f32.mrf.mxu0
        %v1221 = vadd.f32 0.0, %v1220
        %v1222 = vpop.f32.mrf.mxu0
        %v1223 = vpop.f32.mrf.mxu0
        %v1224 = vadd.f32 0.0, %v1223
        %v1225 = vpop.f32.mrf.mxu0
        %1226 = vmatprep.mubr.bf16.mxu0 0
        %1227 = vmatmul.mubr.bf16.gmra.mxu0 %v1178
        %v1228 = vpop.f32.mrf.mxu0
        %v1229 = vadd.f32 0.0, %v1228
        %v1230 = vpop.f32.mrf.mxu0
        %v1231 = vpop.f32.mrf.mxu0
        %v1232 = vadd.f32 0.0, %v1231
        %v1233 = vpop.f32.mrf.mxu0
        %1234 = vdwg.mxu0
        %vm1235 = vcmask 261120
        %v1236 = vsel %vm1235, %v794, -inf
        %1237 = vmax.xlane.f32.xlu0 %v1236
        %v1238 = vpop.xlane.xlu0 %1237
        %v1239 = vsel %vm1235, %v797, -inf
        %1240 = vmax.xlane.f32.xlu0 %v1239
        %v1241 = vpop.xlane.xlu0 %1240
        %v1242 = vsel %vm1235, %v802, -inf
        %1243 = vmax.xlane.f32.xlu0 %v1242
        %v1244 = vpop.xlane.xlu0 %1243
        %v1245 = vsel %vm1235, %v805, -inf
        %1246 = vmax.xlane.f32.xlu0 %v1245
        %v1247 = vpop.xlane.xlu0 %1246
        %v1248 = vsel %vm1235, %v855, -inf
        %1249 = vmax.xlane.f32.xlu0 %v1248
        %v1250 = vpop.xlane.xlu0 %1249
        %v1251 = vsel %vm1235, %v858, -inf
        %1252 = vmax.xlane.f32.xlu0 %v1251
        %v1253 = vpop.xlane.xlu0 %1252
        %v1254 = vsel %vm1235, %v863, -inf
        %1255 = vmax.xlane.f32.xlu0 %v1254
        %v1256 = vpop.xlane.xlu0 %1255
        %v1257 = vsel %vm1235, %v866, -inf
        %1258 = vmax.xlane.f32.xlu0 %v1257
        %v1259 = vpop.xlane.xlu0 %1258
        %v1260 = vsel %vm1235, %v916, -inf
        %1261 = vmax.xlane.f32.xlu0 %v1260
        %v1262 = vpop.xlane.xlu0 %1261
        %v1263 = vsel %vm1235, %v919, -inf
        %1264 = vmax.xlane.f32.xlu0 %v1263
        %v1265 = vpop.xlane.xlu0 %1264
        %v1266 = vsel %vm1235, %v924, -inf
        %1267 = vmax.xlane.f32.xlu0 %v1266
        %v1268 = vpop.xlane.xlu0 %1267
        %v1269 = vsel %vm1235, %v927, -inf
        %1270 = vmax.xlane.f32.xlu0 %v1269
        %v1271 = vpop.xlane.xlu0 %1270
        %v1272 = vsel %vm1235, %v977, -inf
        %1273 = vmax.xlane.f32.xlu0 %v1272
        %v1274 = vpop.xlane.xlu0 %1273
        %v1275 = vsel %vm1235, %v980, -inf
        %1276 = vmax.xlane.f32.xlu0 %v1275
        %v1277 = vpop.xlane.xlu0 %1276
        %v1278 = vsel %vm1235, %v985, -inf
        %1279 = vmax.xlane.f32.xlu0 %v1278
        %v1280 = vpop.xlane.xlu0 %1279
        %v1281 = vsel %vm1235, %v988, -inf
        %1282 = vmax.xlane.f32.xlu0 %v1281
        %v1283 = vpop.xlane.xlu0 %1282
        %v1284 = vsel %vm1235, %v1038, -inf
        %1285 = vmax.xlane.f32.xlu0 %v1284
        %v1286 = vpop.xlane.xlu0 %1285
        %v1287 = vsel %vm1235, %v1041, -inf
        %1288 = vmax.xlane.f32.xlu0 %v1287
        %v1289 = vpop.xlane.xlu0 %1288
        %v1290 = vsel %vm1235, %v1046, -inf
        %1291 = vmax.xlane.f32.xlu0 %v1290
        %v1292 = vpop.xlane.xlu0 %1291
        %v1293 = vsel %vm1235, %v1049, -inf
        %1294 = vmax.xlane.f32.xlu0 %v1293
        %v1295 = vpop.xlane.xlu0 %1294
        %v1296 = vsel %vm1235, %v1099, -inf
        %1297 = vmax.xlane.f32.xlu0 %v1296
        %v1298 = vpop.xlane.xlu0 %1297
        %v1299 = vsel %vm1235, %v1102, -inf
        %1300 = vmax.xlane.f32.xlu0 %v1299
        %v1301 = vpop.xlane.xlu0 %1300
        %v1302 = vsel %vm1235, %v1107, -inf
        %1303 = vmax.xlane.f32.xlu0 %v1302
        %v1304 = vpop.xlane.xlu0 %1303
        %v1305 = vsel %vm1235, %v1110, -inf
        %1306 = vmax.xlane.f32.xlu0 %v1305
        %v1307 = vpop.xlane.xlu0 %1306
        %v1308 = vsel %vm1235, %v1160, -inf
        %1309 = vmax.xlane.f32.xlu0 %v1308
        %v1310 = vpop.xlane.xlu0 %1309
        %v1311 = vsel %vm1235, %v1163, -inf
        %1312 = vmax.xlane.f32.xlu0 %v1311
        %v1313 = vpop.xlane.xlu0 %1312
        %v1314 = vsel %vm1235, %v1168, -inf
        %1315 = vmax.xlane.f32.xlu0 %v1314
        %v1316 = vpop.xlane.xlu0 %1315
        %v1317 = vsel %vm1235, %v1171, -inf
        %1318 = vmax.xlane.f32.xlu0 %v1317
        %v1319 = vpop.xlane.xlu0 %1318
        %v1320 = vsel %vm1235, %v1221, -inf
        %1321 = vmax.xlane.f32.xlu0 %v1320
        %v1322 = vpop.xlane.xlu0 %1321
        %v1323 = vsel %vm1235, %v1224, -inf
        %1324 = vmax.xlane.f32.xlu0 %v1323
        %v1325 = vpop.xlane.xlu0 %1324
        %v1326 = vsel %vm1235, %v1229, -inf
        %1327 = vmax.xlane.f32.xlu0 %v1326
        %v1328 = vpop.xlane.xlu0 %1327
        %v1329 = vsel %vm1235, %v1232, -inf
        %1330 = vmax.xlane.f32.xlu0 %v1329
        %v1331 = vpop.xlane.xlu0 %1330
        %v1332 = vsub.f32 %v794, %v1238
        %v1333 = vsub.f32 %v797, %v1241
        %v1334 = vsub.f32 %v802, %v1244
        %v1335 = vsub.f32 %v805, %v1247
        %v1336 = vsub.f32 %v855, %v1250
        %v1337 = vsub.f32 %v858, %v1253
        %v1338 = vsub.f32 %v863, %v1256
        %v1339 = vsub.f32 %v866, %v1259
        %v1340 = vsub.f32 %v916, %v1262
        %v1341 = vsub.f32 %v919, %v1265
        %v1342 = vsub.f32 %v924, %v1268
        %v1343 = vsub.f32 %v927, %v1271
        %v1344 = vsub.f32 %v977, %v1274
        %v1345 = vsub.f32 %v980, %v1277
        %v1346 = vsub.f32 %v985, %v1280
        %v1347 = vsub.f32 %v988, %v1283
        %v1348 = vsub.f32 %v1038, %v1286
        %v1349 = vsub.f32 %v1041, %v1289
        %v1350 = vsub.f32 %v1046, %v1292
        %v1351 = vsub.f32 %v1049, %v1295
        %v1352 = vsub.f32 %v1099, %v1298
        %v1353 = vsub.f32 %v1102, %v1301
        %v1354 = vsub.f32 %v1107, %v1304
        %v1355 = vsub.f32 %v1110, %v1307
        %v1356 = vsub.f32 %v1160, %v1310
        %v1357 = vsub.f32 %v1163, %v1313
        %v1358 = vsub.f32 %v1168, %v1316
        %v1359 = vsub.f32 %v1171, %v1319
        %v1360 = vsub.f32 %v1221, %v1322
        %v1361 = vsub.f32 %v1224, %v1325
        %v1362 = vsub.f32 %v1229, %v1328
        %v1363 = vsub.f32 %v1232, %v1331
        %v1364 = vmul.f32 %v1332, 1.442695
        %v1365 = vpow.pop %v1364
        %v1366 = vmul.f32 %v1333, 1.442695
        %v1367 = vpow.pop %v1366
        %v1368 = vmul.f32 %v1334, 1.442695
        %v1369 = vpow.pop %v1368
        %v1370 = vmul.f32 %v1335, 1.442695
        %v1371 = vpow.pop %v1370
        %v1372 = vmul.f32 %v1336, 1.442695
        %v1373 = vpow.pop %v1372
        %v1374 = vmul.f32 %v1337, 1.442695
        %v1375 = vpow.pop %v1374
        %v1376 = vmul.f32 %v1338, 1.442695
        %v1377 = vpow.pop %v1376
        %v1378 = vmul.f32 %v1339, 1.442695
        %v1379 = vpow.pop %v1378
        %v1380 = vmul.f32 %v1340, 1.442695
        %v1381 = vpow.pop %v1380
        %v1382 = vmul.f32 %v1341, 1.442695
        %v1383 = vpow.pop %v1382
        %v1384 = vmul.f32 %v1342, 1.442695
        %v1385 = vpow.pop %v1384
        %v1386 = vmul.f32 %v1343, 1.442695
        %v1387 = vpow.pop %v1386
        %v1388 = vmul.f32 %v1344, 1.442695
        %v1389 = vpow.pop %v1388
        %v1390 = vmul.f32 %v1345, 1.442695
        %v1391 = vpow.pop %v1390
        %v1392 = vmul.f32 %v1346, 1.442695
        %v1393 = vpow.pop %v1392
        %v1394 = vmul.f32 %v1347, 1.442695
        %v1395 = vpow.pop %v1394
        %v1396 = vmul.f32 %v1348, 1.442695
        %v1397 = vpow.pop %v1396
        %v1398 = vmul.f32 %v1349, 1.442695
        %v1399 = vpow.pop %v1398
        %v1400 = vmul.f32 %v1350, 1.442695
        %v1401 = vpow.pop %v1400
        %v1402 = vmul.f32 %v1351, 1.442695
        %v1403 = vpow.pop %v1402
        %v1404 = vmul.f32 %v1352, 1.442695
        %v1405 = vpow.pop %v1404
        %v1406 = vmul.f32 %v1353, 1.442695
        %v1407 = vpow.pop %v1406
        %v1408 = vmul.f32 %v1354, 1.442695
        %v1409 = vpow.pop %v1408
        %v1410 = vmul.f32 %v1355, 1.442695
        %v1411 = vpow.pop %v1410
        %v1412 = vmul.f32 %v1356, 1.442695
        %v1413 = vpow.pop %v1412
        %v1414 = vmul.f32 %v1357, 1.442695
        %v1415 = vpow.pop %v1414
        %v1416 = vmul.f32 %v1358, 1.442695
        %v1417 = vpow.pop %v1416
        %v1418 = vmul.f32 %v1359, 1.442695
        %v1419 = vpow.pop %v1418
        %v1420 = vmul.f32 %v1360, 1.442695
        %v1421 = vpow.pop %v1420
        %v1422 = vmul.f32 %v1361, 1.442695
        %v1423 = vpow.pop %v1422
        %v1424 = vmul.f32 %v1362, 1.442695
        %v1425 = vpow.pop %v1424
        %v1426 = vmul.f32 %v1363, 1.442695
        %v1427 = vpow.pop %v1426
        %v1428 = vsel %vm1235, %v1365, 0.0
        %1429 = vadd.xlane.f32.xlu0 %v1428
        %v1430 = vpop.xlane.xlu0 %1429
        %v1431 = vsel %vm1235, %v1367, 0.0
        %1432 = vadd.xlane.f32.xlu0 %v1431
        %v1433 = vpop.xlane.xlu0 %1432
        %v1434 = vsel %vm1235, %v1369, 0.0
        %1435 = vadd.xlane.f32.xlu0 %v1434
        %v1436 = vpop.xlane.xlu0 %1435
        %v1437 = vsel %vm1235, %v1371, 0.0
        %1438 = vadd.xlane.f32.xlu0 %v1437
        %v1439 = vpop.xlane.xlu0 %1438
        %v1440 = vsel %vm1235, %v1373, 0.0
        %1441 = vadd.xlane.f32.xlu0 %v1440
        %v1442 = vpop.xlane.xlu0 %1441
        %v1443 = vsel %vm1235, %v1375, 0.0
        %1444 = vadd.xlane.f32.xlu0 %v1443
        %v1445 = vpop.xlane.xlu0 %1444
        %v1446 = vsel %vm1235, %v1377, 0.0
        %1447 = vadd.xlane.f32.xlu0 %v1446
        %v1448 = vpop.xlane.xlu0 %1447
        %v1449 = vsel %vm1235, %v1379, 0.0
        %1450 = vadd.xlane.f32.xlu0 %v1449
        %v1451 = vpop.xlane.xlu0 %1450
        %v1452 = vsel %vm1235, %v1381, 0.0
        %1453 = vadd.xlane.f32.xlu0 %v1452
        %v1454 = vpop.xlane.xlu0 %1453
        %v1455 = vsel %vm1235, %v1383, 0.0
        %1456 = vadd.xlane.f32.xlu0 %v1455
        %v1457 = vpop.xlane.xlu0 %1456
        %v1458 = vsel %vm1235, %v1385, 0.0
        %1459 = vadd.xlane.f32.xlu0 %v1458
        %v1460 = vpop.xlane.xlu0 %1459
        %v1461 = vsel %vm1235, %v1387, 0.0
        %1462 = vadd.xlane.f32.xlu0 %v1461
        %v1463 = vpop.xlane.xlu0 %1462
        %v1464 = vsel %vm1235, %v1389, 0.0
        %1465 = vadd.xlane.f32.xlu0 %v1464
        %v1466 = vpop.xlane.xlu0 %1465
        %v1467 = vsel %vm1235, %v1391, 0.0
        %1468 = vadd.xlane.f32.xlu0 %v1467
        %v1469 = vpop.xlane.xlu0 %1468
        %v1470 = vsel %vm1235, %v1393, 0.0
        %1471 = vadd.xlane.f32.xlu0 %v1470
        %v1472 = vpop.xlane.xlu0 %1471
        %v1473 = vsel %vm1235, %v1395, 0.0
        %1474 = vadd.xlane.f32.xlu0 %v1473
        %v1475 = vpop.xlane.xlu0 %1474
        %v1476 = vsel %vm1235, %v1397, 0.0
        %1477 = vadd.xlane.f32.xlu0 %v1476
        %v1478 = vpop.xlane.xlu0 %1477
        %v1479 = vsel %vm1235, %v1399, 0.0
        %1480 = vadd.xlane.f32.xlu0 %v1479
        %v1481 = vpop.xlane.xlu0 %1480
        %v1482 = vsel %vm1235, %v1401, 0.0
        %1483 = vadd.xlane.f32.xlu0 %v1482
        %v1484 = vpop.xlane.xlu0 %1483
        %v1485 = vsel %vm1235, %v1403, 0.0
        %1486 = vadd.xlane.f32.xlu0 %v1485
        %v1487 = vpop.xlane.xlu0 %1486
        %v1488 = vsel %vm1235, %v1405, 0.0
        %1489 = vadd.xlane.f32.xlu0 %v1488
        %v1490 = vpop.xlane.xlu0 %1489
        %v1491 = vsel %vm1235, %v1407, 0.0
        %1492 = vadd.xlane.f32.xlu0 %v1491
        %v1493 = vpop.xlane.xlu0 %1492
        %v1494 = vsel %vm1235, %v1409, 0.0
        %1495 = vadd.xlane.f32.xlu0 %v1494
        %v1496 = vpop.xlane.xlu0 %1495
        %v1497 = vsel %vm1235, %v1411, 0.0
        %1498 = vadd.xlane.f32.xlu0 %v1497
        %v1499 = vpop.xlane.xlu0 %1498
        %v1500 = vsel %vm1235, %v1413, 0.0
        %1501 = vadd.xlane.f32.xlu0 %v1500
        %v1502 = vpop.xlane.xlu0 %1501
        %v1503 = vsel %vm1235, %v1415, 0.0
        %1504 = vadd.xlane.f32.xlu0 %v1503
        %v1505 = vpop.xlane.xlu0 %1504
        %v1506 = vsel %vm1235, %v1417, 0.0
        %1507 = vadd.xlane.f32.xlu0 %v1506
        %v1508 = vpop.xlane.xlu0 %1507
        %v1509 = vsel %vm1235, %v1419, 0.0
        %1510 = vadd.xlane.f32.xlu0 %v1509
        %v1511 = vpop.xlane.xlu0 %1510
        %v1512 = vsel %vm1235, %v1421, 0.0
        %1513 = vadd.xlane.f32.xlu0 %v1512
        %v1514 = vpop.xlane.xlu0 %1513
        %v1515 = vsel %vm1235, %v1423, 0.0
        %1516 = vadd.xlane.f32.xlu0 %v1515
        %v1517 = vpop.xlane.xlu0 %1516
        %v1518 = vsel %vm1235, %v1425, 0.0
        %1519 = vadd.xlane.f32.xlu0 %v1518
        %v1520 = vpop.xlane.xlu0 %1519
        %v1521 = vsel %vm1235, %v1427, 0.0
        %1522 = vadd.xlane.f32.xlu0 %v1521
        %v1523 = vpop.xlane.xlu0 %1522
        %v1524 = vrcp.pop %v1430
        %v1525 = vrcp.pop %v1433
        %v1526 = vrcp.pop %v1436
        %v1527 = vrcp.pop %v1439
        %v1528 = vrcp.pop %v1442
        %v1529 = vrcp.pop %v1445
        %v1530 = vrcp.pop %v1448
        %v1531 = vrcp.pop %v1451
        %v1532 = vrcp.pop %v1454
        %v1533 = vrcp.pop %v1457
        %v1534 = vrcp.pop %v1460
        %v1535 = vrcp.pop %v1463
        %v1536 = vrcp.pop %v1466
        %v1537 = vrcp.pop %v1469
        %v1538 = vrcp.pop %v1472
        %v1539 = vrcp.pop %v1475
        %v1540 = vrcp.pop %v1478
        %v1541 = vrcp.pop %v1481
        %v1542 = vrcp.pop %v1484
        %v1543 = vrcp.pop %v1487
        %v1544 = vrcp.pop %v1490
        %v1545 = vrcp.pop %v1493
        %v1546 = vrcp.pop %v1496
        %v1547 = vrcp.pop %v1499
        %v1548 = vrcp.pop %v1502
        %v1549 = vrcp.pop %v1505
        %v1550 = vrcp.pop %v1508
        %v1551 = vrcp.pop %v1511
        %v1552 = vrcp.pop %v1514
        %v1553 = vrcp.pop %v1517
        %v1554 = vrcp.pop %v1520
        %v1555 = vrcp.pop %v1523
        %v1556 = vmul.f32 %v1365, %v1524
        %v1557 = vmul.f32 %v1367, %v1525
        %v1558 = vmul.f32 %v1369, %v1526
        %v1559 = vmul.f32 %v1371, %v1527
        %v1560 = vmul.f32 %v1373, %v1528
        %v1561 = vmul.f32 %v1375, %v1529
        %v1562 = vmul.f32 %v1377, %v1530
        %v1563 = vmul.f32 %v1379, %v1531
        %v1564 = vmul.f32 %v1381, %v1532
        %v1565 = vmul.f32 %v1383, %v1533
        %v1566 = vmul.f32 %v1385, %v1534
        %v1567 = vmul.f32 %v1387, %v1535
        %v1568 = vmul.f32 %v1389, %v1536
        %v1569 = vmul.f32 %v1391, %v1537
        %v1570 = vmul.f32 %v1393, %v1538
        %v1571 = vmul.f32 %v1395, %v1539
        %v1572 = vmul.f32 %v1397, %v1540
        %v1573 = vmul.f32 %v1399, %v1541
        %v1574 = vmul.f32 %v1401, %v1542
        %v1575 = vmul.f32 %v1403, %v1543
        %v1576 = vmul.f32 %v1405, %v1544
        %v1577 = vmul.f32 %v1407, %v1545
        %v1578 = vmul.f32 %v1409, %v1546
        %v1579 = vmul.f32 %v1411, %v1547
        %v1580 = vmul.f32 %v1413, %v1548
        %v1581 = vmul.f32 %v1415, %v1549
        %v1582 = vmul.f32 %v1417, %v1550
        %v1583 = vmul.f32 %v1419, %v1551
        %v1584 = vmul.f32 %v1421, %v1552
        %v1585 = vmul.f32 %v1423, %v1553
        %v1586 = vmul.f32 %v1425, %v1554
        %v1587 = vmul.f32 %v1427, %v1555
        %v1588 = vpack.c.bf16 %v1557, %v1556
        %v1589 = vpack.c.bf16 %v1559, %v1558
        %v1590 = vpack.c.bf16 %v1561, %v1560
        %v1591 = vpack.c.bf16 %v1563, %v1562
        %v1592 = vpack.c.bf16 %v1565, %v1564
        %v1593 = vpack.c.bf16 %v1567, %v1566
        %v1594 = vpack.c.bf16 %v1569, %v1568
        %v1595 = vpack.c.bf16 %v1571, %v1570
        %v1596 = vpack.c.bf16 %v1573, %v1572
        %v1597 = vpack.c.bf16 %v1575, %v1574
        %v1598 = vpack.c.bf16 %v1577, %v1576
        %v1599 = vpack.c.bf16 %v1579, %v1578
        %v1600 = vpack.c.bf16 %v1581, %v1580
        %v1601 = vpack.c.bf16 %v1583, %v1582
        %v1602 = vpack.c.bf16 %v1585, %v1584
        %v1603 = vpack.c.bf16 %v1587, %v1586
        %v1604 = vpack.c.bf16 %v426, %v422
        %v1605 = vpack.c.bf16 %v436, %v432
        %v1606 = vpack.c.bf16 %v446, %v442
        %v1607 = vpack.c.bf16 %v456, %v452
        %v1608 = vpack.c.bf16 %v645, %v643
        %v1609 = vpack.c.bf16 %v649, %v647
        %v1610 = vpack.c.bf16 %v653, %v651
        %v1611 = vpack.c.bf16 %v657, %v655
        %v1612 = vpack.c.bf16 %v669, %v667
        %v1613 = vpack.c.bf16 %v673, %v671
        %v1614 = vpack.c.bf16 %v677, %v675
        %v1615 = vpack.c.bf16 %v681, %v679
        %v1616 = vpack.c.bf16 %v693, %v691
        %v1617 = vpack.c.bf16 %v697, %v695
        %v1618 = vpack.c.bf16 %v701, %v699
        %v1619 = vpack.c.bf16 %v705, %v703
        %v1621 = vsel %vm1235, %v1588, 0
        %v1624 = vsel %vm1235, %v1589, 0
        %1626 = vmatprep.subr.bf16.mxu0 0
        %1627 = vmatpush1.bf16.msra.mxu0 0
        %1628 = vmatprep.subr.bf16.mxu0 0
        %1629 = vmatpush1.bf16.msra.mxu0 0
        %1630 = vmatprep.subr.bf16.mxu0 0
        %1631 = vmatpush1.bf16.msra.mxu0 0
        %1632 = vmatprep.subr.bf16.mxu0 0
        %1633 = vmatpush1.bf16.msra.mxu0 0
        %1634 = vmatprep.subr.bf16.mxu0 0
        %1635 = vmatpush1.bf16.msra.mxu0 0
        %1636 = vmatprep.subr.bf16.mxu0 0
        %1637 = vmatpush1.bf16.msra.mxu0 0
        %1638 = vmatprep.subr.bf16.mxu0 0
        %1639 = vmatpush1.bf16.msra.mxu0 %v1605
        %1640 = vmatprep.subr.bf16.mxu0 0
        %1641 = vmatpush1.bf16.msra.mxu0 %v1604
        %1642 = vmatprep.subr.bf16.mxu0 0
        %1643 = vmatpush2.bf16.msra.mxu0 0
        %1644 = vmatprep.subr.bf16.mxu0 0
        %1645 = vmatpush2.bf16.msra.mxu0 0
        %1646 = vmatprep.subr.bf16.mxu0 0
        %1647 = vmatpush2.bf16.msra.mxu0 0
        %1648 = vmatprep.subr.bf16.mxu0 0
        %1649 = vmatpush2.bf16.msra.mxu0 0
        %1650 = vmatprep.subr.bf16.mxu0 0
        %1651 = vmatpush2.bf16.msra.mxu0 0
        %1652 = vmatprep.subr.bf16.mxu0 0
        %1653 = vmatpush2.bf16.msra.mxu0 0
        %1654 = vmatprep.subr.bf16.mxu0 0
        %1655 = vmatpush2.bf16.msra.mxu0 0
        %1656 = vmatprep.subr.bf16.mxu0 0
        %1657 = vmatpush2.bf16.msra.mxu0 0
        %1658 = vmatprep.mubr.bf16.mxu0 0
        %1659 = vmatmul.mubr.bf16.gmra.mxu0 %v1621
        %v1660 = vpop.f32.mrf.mxu0
        %v1661 = vadd.f32 0.0, %v1660
        %v1662 = vpop.f32.mrf.mxu0
        %v1663 = vpop.f32.mrf.mxu0
        %v1664 = vadd.f32 0.0, %v1663
        %v1665 = vpop.f32.mrf.mxu0
        %1666 = vmatprep.mubr.bf16.mxu0 0
        %1667 = vmatmul.mubr.bf16.gmra.mxu0 %v1624
        %v1668 = vpop.f32.mrf.mxu0
        %v1669 = vadd.f32 0.0, %v1668
        %v1670 = vpop.f32.mrf.mxu0
        %v1671 = vpop.f32.mrf.mxu0
        %v1672 = vadd.f32 0.0, %v1671
        %v1673 = vpop.f32.mrf.mxu0
        %1674 = vdwg.mxu0
        %v1676 = vsel %vm1235, %v1590, 0
        %v1679 = vsel %vm1235, %v1591, 0
        %1681 = vmatprep.subr.bf16.mxu0 0
        %1682 = vmatpush1.bf16.msra.mxu0 0
        %1683 = vmatprep.subr.bf16.mxu0 0
        %1684 = vmatpush1.bf16.msra.mxu0 0
        %1685 = vmatprep.subr.bf16.mxu0 0
        %1686 = vmatpush1.bf16.msra.mxu0 0
        %1687 = vmatprep.subr.bf16.mxu0 0
        %1688 = vmatpush1.bf16.msra.mxu0 0
        %1689 = vmatprep.subr.bf16.mxu0 0
        %1690 = vmatpush1.bf16.msra.mxu0 0
        %1691 = vmatprep.subr.bf16.mxu0 0
        %1692 = vmatpush1.bf16.msra.mxu0 0
        %1693 = vmatprep.subr.bf16.mxu0 0
        %1694 = vmatpush1.bf16.msra.mxu0 %v1607
        %1695 = vmatprep.subr.bf16.mxu0 0
        %1696 = vmatpush1.bf16.msra.mxu0 %v1606
        %1697 = vmatprep.subr.bf16.mxu0 0
        %1698 = vmatpush2.bf16.msra.mxu0 0
        %1699 = vmatprep.subr.bf16.mxu0 0
        %1700 = vmatpush2.bf16.msra.mxu0 0
        %1701 = vmatprep.subr.bf16.mxu0 0
        %1702 = vmatpush2.bf16.msra.mxu0 0
        %1703 = vmatprep.subr.bf16.mxu0 0
        %1704 = vmatpush2.bf16.msra.mxu0 0
        %1705 = vmatprep.subr.bf16.mxu0 0
        %1706 = vmatpush2.bf16.msra.mxu0 0
        %1707 = vmatprep.subr.bf16.mxu0 0
        %1708 = vmatpush2.bf16.msra.mxu0 0
        %1709 = vmatprep.subr.bf16.mxu0 0
        %1710 = vmatpush2.bf16.msra.mxu0 0
        %1711 = vmatprep.subr.bf16.mxu0 0
        %1712 = vmatpush2.bf16.msra.mxu0 0
        %1713 = vmatprep.mubr.bf16.mxu0 0
        %1714 = vmatmul.mubr.bf16.gmra.mxu0 %v1676
        %v1715 = vpop.f32.mrf.mxu0
        %v1716 = vadd.f32 0.0, %v1715
        %v1717 = vpop.f32.mrf.mxu0
        %v1718 = vpop.f32.mrf.mxu0
        %v1719 = vadd.f32 0.0, %v1718
        %v1720 = vpop.f32.mrf.mxu0
        %1721 = vmatprep.mubr.bf16.mxu0 0
        %1722 = vmatmul.mubr.bf16.gmra.mxu0 %v1679
        %v1723 = vpop.f32.mrf.mxu0
        %v1724 = vadd.f32 0.0, %v1723
        %v1725 = vpop.f32.mrf.mxu0
        %v1726 = vpop.f32.mrf.mxu0
        %v1727 = vadd.f32 0.0, %v1726
        %v1728 = vpop.f32.mrf.mxu0
        %1729 = vdwg.mxu0
        %v1731 = vsel %vm1235, %v1592, 0
        %v1734 = vsel %vm1235, %v1593, 0
        %1736 = vmatprep.subr.bf16.mxu0 0
        %1737 = vmatpush1.bf16.msra.mxu0 0
        %1738 = vmatprep.subr.bf16.mxu0 0
        %1739 = vmatpush1.bf16.msra.mxu0 0
        %1740 = vmatprep.subr.bf16.mxu0 0
        %1741 = vmatpush1.bf16.msra.mxu0 0
        %1742 = vmatprep.subr.bf16.mxu0 0
        %1743 = vmatpush1.bf16.msra.mxu0 0
        %1744 = vmatprep.subr.bf16.mxu0 0
        %1745 = vmatpush1.bf16.msra.mxu0 0
        %1746 = vmatprep.subr.bf16.mxu0 0
        %1747 = vmatpush1.bf16.msra.mxu0 0
        %1748 = vmatprep.subr.bf16.mxu0 0
        %1749 = vmatpush1.bf16.msra.mxu0 %v1609
        %1750 = vmatprep.subr.bf16.mxu0 0
        %1751 = vmatpush1.bf16.msra.mxu0 %v1608
        %1752 = vmatprep.subr.bf16.mxu0 0
        %1753 = vmatpush2.bf16.msra.mxu0 0
        %1754 = vmatprep.subr.bf16.mxu0 0
        %1755 = vmatpush2.bf16.msra.mxu0 0
        %1756 = vmatprep.subr.bf16.mxu0 0
        %1757 = vmatpush2.bf16.msra.mxu0 0
        %1758 = vmatprep.subr.bf16.mxu0 0
        %1759 = vmatpush2.bf16.msra.mxu0 0
        %1760 = vmatprep.subr.bf16.mxu0 0
        %1761 = vmatpush2.bf16.msra.mxu0 0
        %1762 = vmatprep.subr.bf16.mxu0 0
        %1763 = vmatpush2.bf16.msra.mxu0 0
        %1764 = vmatprep.subr.bf16.mxu0 0
        %1765 = vmatpush2.bf16.msra.mxu0 0
        %1766 = vmatprep.subr.bf16.mxu0 0
        %1767 = vmatpush2.bf16.msra.mxu0 0
        %1768 = vmatprep.mubr.bf16.mxu0 0
        %1769 = vmatmul.mubr.bf16.gmra.mxu0 %v1731
        %v1770 = vpop.f32.mrf.mxu0
        %v1771 = vadd.f32 0.0, %v1770
        %v1772 = vpop.f32.mrf.mxu0
        %v1773 = vpop.f32.mrf.mxu0
        %v1774 = vadd.f32 0.0, %v1773
        %v1775 = vpop.f32.mrf.mxu0
        %1776 = vmatprep.mubr.bf16.mxu0 0
        %1777 = vmatmul.mubr.bf16.gmra.mxu0 %v1734
        %v1778 = vpop.f32.mrf.mxu0
        %v1779 = vadd.f32 0.0, %v1778
        %v1780 = vpop.f32.mrf.mxu0
        %v1781 = vpop.f32.mrf.mxu0
        %v1782 = vadd.f32 0.0, %v1781
        %v1783 = vpop.f32.mrf.mxu0
        %1784 = vdwg.mxu0
        %v1786 = vsel %vm1235, %v1594, 0
        %v1789 = vsel %vm1235, %v1595, 0
        %1791 = vmatprep.subr.bf16.mxu0 0
        %1792 = vmatpush1.bf16.msra.mxu0 0
        %1793 = vmatprep.subr.bf16.mxu0 0
        %1794 = vmatpush1.bf16.msra.mxu0 0
        %1795 = vmatprep.subr.bf16.mxu0 0
        %1796 = vmatpush1.bf16.msra.mxu0 0
        %1797 = vmatprep.subr.bf16.mxu0 0
        %1798 = vmatpush1.bf16.msra.mxu0 0
        %1799 = vmatprep.subr.bf16.mxu0 0
        %1800 = vmatpush1.bf16.msra.mxu0 0
        %1801 = vmatprep.subr.bf16.mxu0 0
        %1802 = vmatpush1.bf16.msra.mxu0 0
        %1803 = vmatprep.subr.bf16.mxu0 0
        %1804 = vmatpush1.bf16.msra.mxu0 %v1611
        %1805 = vmatprep.subr.bf16.mxu0 0
        %1806 = vmatpush1.bf16.msra.mxu0 %v1610
        %1807 = vmatprep.subr.bf16.mxu0 0
        %1808 = vmatpush2.bf16.msra.mxu0 0
        %1809 = vmatprep.subr.bf16.mxu0 0
        %1810 = vmatpush2.bf16.msra.mxu0 0
        %1811 = vmatprep.subr.bf16.mxu0 0
        %1812 = vmatpush2.bf16.msra.mxu0 0
        %1813 = vmatprep.subr.bf16.mxu0 0
        %1814 = vmatpush2.bf16.msra.mxu0 0
        %1815 = vmatprep.subr.bf16.mxu0 0
        %1816 = vmatpush2.bf16.msra.mxu0 0
        %1817 = vmatprep.subr.bf16.mxu0 0
        %1818 = vmatpush2.bf16.msra.mxu0 0
        %1819 = vmatprep.subr.bf16.mxu0 0
        %1820 = vmatpush2.bf16.msra.mxu0 0
        %1821 = vmatprep.subr.bf16.mxu0 0
        %1822 = vmatpush2.bf16.msra.mxu0 0
        %1823 = vmatprep.mubr.bf16.mxu0 0
        %1824 = vmatmul.mubr.bf16.gmra.mxu0 %v1786
        %v1825 = vpop.f32.mrf.mxu0
        %v1826 = vadd.f32 0.0, %v1825
        %v1827 = vpop.f32.mrf.mxu0
        %v1828 = vpop.f32.mrf.mxu0
        %v1829 = vadd.f32 0.0, %v1828
        %v1830 = vpop.f32.mrf.mxu0
        %1831 = vmatprep.mubr.bf16.mxu0 0
        %1832 = vmatmul.mubr.bf16.gmra.mxu0 %v1789
        %v1833 = vpop.f32.mrf.mxu0
        %v1834 = vadd.f32 0.0, %v1833
        %v1835 = vpop.f32.mrf.mxu0
        %v1836 = vpop.f32.mrf.mxu0
        %v1837 = vadd.f32 0.0, %v1836
        %v1838 = vpop.f32.mrf.mxu0
        %1839 = vdwg.mxu0
        %v1841 = vsel %vm1235, %v1596, 0
        %v1844 = vsel %vm1235, %v1597, 0
        %1846 = vmatprep.subr.bf16.mxu0 0
        %1847 = vmatpush1.bf16.msra.mxu0 0
        %1848 = vmatprep.subr.bf16.mxu0 0
        %1849 = vmatpush1.bf16.msra.mxu0 0
        %1850 = vmatprep.subr.bf16.mxu0 0
        %1851 = vmatpush1.bf16.msra.mxu0 0
        %1852 = vmatprep.subr.bf16.mxu0 0
        %1853 = vmatpush1.bf16.msra.mxu0 0
        %1854 = vmatprep.subr.bf16.mxu0 0
        %1855 = vmatpush1.bf16.msra.mxu0 0
        %1856 = vmatprep.subr.bf16.mxu0 0
        %1857 = vmatpush1.bf16.msra.mxu0 0
        %1858 = vmatprep.subr.bf16.mxu0 0
        %1859 = vmatpush1.bf16.msra.mxu0 %v1613
        %1860 = vmatprep.subr.bf16.mxu0 0
        %1861 = vmatpush1.bf16.msra.mxu0 %v1612
        %1862 = vmatprep.subr.bf16.mxu0 0
        %1863 = vmatpush2.bf16.msra.mxu0 0
        %1864 = vmatprep.subr.bf16.mxu0 0
        %1865 = vmatpush2.bf16.msra.mxu0 0
        %1866 = vmatprep.subr.bf16.mxu0 0
        %1867 = vmatpush2.bf16.msra.mxu0 0
        %1868 = vmatprep.subr.bf16.mxu0 0
        %1869 = vmatpush2.bf16.msra.mxu0 0
        %1870 = vmatprep.subr.bf16.mxu0 0
        %1871 = vmatpush2.bf16.msra.mxu0 0
        %1872 = vmatprep.subr.bf16.mxu0 0
        %1873 = vmatpush2.bf16.msra.mxu0 0
        %1874 = vmatprep.subr.bf16.mxu0 0
        %1875 = vmatpush2.bf16.msra.mxu0 0
        %1876 = vmatprep.subr.bf16.mxu0 0
        %1877 = vmatpush2.bf16.msra.mxu0 0
        %1878 = vmatprep.mubr.bf16.mxu0 0
        %1879 = vmatmul.mubr.bf16.gmra.mxu0 %v1841
        %v1880 = vpop.f32.mrf.mxu0
        %v1881 = vadd.f32 0.0, %v1880
        %v1882 = vpop.f32.mrf.mxu0
        %v1883 = vpop.f32.mrf.mxu0
        %v1884 = vadd.f32 0.0, %v1883
        %v1885 = vpop.f32.mrf.mxu0
        %1886 = vmatprep.mubr.bf16.mxu0 0
        %1887 = vmatmul.mubr.bf16.gmra.mxu0 %v1844
        %v1888 = vpop.f32.mrf.mxu0
        %v1889 = vadd.f32 0.0, %v1888
        %v1890 = vpop.f32.mrf.mxu0
        %v1891 = vpop.f32.mrf.mxu0
        %v1892 = vadd.f32 0.0, %v1891
        %v1893 = vpop.f32.mrf.mxu0
        %1894 = vdwg.mxu0
        %v1896 = vsel %vm1235, %v1598, 0
        %v1899 = vsel %vm1235, %v1599, 0
        %1901 = vmatprep.subr.bf16.mxu0 0
        %1902 = vmatpush1.bf16.msra.mxu0 0
        %1903 = vmatprep.subr.bf16.mxu0 0
        %1904 = vmatpush1.bf16.msra.mxu0 0
        %1905 = vmatprep.subr.bf16.mxu0 0
        %1906 = vmatpush1.bf16.msra.mxu0 0
        %1907 = vmatprep.subr.bf16.mxu0 0
        %1908 = vmatpush1.bf16.msra.mxu0 0
        %1909 = vmatprep.subr.bf16.mxu0 0
        %1910 = vmatpush1.bf16.msra.mxu0 0
        %1911 = vmatprep.subr.bf16.mxu0 0
        %1912 = vmatpush1.bf16.msra.mxu0 0
        %1913 = vmatprep.subr.bf16.mxu0 0
        %1914 = vmatpush1.bf16.msra.mxu0 %v1615
        %1915 = vmatprep.subr.bf16.mxu0 0
        %1916 = vmatpush1.bf16.msra.mxu0 %v1614
        %1917 = vmatprep.subr.bf16.mxu0 0
        %1918 = vmatpush2.bf16.msra.mxu0 0
        %1919 = vmatprep.subr.bf16.mxu0 0
        %1920 = vmatpush2.bf16.msra.mxu0 0
        %1921 = vmatprep.subr.bf16.mxu0 0
        %1922 = vmatpush2.bf16.msra.mxu0 0
        %1923 = vmatprep.subr.bf16.mxu0 0
        %1924 = vmatpush2.bf16.msra.mxu0 0
        %1925 = vmatprep.subr.bf16.mxu0 0
        %1926 = vmatpush2.bf16.msra.mxu0 0
        %1927 = vmatprep.subr.bf16.mxu0 0
        %1928 = vmatpush2.bf16.msra.mxu0 0
        %1929 = vmatprep.subr.bf16.mxu0 0
        %1930 = vmatpush2.bf16.msra.mxu0 0
        %1931 = vmatprep.subr.bf16.mxu0 0
        %1932 = vmatpush2.bf16.msra.mxu0 0
        %1933 = vmatprep.mubr.bf16.mxu0 0
        %1934 = vmatmul.mubr.bf16.gmra.mxu0 %v1896
        %v1935 = vpop.f32.mrf.mxu0
        %v1936 = vadd.f32 0.0, %v1935
        %v1937 = vpop.f32.mrf.mxu0
        %v1938 = vpop.f32.mrf.mxu0
        %v1939 = vadd.f32 0.0, %v1938
        %v1940 = vpop.f32.mrf.mxu0
        %1941 = vmatprep.mubr.bf16.mxu0 0
        %1942 = vmatmul.mubr.bf16.gmra.mxu0 %v1899
        %v1943 = vpop.f32.mrf.mxu0
        %v1944 = vadd.f32 0.0, %v1943
        %v1945 = vpop.f32.mrf.mxu0
        %v1946 = vpop.f32.mrf.mxu0
        %v1947 = vadd.f32 0.0, %v1946
        %v1948 = vpop.f32.mrf.mxu0
        %1949 = vdwg.mxu0
        %v1951 = vsel %vm1235, %v1600, 0
        %v1954 = vsel %vm1235, %v1601, 0
        %1956 = vmatprep.subr.bf16.mxu0 0
        %1957 = vmatpush1.bf16.msra.mxu0 0
        %1958 = vmatprep.subr.bf16.mxu0 0
        %1959 = vmatpush1.bf16.msra.mxu0 0
        %1960 = vmatprep.subr.bf16.mxu0 0
        %1961 = vmatpush1.bf16.msra.mxu0 0
        %1962 = vmatprep.subr.bf16.mxu0 0
        %1963 = vmatpush1.bf16.msra.mxu0 0
        %1964 = vmatprep.subr.bf16.mxu0 0
        %1965 = vmatpush1.bf16.msra.mxu0 0
        %1966 = vmatprep.subr.bf16.mxu0 0
        %1967 = vmatpush1.bf16.msra.mxu0 0
        %1968 = vmatprep.subr.bf16.mxu0 0
        %1969 = vmatpush1.bf16.msra.mxu0 %v1617
        %1970 = vmatprep.subr.bf16.mxu0 0
        %1971 = vmatpush1.bf16.msra.mxu0 %v1616
        %1972 = vmatprep.subr.bf16.mxu0 0
        %1973 = vmatpush2.bf16.msra.mxu0 0
        %1974 = vmatprep.subr.bf16.mxu0 0
        %1975 = vmatpush2.bf16.msra.mxu0 0
        %1976 = vmatprep.subr.bf16.mxu0 0
        %1977 = vmatpush2.bf16.msra.mxu0 0
        %1978 = vmatprep.subr.bf16.mxu0 0
        %1979 = vmatpush2.bf16.msra.mxu0 0
        %1980 = vmatprep.subr.bf16.mxu0 0
        %1981 = vmatpush2.bf16.msra.mxu0 0
        %1982 = vmatprep.subr.bf16.mxu0 0
        %1983 = vmatpush2.bf16.msra.mxu0 0
        %1984 = vmatprep.subr.bf16.mxu0 0
        %1985 = vmatpush2.bf16.msra.mxu0 0
        %1986 = vmatprep.subr.bf16.mxu0 0
        %1987 = vmatpush2.bf16.msra.mxu0 0
        %1988 = vmatprep.mubr.bf16.mxu0 0
        %1989 = vmatmul.mubr.bf16.gmra.mxu0 %v1951
        %v1990 = vpop.f32.mrf.mxu0
        %v1991 = vadd.f32 0.0, %v1990
        %v1992 = vpop.f32.mrf.mxu0
        %v1993 = vpop.f32.mrf.mxu0
        %v1994 = vadd.f32 0.0, %v1993
        %v1995 = vpop.f32.mrf.mxu0
        %1996 = vmatprep.mubr.bf16.mxu0 0
        %1997 = vmatmul.mubr.bf16.gmra.mxu0 %v1954
        %v1998 = vpop.f32.mrf.mxu0
        %v1999 = vadd.f32 0.0, %v1998
        %v2000 = vpop.f32.mrf.mxu0
        %v2001 = vpop.f32.mrf.mxu0
        %v2002 = vadd.f32 0.0, %v2001
        %v2003 = vpop.f32.mrf.mxu0
        %2004 = vdwg.mxu0
        %v2006 = vsel %vm1235, %v1602, 0
        %v2009 = vsel %vm1235, %v1603, 0
        %2011 = vmatprep.subr.bf16.mxu0 0
        %2012 = vmatpush1.bf16.msra.mxu0 0
        %2013 = vmatprep.subr.bf16.mxu0 0
        %2014 = vmatpush1.bf16.msra.mxu0 0
        %2015 = vmatprep.subr.bf16.mxu0 0
        %2016 = vmatpush1.bf16.msra.mxu0 0
        %2017 = vmatprep.subr.bf16.mxu0 0
        %2018 = vmatpush1.bf16.msra.mxu0 0
        %2019 = vmatprep.subr.bf16.mxu0 0
        %2020 = vmatpush1.bf16.msra.mxu0 0
        %2021 = vmatprep.subr.bf16.mxu0 0
        %2022 = vmatpush1.bf16.msra.mxu0 0
        %2023 = vmatprep.subr.bf16.mxu0 0
        %2024 = vmatpush1.bf16.msra.mxu0 %v1619
        %2025 = vmatprep.subr.bf16.mxu0 0
        %2026 = vmatpush1.bf16.msra.mxu0 %v1618
        %2027 = vmatprep.subr.bf16.mxu0 0
        %2028 = vmatpush2.bf16.msra.mxu0 0
        %2029 = vmatprep.subr.bf16.mxu0 0
        %2030 = vmatpush2.bf16.msra.mxu0 0
        %2031 = vmatprep.subr.bf16.mxu0 0
        %2032 = vmatpush2.bf16.msra.mxu0 0
        %2033 = vmatprep.subr.bf16.mxu0 0
        %2034 = vmatpush2.bf16.msra.mxu0 0
        %2035 = vmatprep.subr.bf16.mxu0 0
        %2036 = vmatpush2.bf16.msra.mxu0 0
        %2037 = vmatprep.subr.bf16.mxu0 0
        %2038 = vmatpush2.bf16.msra.mxu0 0
        %2039 = vmatprep.subr.bf16.mxu0 0
        %2040 = vmatpush2.bf16.msra.mxu0 0
        %2041 = vmatprep.subr.bf16.mxu0 0
        %2042 = vmatpush2.bf16.msra.mxu0 0
        %2043 = vmatprep.mubr.bf16.mxu0 0
        %2044 = vmatmul.mubr.bf16.gmra.mxu0 %v2006
        %v2045 = vpop.f32.mrf.mxu0
        %v2046 = vadd.f32 0.0, %v2045
        %v2047 = vpop.f32.mrf.mxu0
        %v2048 = vpop.f32.mrf.mxu0
        %v2049 = vadd.f32 0.0, %v2048
        %v2050 = vpop.f32.mrf.mxu0
        %2051 = vmatprep.mubr.bf16.mxu0 0
        %2052 = vmatmul.mubr.bf16.gmra.mxu0 %v2009
        %v2053 = vpop.f32.mrf.mxu0
        %v2054 = vadd.f32 0.0, %v2053
        %v2055 = vpop.f32.mrf.mxu0
        %v2056 = vpop.f32.mrf.mxu0
        %v2057 = vadd.f32 0.0, %v2056
        %v2058 = vpop.f32.mrf.mxu0
        %2059 = vdwg.mxu0
        %2068 = vrot.lane.b32.xlu0 %v1771, 16
        %v2069 = vpop.permute.xlu0 %2068
        %2070 = vrot.lane.b32.xlu0 %v1774, 16
        %v2071 = vpop.permute.xlu0 %2070
        %2072 = vrot.lane.b32.xlu0 %v1779, 16
        %v2073 = vpop.permute.xlu0 %2072
        %2074 = vrot.lane.b32.xlu0 %v1782, 16
        %v2075 = vpop.permute.xlu0 %2074
        %2076 = vrot.lane.b32.xlu0 %v1826, 16
        %v2077 = vpop.permute.xlu0 %2076
        %2078 = vrot.lane.b32.xlu0 %v1829, 16
        %v2079 = vpop.permute.xlu0 %2078
        %2080 = vrot.lane.b32.xlu0 %v1834, 16
        %v2081 = vpop.permute.xlu0 %2080
        %2082 = vrot.lane.b32.xlu0 %v1837, 16
        %v2083 = vpop.permute.xlu0 %2082
        %2100 = vrot.lane.b32.xlu0 %v1881, 32
        %v2101 = vpop.permute.xlu0 %2100
        %2102 = vrot.lane.b32.xlu0 %v1884, 32
        %v2103 = vpop.permute.xlu0 %2102
        %2104 = vrot.lane.b32.xlu0 %v1889, 32
        %v2105 = vpop.permute.xlu0 %2104
        %2106 = vrot.lane.b32.xlu0 %v1892, 32
        %v2107 = vpop.permute.xlu0 %2106
        %2108 = vrot.lane.b32.xlu0 %v1936, 32
        %v2109 = vpop.permute.xlu0 %2108
        %2110 = vrot.lane.b32.xlu0 %v1939, 32
        %v2111 = vpop.permute.xlu0 %2110
        %2112 = vrot.lane.b32.xlu0 %v1944, 32
        %v2113 = vpop.permute.xlu0 %2112
        %2114 = vrot.lane.b32.xlu0 %v1947, 32
        %v2115 = vpop.permute.xlu0 %2114
        %2132 = vrot.lane.b32.xlu0 %v1991, 48
        %v2133 = vpop.permute.xlu0 %2132
        %2134 = vrot.lane.b32.xlu0 %v1994, 48
        %v2135 = vpop.permute.xlu0 %2134
        %2136 = vrot.lane.b32.xlu0 %v1999, 48
        %v2137 = vpop.permute.xlu0 %2136
        %2138 = vrot.lane.b32.xlu0 %v2002, 48
        %v2139 = vpop.permute.xlu0 %2138
        %2140 = vrot.lane.b32.xlu0 %v2046, 48
        %v2141 = vpop.permute.xlu0 %2140
        %2142 = vrot.lane.b32.xlu0 %v2049, 48
        %v2143 = vpop.permute.xlu0 %2142
        %2144 = vrot.lane.b32.xlu0 %v2054, 48
        %v2145 = vpop.permute.xlu0 %2144
        %2146 = vrot.lane.b32.xlu0 %v2057, 48
        %v2147 = vpop.permute.xlu0 %2146
        %v2156 = vsel %vm746, %v1661, %v2069
        %v2157 = vsel %vm746, %v1664, %v2071
        %v2158 = vsel %vm746, %v1669, %v2073
        %v2159 = vsel %vm746, %v1672, %v2075
        %v2160 = vsel %vm746, %v1716, %v2077
        %v2161 = vsel %vm746, %v1719, %v2079
        %v2162 = vsel %vm746, %v1724, %v2081
        %v2163 = vsel %vm746, %v1727, %v2083
        %v2164 = vsel %vm1235, %v2156, %v2101
        %v2165 = vsel %vm1235, %v2157, %v2103
        %v2166 = vsel %vm1235, %v2158, %v2105
        %v2167 = vsel %vm1235, %v2159, %v2107
        %v2168 = vsel %vm1235, %v2160, %v2109
        %v2169 = vsel %vm1235, %v2161, %v2111
        %v2170 = vsel %vm1235, %v2162, %v2113
        %v2171 = vsel %vm1235, %v2163, %v2115
        %vm2172 = vcmask 392192
        %v2173 = vsel %vm2172, %v2164, %v2133
        %v2174 = vsel %vm2172, %v2165, %v2135
        %v2175 = vsel %vm2172, %v2166, %v2137
        %v2176 = vsel %vm2172, %v2167, %v2139
        %v2177 = vsel %vm2172, %v2168, %v2141
        %v2178 = vsel %vm2172, %v2169, %v2143
        %v2179 = vsel %vm2172, %v2170, %v2145
        %v2180 = vsel %vm2172, %v2171, %v2147
        %v2181 = vpack.c.bf16 %v2174, %v2173
        %v2182 = vpack.c.bf16 %v2176, %v2175
        %v2183 = vpack.c.bf16 %v2178, %v2177
        %v2184 = vpack.c.bf16 %v2180, %v2179
        %v2185 = vld [vmem:[%s3] sm:$0xf]
        %v2186 = vld [vmem:[%s3 + $0x4] sm:$0xf]
        %v2187 = vld [vmem:[%s3 + $0x8] sm:$0xf]
        %v2188 = vld [vmem:[%s3 + $0xc] sm:$0xf]
        %v2189 = vld [vmem:[%s3 + $0x10] sm:$0xf]
        %v2190 = vld [vmem:[%s3 + $0x14] sm:$0xf]
        %v2191 = vld [vmem:[%s3 + $0x18] sm:$0xf]
        %v2192 = vld [vmem:[%s3 + $0x1c] sm:$0xf]
        %v2193 = vld [vmem:[#allocation6] sm:$0x1]
        %v2194 = vlaneseq
        %v2195 = vshrl.u32 %v2194, 7
        %v2196 = vsub.s32 0, %v2195
        %v2197 = vrot.slane %v2193, %v2196
        %v2206 = vunpack.c.l.b16 %v2185
        %v2207 = vunpack.c.l.b16 %v2186
        %v2208 = vunpack.c.l.b16 %v2187
        %v2209 = vunpack.c.l.b16 %v2188
        %v2210 = vunpack.c.l.b16 %v2189
        %v2211 = vunpack.c.l.b16 %v2190
        %v2212 = vunpack.c.l.b16 %v2191
        %v2213 = vunpack.c.l.b16 %v2192
        %v2214 = vpack.c.b16 %v2207, %v2206
        %v2215 = vpack.c.b16 %v2209, %v2208
        %v2216 = vpack.c.b16 %v2211, %v2210
        %v2217 = vpack.c.b16 %v2213, %v2212
        %v2223 = vsel %vm372, %v2181, 0
        %v2226 = vsel %vm372, %v2182, 0
        %v2229 = vsel %vm372, %v2183, 0
        %v2232 = vsel %vm372, %v2184, 0
        %2234 = vmatprep.subr.bf16.mxu0 0
        %2235 = vmatpush1.bf16.msra.mxu0 0
        %2236 = vmatprep.subr.bf16.mxu0 0
        %2237 = vmatpush1.bf16.msra.mxu0 0
        %2238 = vmatprep.subr.bf16.mxu0 0
        %2239 = vmatpush1.bf16.msra.mxu0 0
        %2240 = vmatprep.subr.bf16.mxu0 0
        %2241 = vmatpush1.bf16.msra.mxu0 0
        %2242 = vmatprep.subr.bf16.mxu0 0
        %2243 = vmatpush1.bf16.msra.mxu0 %v2217
        %2244 = vmatprep.subr.bf16.mxu0 0
        %2245 = vmatpush1.bf16.msra.mxu0 %v2216
        %2246 = vmatprep.subr.bf16.mxu0 0
        %2247 = vmatpush1.bf16.msra.mxu0 %v2215
        %2248 = vmatprep.subr.bf16.mxu0 0
        %2249 = vmatpush1.bf16.msra.mxu0 %v2214
        %2250 = vmatprep.subr.bf16.mxu0 0
        %2251 = vmatpush2.bf16.msra.mxu0 0
        %2252 = vmatprep.subr.bf16.mxu0 0
        %2253 = vmatpush2.bf16.msra.mxu0 0
        %2254 = vmatprep.subr.bf16.mxu0 0
        %2255 = vmatpush2.bf16.msra.mxu0 0
        %2256 = vmatprep.subr.bf16.mxu0 0
        %2257 = vmatpush2.bf16.msra.mxu0 0
        %2258 = vmatprep.subr.bf16.mxu0 0
        %2259 = vmatpush2.bf16.msra.mxu0 0
        %2260 = vmatprep.subr.bf16.mxu0 0
        %2261 = vmatpush2.bf16.msra.mxu0 0
        %2262 = vmatprep.subr.bf16.mxu0 0
        %2263 = vmatpush2.bf16.msra.mxu0 0
        %2264 = vmatprep.subr.bf16.mxu0 0
        %2265 = vmatpush2.bf16.msra.mxu0 0
        %2266 = vmatprep.mubr.bf16.mxu0 0
        %2267 = vmatmul.mubr.bf16.gmra.mxu0 %v2223
        %v2268 = vpop.f32.mrf.mxu0
        %v2269 = vadd.f32 %v2197, %v2268
        %v2270 = vpop.f32.mrf.mxu0
        %v2271 = vpop.f32.mrf.mxu0
        %v2272 = vadd.f32 %v2197, %v2271
        %v2273 = vpop.f32.mrf.mxu0
        %2274 = vmatprep.mubr.bf16.mxu0 0
        %2275 = vmatmul.mubr.bf16.gmra.mxu0 %v2226
        %v2276 = vpop.f32.mrf.mxu0
        %v2277 = vadd.f32 %v2197, %v2276
        %v2278 = vpop.f32.mrf.mxu0
        %v2279 = vpop.f32.mrf.mxu0
        %v2280 = vadd.f32 %v2197, %v2279
        %v2281 = vpop.f32.mrf.mxu0
        %2282 = vmatprep.mubr.bf16.mxu0 0
        %2283 = vmatmul.mubr.bf16.gmra.mxu0 %v2229
        %v2284 = vpop.f32.mrf.mxu0
        %v2285 = vadd.f32 %v2197, %v2284
        %v2286 = vpop.f32.mrf.mxu0
        %v2287 = vpop.f32.mrf.mxu0
        %v2288 = vadd.f32 %v2197, %v2287
        %v2289 = vpop.f32.mrf.mxu0
        %2290 = vmatprep.mubr.bf16.mxu0 0
        %2291 = vmatmul.mubr.bf16.gmra.mxu0 %v2232
        %v2292 = vpop.f32.mrf.mxu0
        %v2293 = vadd.f32 %v2197, %v2292
        %v2294 = vpop.f32.mrf.mxu0
        %v2295 = vpop.f32.mrf.mxu0
        %v2296 = vadd.f32 %v2197, %v2295
        %v2297 = vpop.f32.mrf.mxu0
        %2298 = vdwg.mxu0
        %v2299 = vadd.f32 %v2269, %v300
        %v2300 = vadd.f32 %v2272, %v301
        %v2301 = vadd.f32 %v2277, %v302
        %v2302 = vadd.f32 %v2280, %v303
        %v2303 = vadd.f32 %v2285, %v304
        %v2304 = vadd.f32 %v2288, %v305
        %v2305 = vadd.f32 %v2293, %v306
        %v2306 = vadd.f32 %v2296, %v307
        %v2307 = vld [vmem:[#allocation6 + $0x4] sm:$0x1]
        %v2308 = vld [vmem:[#allocation6 + $0x5] sm:$0x1]
        %v2309 = vsel %vm372, %v2299, 0.0
        %2310 = vadd.xlane.f32.xlu0 %v2309
        %v2311 = vpop.xlane.xlu0 %2310
        %v2312 = vsel %vm372, %v2300, 0.0
        %2313 = vadd.xlane.f32.xlu0 %v2312
        %v2314 = vpop.xlane.xlu0 %2313
        %v2315 = vsel %vm372, %v2301, 0.0
        %2316 = vadd.xlane.f32.xlu0 %v2315
        %v2317 = vpop.xlane.xlu0 %2316
        %v2318 = vsel %vm372, %v2302, 0.0
        %2319 = vadd.xlane.f32.xlu0 %v2318
        %v2320 = vpop.xlane.xlu0 %2319
        %v2321 = vsel %vm372, %v2303, 0.0
        %2322 = vadd.xlane.f32.xlu0 %v2321
        %v2323 = vpop.xlane.xlu0 %2322
        %v2324 = vsel %vm372, %v2304, 0.0
        %2325 = vadd.xlane.f32.xlu0 %v2324
        %v2326 = vpop.xlane.xlu0 %2325
        %v2327 = vsel %vm372, %v2305, 0.0
        %2328 = vadd.xlane.f32.xlu0 %v2327
        %v2329 = vpop.xlane.xlu0 %2328
        %v2330 = vsel %vm372, %v2306, 0.0
        %2331 = vadd.xlane.f32.xlu0 %v2330
        %v2332 = vpop.xlane.xlu0 %2331
        %v2333 = vrcp.pop 64.0
        %v2334 = vmul.f32 %v2311, %v2333
        %v2335 = vmul.f32 %v2314, %v2333
        %v2336 = vmul.f32 %v2317, %v2333
        %v2337 = vmul.f32 %v2320, %v2333
        %v2338 = vmul.f32 %v2323, %v2333
        %v2339 = vmul.f32 %v2326, %v2333
        %v2340 = vmul.f32 %v2329, %v2333
        %v2341 = vmul.f32 %v2332, %v2333
        %v2342 = vmul.f32 %v2299, %v2299
        %v2343 = vmul.f32 %v2300, %v2300
        %v2344 = vmul.f32 %v2301, %v2301
        %v2345 = vmul.f32 %v2302, %v2302
        %v2346 = vmul.f32 %v2303, %v2303
        %v2347 = vmul.f32 %v2304, %v2304
        %v2348 = vmul.f32 %v2305, %v2305
        %v2349 = vmul.f32 %v2306, %v2306
        %v2350 = vsel %vm372, %v2342, 0.0
        %2351 = vadd.xlane.f32.xlu0 %v2350
        %v2352 = vpop.xlane.xlu0 %2351
        %v2353 = vsel %vm372, %v2343, 0.0
        %2354 = vadd.xlane.f32.xlu0 %v2353
        %v2355 = vpop.xlane.xlu0 %2354
        %v2356 = vsel %vm372, %v2344, 0.0
        %2357 = vadd.xlane.f32.xlu0 %v2356
        %v2358 = vpop.xlane.xlu0 %2357
        %v2359 = vsel %vm372, %v2345, 0.0
        %2360 = vadd.xlane.f32.xlu0 %v2359
        %v2361 = vpop.xlane.xlu0 %2360
        %v2362 = vsel %vm372, %v2346, 0.0
        %2363 = vadd.xlane.f32.xlu0 %v2362
        %v2364 = vpop.xlane.xlu0 %2363
        %v2365 = vsel %vm372, %v2347, 0.0
        %2366 = vadd.xlane.f32.xlu0 %v2365
        %v2367 = vpop.xlane.xlu0 %2366
        %v2368 = vsel %vm372, %v2348, 0.0
        %2369 = vadd.xlane.f32.xlu0 %v2368
        %v2370 = vpop.xlane.xlu0 %2369
        %v2371 = vsel %vm372, %v2349, 0.0
        %2372 = vadd.xlane.f32.xlu0 %v2371
        %v2373 = vpop.xlane.xlu0 %2372
        %v2374 = vmul.f32 %v2352, %v2333
        %v2375 = vmul.f32 %v2355, %v2333
        %v2376 = vmul.f32 %v2358, %v2333
        %v2377 = vmul.f32 %v2361, %v2333
        %v2378 = vmul.f32 %v2364, %v2333
        %v2379 = vmul.f32 %v2367, %v2333
        %v2380 = vmul.f32 %v2370, %v2333
        %v2381 = vmul.f32 %v2373, %v2333
        %v2382 = vmul.f32 %v2334, %v2334
        %v2383 = vmul.f32 %v2335, %v2335
        %v2384 = vmul.f32 %v2336, %v2336
        %v2385 = vmul.f32 %v2337, %v2337
        %v2386 = vmul.f32 %v2338, %v2338
        %v2387 = vmul.f32 %v2339, %v2339
        %v2388 = vmul.f32 %v2340, %v2340
        %v2389 = vmul.f32 %v2341, %v2341
        %v2390 = vsub.f32 %v2374, %v2382
        %v2391 = vsub.f32 %v2375, %v2383
        %v2392 = vsub.f32 %v2376, %v2384
        %v2393 = vsub.f32 %v2377, %v2385
        %v2394 = vsub.f32 %v2378, %v2386
        %v2395 = vsub.f32 %v2379, %v2387
        %v2396 = vsub.f32 %v2380, %v2388
        %v2397 = vsub.f32 %v2381, %v2389
        %v2398 = vsub.f32 %v2299, %v2334
        %v2399 = vsub.f32 %v2300, %v2335
        %v2400 = vsub.f32 %v2301, %v2336
        %v2401 = vsub.f32 %v2302, %v2337
        %v2402 = vsub.f32 %v2303, %v2338
        %v2403 = vsub.f32 %v2304, %v2339
        %v2404 = vsub.f32 %v2305, %v2340
        %v2405 = vsub.f32 %v2306, %v2341
        %v2406 = vadd.f32 %v2390, 1e-05
        %v2407 = vadd.f32 %v2391, 1e-05
        %v2408 = vadd.f32 %v2392, 1e-05
        %v2409 = vadd.f32 %v2393, 1e-05
        %v2410 = vadd.f32 %v2394, 1e-05
        %v2411 = vadd.f32 %v2395, 1e-05
        %v2412 = vadd.f32 %v2396, 1e-05
        %v2413 = vadd.f32 %v2397, 1e-05
        %v2414 = vrsqrt.pop %v2406
        %v2415 = vrsqrt.pop %v2407
        %v2416 = vrsqrt.pop %v2408
        %v2417 = vrsqrt.pop %v2409
        %v2418 = vrsqrt.pop %v2410
        %v2419 = vrsqrt.pop %v2411
        %v2420 = vrsqrt.pop %v2412
        %v2421 = vrsqrt.pop %v2413
        %v2422 = vmul.f32 %v2398, %v2414
        %v2423 = vmul.f32 %v2399, %v2415
        %v2424 = vmul.f32 %v2400, %v2416
        %v2425 = vmul.f32 %v2401, %v2417
        %v2426 = vmul.f32 %v2402, %v2418
        %v2427 = vmul.f32 %v2403, %v2419
        %v2428 = vmul.f32 %v2404, %v2420
        %v2429 = vmul.f32 %v2405, %v2421
        %v2430 = vlaneseq
        %v2431 = vshrl.u32 %v2430, 7
        %v2432 = vsub.s32 0, %v2431
        %v2433 = vrot.slane %v2307, %v2432
        %v2434 = vmul.f32 %v2422, %v2433
        %v2435 = vmul.f32 %v2423, %v2433
        %v2436 = vmul.f32 %v2424, %v2433
        %v2437 = vmul.f32 %v2425, %v2433
        %v2438 = vmul.f32 %v2426, %v2433
        %v2439 = vmul.f32 %v2427, %v2433
        %v2440 = vmul.f32 %v2428, %v2433
        %v2441 = vmul.f32 %v2429, %v2433
        %v2442 = vlaneseq
        %v2443 = vshrl.u32 %v2442, 7
        %v2444 = vsub.s32 0, %v2443
        %v2445 = vrot.slane %v2308, %v2444
        %v2446 = vadd.f32 %v2434, %v2445
        %v2447 = vadd.f32 %v2435, %v2445
        %v2448 = vadd.f32 %v2436, %v2445
        %v2449 = vadd.f32 %v2437, %v2445
        %v2450 = vadd.f32 %v2438, %v2445
        %v2451 = vadd.f32 %v2439, %v2445
        %v2452 = vadd.f32 %v2440, %v2445
        %v2453 = vadd.f32 %v2441, %v2445
        %v2454 = vpack.c.bf16 %v2447, %v2446
        %v2455 = vpack.c.bf16 %v2449, %v2448
        %v2456 = vpack.c.bf16 %v2451, %v2450
        %v2457 = vpack.c.bf16 %v2453, %v2452
        %s2458 = scalar_lea.vmem %s1, 64
        %v2459 = vld [vmem:[%s2458] sm:$0xff]
        %v2460 = vld [vmem:[%s2458 + $0x8] sm:$0xff]
        %v2461 = vld [vmem:[%s2458 + $0x10] sm:$0xff]
        %v2462 = vld [vmem:[%s2458 + $0x18] sm:$0xff]
        %v2463 = vld [vmem:[%s2458 + $0x20] sm:$0xff]
        %v2464 = vld [vmem:[%s2458 + $0x28] sm:$0xff]
        %v2465 = vld [vmem:[%s2458 + $0x30] sm:$0xff]
        %v2466 = vld [vmem:[%s2458 + $0x38] sm:$0xff]
        %s2467 = scalar_lea.vmem [#allocation2], 2
        %v2468 = vld [vmem:[%s2467] sm:$0x3]
        %v2470 = vlaneseq
        %v2471 = vshrl.u32 %v2470, 7
        %v2472 = vsub.s32 0, %v2471
        %v2473 = vrot.slane %v2468, %v2472
        %v2474 = vlaneseq
        %v2475 = vshrl.u32 %v2474, 7
        %v2476 = vsub.s32 1, %v2475
        %v2477 = vrot.slane %v2468, %v2476
        %v2488 = vunpack.c.l.b16 %v2459
        %v2489 = vunpack.c.h.b16 %v2459
        %v2490 = vunpack.c.l.b16 %v2460
        %v2491 = vunpack.c.h.b16 %v2460
        %v2492 = vunpack.c.l.b16 %v2461
        %v2493 = vunpack.c.h.b16 %v2461
        %v2494 = vunpack.c.l.b16 %v2462
        %v2495 = vunpack.c.h.b16 %v2462
        %v2496 = vunpack.c.l.b16 %v2463
        %v2497 = vunpack.c.h.b16 %v2463
        %v2498 = vunpack.c.l.b16 %v2464
        %v2499 = vunpack.c.h.b16 %v2464
        %v2500 = vunpack.c.l.b16 %v2465
        %v2501 = vunpack.c.h.b16 %v2465
        %v2502 = vunpack.c.l.b16 %v2466
        %v2503 = vunpack.c.h.b16 %v2466
        %v2504 = vpack.c.b16 %v2490, %v2488
        %v2505 = vpack.c.b16 %v2491, %v2489
        %v2506 = vpack.c.b16 %v2494, %v2492
        %v2507 = vpack.c.b16 %v2495, %v2493
        %v2508 = vpack.c.b16 %v2498, %v2496
        %v2509 = vpack.c.b16 %v2499, %v2497
        %v2510 = vpack.c.b16 %v2502, %v2500
        %v2511 = vpack.c.b16 %v2503, %v2501
        %v2521 = vsel %vm372, %v2454, 0
        %v2524 = vsel %vm372, %v2455, 0
        %v2527 = vsel %vm372, %v2456, 0
        %v2530 = vsel %vm372, %v2457, 0
        %2532 = vmatprep.subr.bf16.mxu0 0
        %2533 = vmatpush1.bf16.msra.mxu0 0
        %2534 = vmatprep.subr.bf16.mxu0 0
        %2535 = vmatpush1.bf16.msra.mxu0 0
        %2536 = vmatprep.subr.bf16.mxu0 0
        %2537 = vmatpush1.bf16.msra.mxu0 0
        %2538 = vmatprep.subr.bf16.mxu0 0
        %2539 = vmatpush1.bf16.msra.mxu0 0
        %2540 = vmatprep.subr.bf16.mxu0 %v2511
        %2541 = vmatpush1.bf16.msra.mxu0 %v2510
        %2542 = vmatprep.subr.bf16.mxu0 %v2509
        %2543 = vmatpush1.bf16.msra.mxu0 %v2508
        %2544 = vmatprep.subr.bf16.mxu0 %v2507
        %2545 = vmatpush1.bf16.msra.mxu0 %v2506
        %2546 = vmatprep.subr.bf16.mxu0 %v2505
        %2547 = vmatpush1.bf16.msra.mxu0 %v2504
        %2548 = vmatprep.subr.bf16.mxu0 0
        %2549 = vmatpush2.bf16.msra.mxu0 0
        %2550 = vmatprep.subr.bf16.mxu0 0
        %2551 = vmatpush2.bf16.msra.mxu0 0
        %2552 = vmatprep.subr.bf16.mxu0 0
        %2553 = vmatpush2.bf16.msra.mxu0 0
        %2554 = vmatprep.subr.bf16.mxu0 0
        %2555 = vmatpush2.bf16.msra.mxu0 0
        %2556 = vmatprep.subr.bf16.mxu0 0
        %2557 = vmatpush2.bf16.msra.mxu0 0
        %2558 = vmatprep.subr.bf16.mxu0 0
        %2559 = vmatpush2.bf16.msra.mxu0 0
        %2560 = vmatprep.subr.bf16.mxu0 0
        %2561 = vmatpush2.bf16.msra.mxu0 0
        %2562 = vmatprep.subr.bf16.mxu0 0
        %2563 = vmatpush2.bf16.msra.mxu0 0
        %2564 = vmatprep.mubr.bf16.mxu0 0
        %2565 = vmatmul.mubr.bf16.gmra.mxu0 %v2521
        %v2566 = vpop.f32.mrf.mxu0
        %v2567 = vadd.f32 %v2473, %v2566
        %v2568 = vpop.f32.mrf.mxu0
        %v2569 = vadd.f32 %v2477, %v2568
        %v2570 = vpop.f32.mrf.mxu0
        %v2571 = vadd.f32 %v2473, %v2570
        %v2572 = vpop.f32.mrf.mxu0
        %v2573 = vadd.f32 %v2477, %v2572
        %2574 = vmatprep.mubr.bf16.mxu0 0
        %2575 = vmatmul.mubr.bf16.gmra.mxu0 %v2524
        %v2576 = vpop.f32.mrf.mxu0
        %v2577 = vadd.f32 %v2473, %v2576
        %v2578 = vpop.f32.mrf.mxu0
        %v2579 = vadd.f32 %v2477, %v2578
        %v2580 = vpop.f32.mrf.mxu0
        %v2581 = vadd.f32 %v2473, %v2580
        %v2582 = vpop.f32.mrf.mxu0
        %v2583 = vadd.f32 %v2477, %v2582
        %2584 = vmatprep.mubr.bf16.mxu0 0
        %2585 = vmatmul.mubr.bf16.gmra.mxu0 %v2527
        %v2586 = vpop.f32.mrf.mxu0
        %v2587 = vadd.f32 %v2473, %v2586
        %v2588 = vpop.f32.mrf.mxu0
        %v2589 = vadd.f32 %v2477, %v2588
        %v2590 = vpop.f32.mrf.mxu0
        %v2591 = vadd.f32 %v2473, %v2590
        %v2592 = vpop.f32.mrf.mxu0
        %v2593 = vadd.f32 %v2477, %v2592
        %2594 = vmatprep.mubr.bf16.mxu0 0
        %2595 = vmatmul.mubr.bf16.gmra.mxu0 %v2530
        %v2596 = vpop.f32.mrf.mxu0
        %v2597 = vadd.f32 %v2473, %v2596
        %v2598 = vpop.f32.mrf.mxu0
        %v2599 = vadd.f32 %v2477, %v2598
        %v2600 = vpop.f32.mrf.mxu0
        %v2601 = vadd.f32 %v2473, %v2600
        %v2602 = vpop.f32.mrf.mxu0
        %v2603 = vadd.f32 %v2477, %v2602
        %2604 = vdwg.mxu0
        %2613 = vrot.lane.b32.xlu0 %v2567, 112
        %v2614 = vpop.permute.xlu0 %2613
        %2615 = vrot.lane.b32.xlu0 %v2571, 112
        %v2616 = vpop.permute.xlu0 %2615
        %2617 = vrot.lane.b32.xlu0 %v2577, 112
        %v2618 = vpop.permute.xlu0 %2617
        %2619 = vrot.lane.b32.xlu0 %v2581, 112
        %v2620 = vpop.permute.xlu0 %2619
        %2621 = vrot.lane.b32.xlu0 %v2587, 112
        %v2622 = vpop.permute.xlu0 %2621
        %2623 = vrot.lane.b32.xlu0 %v2591, 112
        %v2624 = vpop.permute.xlu0 %2623
        %2625 = vrot.lane.b32.xlu0 %v2597, 112
        %v2626 = vpop.permute.xlu0 %2625
        %2627 = vrot.lane.b32.xlu0 %v2601, 112
        %v2628 = vpop.permute.xlu0 %2627
        %2637 = vrot.lane.b32.xlu0 %v2567, 96
        %v2638 = vpop.permute.xlu0 %2637
        %2639 = vrot.lane.b32.xlu0 %v2571, 96
        %v2640 = vpop.permute.xlu0 %2639
        %2641 = vrot.lane.b32.xlu0 %v2577, 96
        %v2642 = vpop.permute.xlu0 %2641
        %2643 = vrot.lane.b32.xlu0 %v2581, 96
        %v2644 = vpop.permute.xlu0 %2643
        %2645 = vrot.lane.b32.xlu0 %v2587, 96
        %v2646 = vpop.permute.xlu0 %2645
        %2647 = vrot.lane.b32.xlu0 %v2591, 96
        %v2648 = vpop.permute.xlu0 %2647
        %2649 = vrot.lane.b32.xlu0 %v2597, 96
        %v2650 = vpop.permute.xlu0 %2649
        %2651 = vrot.lane.b32.xlu0 %v2601, 96
        %v2652 = vpop.permute.xlu0 %2651
        %2661 = vrot.lane.b32.xlu0 %v2567, 80
        %v2662 = vpop.permute.xlu0 %2661
        %2663 = vrot.lane.b32.xlu0 %v2571, 80
        %v2664 = vpop.permute.xlu0 %2663
        %2665 = vrot.lane.b32.xlu0 %v2577, 80
        %v2666 = vpop.permute.xlu0 %2665
        %2667 = vrot.lane.b32.xlu0 %v2581, 80
        %v2668 = vpop.permute.xlu0 %2667
        %2669 = vrot.lane.b32.xlu0 %v2587, 80
        %v2670 = vpop.permute.xlu0 %2669
        %2671 = vrot.lane.b32.xlu0 %v2591, 80
        %v2672 = vpop.permute.xlu0 %2671
        %2673 = vrot.lane.b32.xlu0 %v2597, 80
        %v2674 = vpop.permute.xlu0 %2673
        %2675 = vrot.lane.b32.xlu0 %v2601, 80
        %v2676 = vpop.permute.xlu0 %2675
        %2685 = vrot.lane.b32.xlu0 %v2567, 64
        %v2686 = vpop.permute.xlu0 %2685
        %2687 = vrot.lane.b32.xlu0 %v2571, 64
        %v2688 = vpop.permute.xlu0 %2687
        %2689 = vrot.lane.b32.xlu0 %v2577, 64
        %v2690 = vpop.permute.xlu0 %2689
        %2691 = vrot.lane.b32.xlu0 %v2581, 64
        %v2692 = vpop.permute.xlu0 %2691
        %2693 = vrot.lane.b32.xlu0 %v2587, 64
        %v2694 = vpop.permute.xlu0 %2693
        %2695 = vrot.lane.b32.xlu0 %v2591, 64
        %v2696 = vpop.permute.xlu0 %2695
        %2697 = vrot.lane.b32.xlu0 %v2597, 64
        %v2698 = vpop.permute.xlu0 %2697
        %2699 = vrot.lane.b32.xlu0 %v2601, 64
        %v2700 = vpop.permute.xlu0 %2699
        %2709 = vrot.lane.b32.xlu0 %v2567, 48
        %v2710 = vpop.permute.xlu0 %2709
        %2711 = vrot.lane.b32.xlu0 %v2571, 48
        %v2712 = vpop.permute.xlu0 %2711
        %2713 = vrot.lane.b32.xlu0 %v2577, 48
        %v2714 = vpop.permute.xlu0 %2713
        %2715 = vrot.lane.b32.xlu0 %v2581, 48
        %v2716 = vpop.permute.xlu0 %2715
        %2717 = vrot.lane.b32.xlu0 %v2587, 48
        %v2718 = vpop.permute.xlu0 %2717
        %2719 = vrot.lane.b32.xlu0 %v2591, 48
        %v2720 = vpop.permute.xlu0 %2719
        %2721 = vrot.lane.b32.xlu0 %v2597, 48
        %v2722 = vpop.permute.xlu0 %2721
        %2723 = vrot.lane.b32.xlu0 %v2601, 48
        %v2724 = vpop.permute.xlu0 %2723
        %2733 = vrot.lane.b32.xlu0 %v2567, 32
        %v2734 = vpop.permute.xlu0 %2733
        %2735 = vrot.lane.b32.xlu0 %v2571, 32
        %v2736 = vpop.permute.xlu0 %2735
        %2737 = vrot.lane.b32.xlu0 %v2577, 32
        %v2738 = vpop.permute.xlu0 %2737
        %2739 = vrot.lane.b32.xlu0 %v2581, 32
        %v2740 = vpop.permute.xlu0 %2739
        %2741 = vrot.lane.b32.xlu0 %v2587, 32
        %v2742 = vpop.permute.xlu0 %2741
        %2743 = vrot.lane.b32.xlu0 %v2591, 32
        %v2744 = vpop.permute.xlu0 %2743
        %2745 = vrot.lane.b32.xlu0 %v2597, 32
        %v2746 = vpop.permute.xlu0 %2745
        %2747 = vrot.lane.b32.xlu0 %v2601, 32
        %v2748 = vpop.permute.xlu0 %2747
        %2757 = vrot.lane.b32.xlu0 %v2567, 16
        %v2758 = vpop.permute.xlu0 %2757
        %2759 = vrot.lane.b32.xlu0 %v2571, 16
        %v2760 = vpop.permute.xlu0 %2759
        %2761 = vrot.lane.b32.xlu0 %v2577, 16
        %v2762 = vpop.permute.xlu0 %2761
        %2763 = vrot.lane.b32.xlu0 %v2581, 16
        %v2764 = vpop.permute.xlu0 %2763
        %2765 = vrot.lane.b32.xlu0 %v2587, 16
        %v2766 = vpop.permute.xlu0 %2765
        %2767 = vrot.lane.b32.xlu0 %v2591, 16
        %v2768 = vpop.permute.xlu0 %2767
        %2769 = vrot.lane.b32.xlu0 %v2597, 16
        %v2770 = vpop.permute.xlu0 %2769
        %2771 = vrot.lane.b32.xlu0 %v2601, 16
        %v2772 = vpop.permute.xlu0 %2771
        %2789 = vrot.lane.b32.xlu0 %v2569, 112
        %v2790 = vpop.permute.xlu0 %2789
        %2791 = vrot.lane.b32.xlu0 %v2573, 112
        %v2792 = vpop.permute.xlu0 %2791
        %2793 = vrot.lane.b32.xlu0 %v2579, 112
        %v2794 = vpop.permute.xlu0 %2793
        %2795 = vrot.lane.b32.xlu0 %v2583, 112
        %v2796 = vpop.permute.xlu0 %2795
        %2797 = vrot.lane.b32.xlu0 %v2589, 112
        %v2798 = vpop.permute.xlu0 %2797
        %2799 = vrot.lane.b32.xlu0 %v2593, 112
        %v2800 = vpop.permute.xlu0 %2799
        %2801 = vrot.lane.b32.xlu0 %v2599, 112
        %v2802 = vpop.permute.xlu0 %2801
        %2803 = vrot.lane.b32.xlu0 %v2603, 112
        %v2804 = vpop.permute.xlu0 %2803
        %2813 = vrot.lane.b32.xlu0 %v2569, 96
        %v2814 = vpop.permute.xlu0 %2813
        %2815 = vrot.lane.b32.xlu0 %v2573, 96
        %v2816 = vpop.permute.xlu0 %2815
        %2817 = vrot.lane.b32.xlu0 %v2579, 96
        %v2818 = vpop.permute.xlu0 %2817
        %2819 = vrot.lane.b32.xlu0 %v2583, 96
        %v2820 = vpop.permute.xlu0 %2819
        %2821 = vrot.lane.b32.xlu0 %v2589, 96
        %v2822 = vpop.permute.xlu0 %2821
        %2823 = vrot.lane.b32.xlu0 %v2593, 96
        %v2824 = vpop.permute.xlu0 %2823
        %2825 = vrot.lane.b32.xlu0 %v2599, 96
        %v2826 = vpop.permute.xlu0 %2825
        %2827 = vrot.lane.b32.xlu0 %v2603, 96
        %v2828 = vpop.permute.xlu0 %2827
        %2837 = vrot.lane.b32.xlu0 %v2569, 80
        %v2838 = vpop.permute.xlu0 %2837
        %2839 = vrot.lane.b32.xlu0 %v2573, 80
        %v2840 = vpop.permute.xlu0 %2839
        %2841 = vrot.lane.b32.xlu0 %v2579, 80
        %v2842 = vpop.permute.xlu0 %2841
        %2843 = vrot.lane.b32.xlu0 %v2583, 80
        %v2844 = vpop.permute.xlu0 %2843
        %2845 = vrot.lane.b32.xlu0 %v2589, 80
        %v2846 = vpop.permute.xlu0 %2845
        %2847 = vrot.lane.b32.xlu0 %v2593, 80
        %v2848 = vpop.permute.xlu0 %2847
        %2849 = vrot.lane.b32.xlu0 %v2599, 80
        %v2850 = vpop.permute.xlu0 %2849
        %2851 = vrot.lane.b32.xlu0 %v2603, 80
        %v2852 = vpop.permute.xlu0 %2851
        %v2861 = vpack.c.bf16 %v2571, %v2567
        %v2862 = vpack.c.bf16 %v2581, %v2577
        %v2863 = vpack.c.bf16 %v2591, %v2587
        %v2864 = vpack.c.bf16 %v2601, %v2597
        %v2865 = vpack.c.bf16 %v2616, %v2614
        %v2866 = vpack.c.bf16 %v2620, %v2618
        %v2867 = vpack.c.bf16 %v2624, %v2622
        %v2868 = vpack.c.bf16 %v2628, %v2626
        %v2869 = vpack.c.bf16 %v2640, %v2638
        %v2870 = vpack.c.bf16 %v2644, %v2642
        %v2871 = vpack.c.bf16 %v2648, %v2646
        %v2872 = vpack.c.bf16 %v2652, %v2650
        %v2873 = vpack.c.bf16 %v2664, %v2662
        %v2874 = vpack.c.bf16 %v2668, %v2666
        %v2875 = vpack.c.bf16 %v2672, %v2670
        %v2876 = vpack.c.bf16 %v2676, %v2674
        %v2877 = vpack.c.bf16 %v2688, %v2686
        %v2878 = vpack.c.bf16 %v2692, %v2690
        %v2879 = vpack.c.bf16 %v2696, %v2694
        %v2880 = vpack.c.bf16 %v2700, %v2698
        %v2881 = vpack.c.bf16 %v2712, %v2710
        %v2882 = vpack.c.bf16 %v2716, %v2714
        %v2883 = vpack.c.bf16 %v2720, %v2718
        %v2884 = vpack.c.bf16 %v2724, %v2722
        %v2885 = vpack.c.bf16 %v2736, %v2734
        %v2886 = vpack.c.bf16 %v2740, %v2738
        %v2887 = vpack.c.bf16 %v2744, %v2742
        %v2888 = vpack.c.bf16 %v2748, %v2746
        %v2889 = vpack.c.bf16 %v2760, %v2758
        %v2890 = vpack.c.bf16 %v2764, %v2762
        %v2891 = vpack.c.bf16 %v2768, %v2766
        %v2892 = vpack.c.bf16 %v2772, %v2770
        %v2894 = vsel %vm746, %v2861, 0
        %v2897 = vsel %vm746, %v2862, 0
        %v2900 = vsel %vm746, %v2877, 0
        %v2903 = vsel %vm746, %v2878, 0
        %2905 = vmatprep.subr.bf16.mxu0 0
        %2906 = vmatpush1.bf16.xpose.msra.mxu0 0
        %2907 = vmatprep.subr.bf16.mxu0 0
        %2908 = vmatpush1.bf16.xpose.msra.mxu0 0
        %2909 = vmatprep.subr.bf16.mxu0 0
        %2910 = vmatpush1.bf16.xpose.msra.mxu0 0
        %2911 = vmatprep.subr.bf16.mxu0 0
        %2912 = vmatpush1.bf16.xpose.msra.mxu0 0
        %2913 = vmatprep.subr.bf16.mxu0 0
        %2914 = vmatpush1.bf16.xpose.msra.mxu0 0
        %2915 = vmatprep.subr.bf16.mxu0 0
        %2916 = vmatpush1.bf16.xpose.msra.mxu0 0
        %2917 = vmatprep.subr.bf16.mxu0 0
        %2918 = vmatpush1.bf16.xpose.msra.mxu0 %v2903
        %2919 = vmatprep.subr.bf16.mxu0 0
        %2920 = vmatpush1.bf16.xpose.msra.mxu0 %v2900
        %2921 = vmatprep.subr.bf16.mxu0 0
        %2922 = vmatpush2.bf16.xpose.msra.mxu0 0
        %2923 = vmatprep.subr.bf16.mxu0 0
        %2924 = vmatpush2.bf16.xpose.msra.mxu0 0
        %2925 = vmatprep.subr.bf16.mxu0 0
        %2926 = vmatpush2.bf16.xpose.msra.mxu0 0
        %2927 = vmatprep.subr.bf16.mxu0 0
        %2928 = vmatpush2.bf16.xpose.msra.mxu0 0
        %2929 = vmatprep.subr.bf16.mxu0 0
        %2930 = vmatpush2.bf16.xpose.msra.mxu0 0
        %2931 = vmatprep.subr.bf16.mxu0 0
        %2932 = vmatpush2.bf16.xpose.msra.mxu0 0
        %2933 = vmatprep.subr.bf16.mxu0 0
        %2934 = vmatpush2.bf16.xpose.msra.mxu0 0
        %2935 = vmatprep.subr.bf16.mxu0 0
        %2936 = vmatpush2.bf16.xpose.msra.mxu0 0
        %2937 = vmatprep.mubr.bf16.mxu0 0
        %2938 = vmatmul.mubr.bf16.gmra.mxu0 %v2894
        %v2939 = vpop.f32.mrf.mxu0
        %v2940 = vadd.f32 0.0, %v2939
        %v2941 = vpop.f32.mrf.mxu0
        %v2942 = vpop.f32.mrf.mxu0
        %v2943 = vadd.f32 0.0, %v2942
        %v2944 = vpop.f32.mrf.mxu0
        %2945 = vmatprep.mubr.bf16.mxu0 0
        %2946 = vmatmul.mubr.bf16.gmra.mxu0 %v2897
        %v2947 = vpop.f32.mrf.mxu0
        %v2948 = vadd.f32 0.0, %v2947
        %v2949 = vpop.f32.mrf.mxu0
        %v2950 = vpop.f32.mrf.mxu0
        %v2951 = vadd.f32 0.0, %v2950
        %v2952 = vpop.f32.mrf.mxu0
        %2953 = vdwg.mxu0
        %v2955 = vsel %vm746, %v2863, 0
        %v2958 = vsel %vm746, %v2864, 0
        %v2961 = vsel %vm746, %v2879, 0
        %v2964 = vsel %vm746, %v2880, 0
        %2966 = vmatprep.subr.bf16.mxu0 0
        %2967 = vmatpush1.bf16.xpose.msra.mxu0 0
        %2968 = vmatprep.subr.bf16.mxu0 0
        %2969 = vmatpush1.bf16.xpose.msra.mxu0 0
        %2970 = vmatprep.subr.bf16.mxu0 0
        %2971 = vmatpush1.bf16.xpose.msra.mxu0 0
        %2972 = vmatprep.subr.bf16.mxu0 0
        %2973 = vmatpush1.bf16.xpose.msra.mxu0 0
        %2974 = vmatprep.subr.bf16.mxu0 0
        %2975 = vmatpush1.bf16.xpose.msra.mxu0 0
        %2976 = vmatprep.subr.bf16.mxu0 0
        %2977 = vmatpush1.bf16.xpose.msra.mxu0 0
        %2978 = vmatprep.subr.bf16.mxu0 0
        %2979 = vmatpush1.bf16.xpose.msra.mxu0 %v2964
        %2980 = vmatprep.subr.bf16.mxu0 0
        %2981 = vmatpush1.bf16.xpose.msra.mxu0 %v2961
        %2982 = vmatprep.subr.bf16.mxu0 0
        %2983 = vmatpush2.bf16.xpose.msra.mxu0 0
        %2984 = vmatprep.subr.bf16.mxu0 0
        %2985 = vmatpush2.bf16.xpose.msra.mxu0 0
        %2986 = vmatprep.subr.bf16.mxu0 0
        %2987 = vmatpush2.bf16.xpose.msra.mxu0 0
        %2988 = vmatprep.subr.bf16.mxu0 0
        %2989 = vmatpush2.bf16.xpose.msra.mxu0 0
        %2990 = vmatprep.subr.bf16.mxu0 0
        %2991 = vmatpush2.bf16.xpose.msra.mxu0 0
        %2992 = vmatprep.subr.bf16.mxu0 0
        %2993 = vmatpush2.bf16.xpose.msra.mxu0 0
        %2994 = vmatprep.subr.bf16.mxu0 0
        %2995 = vmatpush2.bf16.xpose.msra.mxu0 0
        %2996 = vmatprep.subr.bf16.mxu0 0
        %2997 = vmatpush2.bf16.xpose.msra.mxu0 0
        %2998 = vmatprep.mubr.bf16.mxu0 0
        %2999 = vmatmul.mubr.bf16.gmra.mxu0 %v2955
        %v3000 = vpop.f32.mrf.mxu0
        %v3001 = vadd.f32 0.0, %v3000
        %v3002 = vpop.f32.mrf.mxu0
        %v3003 = vpop.f32.mrf.mxu0
        %v3004 = vadd.f32 0.0, %v3003
        %v3005 = vpop.f32.mrf.mxu0
        %3006 = vmatprep.mubr.bf16.mxu0 0
        %3007 = vmatmul.mubr.bf16.gmra.mxu0 %v2958
        %v3008 = vpop.f32.mrf.mxu0
        %v3009 = vadd.f32 0.0, %v3008
        %v3010 = vpop.f32.mrf.mxu0
        %v3011 = vpop.f32.mrf.mxu0
        %v3012 = vadd.f32 0.0, %v3011
        %v3013 = vpop.f32.mrf.mxu0
        %3014 = vdwg.mxu0
        %v3016 = vsel %vm746, %v2865, 0
        %v3019 = vsel %vm746, %v2866, 0
        %v3022 = vsel %vm746, %v2881, 0
        %v3025 = vsel %vm746, %v2882, 0
        %3027 = vmatprep.subr.bf16.mxu0 0
        %3028 = vmatpush1.bf16.xpose.msra.mxu0 0
        %3029 = vmatprep.subr.bf16.mxu0 0
        %3030 = vmatpush1.bf16.xpose.msra.mxu0 0
        %3031 = vmatprep.subr.bf16.mxu0 0
        %3032 = vmatpush1.bf16.xpose.msra.mxu0 0
        %3033 = vmatprep.subr.bf16.mxu0 0
        %3034 = vmatpush1.bf16.xpose.msra.mxu0 0
        %3035 = vmatprep.subr.bf16.mxu0 0
        %3036 = vmatpush1.bf16.xpose.msra.mxu0 0
        %3037 = vmatprep.subr.bf16.mxu0 0
        %3038 = vmatpush1.bf16.xpose.msra.mxu0 0
        %3039 = vmatprep.subr.bf16.mxu0 0
        %3040 = vmatpush1.bf16.xpose.msra.mxu0 %v3025
        %3041 = vmatprep.subr.bf16.mxu0 0
        %3042 = vmatpush1.bf16.xpose.msra.mxu0 %v3022
        %3043 = vmatprep.subr.bf16.mxu0 0
        %3044 = vmatpush2.bf16.xpose.msra.mxu0 0
        %3045 = vmatprep.subr.bf16.mxu0 0
        %3046 = vmatpush2.bf16.xpose.msra.mxu0 0
        %3047 = vmatprep.subr.bf16.mxu0 0
        %3048 = vmatpush2.bf16.xpose.msra.mxu0 0
        %3049 = vmatprep.subr.bf16.mxu0 0
        %3050 = vmatpush2.bf16.xpose.msra.mxu0 0
        %3051 = vmatprep.subr.bf16.mxu0 0
        %3052 = vmatpush2.bf16.xpose.msra.mxu0 0
        %3053 = vmatprep.subr.bf16.mxu0 0
        %3054 = vmatpush2.bf16.xpose.msra.mxu0 0
        %3055 = vmatprep.subr.bf16.mxu0 0
        %3056 = vmatpush2.bf16.xpose.msra.mxu0 0
        %3057 = vmatprep.subr.bf16.mxu0 0
        %3058 = vmatpush2.bf16.xpose.msra.mxu0 0
        %3059 = vmatprep.mubr.bf16.mxu0 0
        %3060 = vmatmul.mubr.bf16.gmra.mxu0 %v3016
        %v3061 = vpop.f32.mrf.mxu0
        %v3062 = vadd.f32 0.0, %v3061
        %v3063 = vpop.f32.mrf.mxu0
        %v3064 = vpop.f32.mrf.mxu0
        %v3065 = vadd.f32 0.0, %v3064
        %v3066 = vpop.f32.mrf.mxu0
        %3067 = vmatprep.mubr.bf16.mxu0 0
        %3068 = vmatmul.mubr.bf16.gmra.mxu0 %v3019
        %v3069 = vpop.f32.mrf.mxu0
        %v3070 = vadd.f32 0.0, %v3069
        %v3071 = vpop.f32.mrf.mxu0
        %v3072 = vpop.f32.mrf.mxu0
        %v3073 = vadd.f32 0.0, %v3072
        %v3074 = vpop.f32.mrf.mxu0
        %3075 = vdwg.mxu0
        %v3077 = vsel %vm746, %v2867, 0
        %v3080 = vsel %vm746, %v2868, 0
        %v3083 = vsel %vm746, %v2883, 0
        %v3086 = vsel %vm746, %v2884, 0
        %3088 = vmatprep.subr.bf16.mxu0 0
        %3089 = vmatpush1.bf16.xpose.msra.mxu0 0
        %3090 = vmatprep.subr.bf16.mxu0 0
        %3091 = vmatpush1.bf16.xpose.msra.mxu0 0
        %3092 = vmatprep.subr.bf16.mxu0 0
        %3093 = vmatpush1.bf16.xpose.msra.mxu0 0
        %3094 = vmatprep.subr.bf16.mxu0 0
        %3095 = vmatpush1.bf16.xpose.msra.mxu0 0
        %3096 = vmatprep.subr.bf16.mxu0 0
        %3097 = vmatpush1.bf16.xpose.msra.mxu0 0
        %3098 = vmatprep.subr.bf16.mxu0 0
        %3099 = vmatpush1.bf16.xpose.msra.mxu0 0
        %3100 = vmatprep.subr.bf16.mxu0 0
        %3101 = vmatpush1.bf16.xpose.msra.mxu0 %v3086
        %3102 = vmatprep.subr.bf16.mxu0 0
        %3103 = vmatpush1.bf16.xpose.msra.mxu0 %v3083
        %3104 = vmatprep.subr.bf16.mxu0 0
        %3105 = vmatpush2.bf16.xpose.msra.mxu0 0
        %3106 = vmatprep.subr.bf16.mxu0 0
        %3107 = vmatpush2.bf16.xpose.msra.mxu0 0
        %3108 = vmatprep.subr.bf16.mxu0 0
        %3109 = vmatpush2.bf16.xpose.msra.mxu0 0
        %3110 = vmatprep.subr.bf16.mxu0 0
        %3111 = vmatpush2.bf16.xpose.msra.mxu0 0
        %3112 = vmatprep.subr.bf16.mxu0 0
        %3113 = vmatpush2.bf16.xpose.msra.mxu0 0
        %3114 = vmatprep.subr.bf16.mxu0 0
        %3115 = vmatpush2.bf16.xpose.msra.mxu0 0
        %3116 = vmatprep.subr.bf16.mxu0 0
        %3117 = vmatpush2.bf16.xpose.msra.mxu0 0
        %3118 = vmatprep.subr.bf16.mxu0 0
        %3119 = vmatpush2.bf16.xpose.msra.mxu0 0
        %3120 = vmatprep.mubr.bf16.mxu0 0
        %3121 = vmatmul.mubr.bf16.gmra.mxu0 %v3077
        %v3122 = vpop.f32.mrf.mxu0
        %v3123 = vadd.f32 0.0, %v3122
        %v3124 = vpop.f32.mrf.mxu0
        %v3125 = vpop.f32.mrf.mxu0
        %v3126 = vadd.f32 0.0, %v3125
        %v3127 = vpop.f32.mrf.mxu0
        %3128 = vmatprep.mubr.bf16.mxu0 0
        %3129 = vmatmul.mubr.bf16.gmra.mxu0 %v3080
        %v3130 = vpop.f32.mrf.mxu0
        %v3131 = vadd.f32 0.0, %v3130
        %v3132 = vpop.f32.mrf.mxu0
        %v3133 = vpop.f32.mrf.mxu0
        %v3134 = vadd.f32 0.0, %v3133
        %v3135 = vpop.f32.mrf.mxu0
        %3136 = vdwg.mxu0
        %v3138 = vsel %vm746, %v2869, 0
        %v3141 = vsel %vm746, %v2870, 0
        %v3144 = vsel %vm746, %v2885, 0
        %v3147 = vsel %vm746, %v2886, 0
        %3149 = vmatprep.subr.bf16.mxu0 0
        %3150 = vmatpush1.bf16.xpose.msra.mxu0 0
        %3151 = vmatprep.subr.bf16.mxu0 0
        %3152 = vmatpush1.bf16.xpose.msra.mxu0 0
        %3153 = vmatprep.subr.bf16.mxu0 0
        %3154 = vmatpush1.bf16.xpose.msra.mxu0 0
        %3155 = vmatprep.subr.bf16.mxu0 0
        %3156 = vmatpush1.bf16.xpose.msra.mxu0 0
        %3157 = vmatprep.subr.bf16.mxu0 0
        %3158 = vmatpush1.bf16.xpose.msra.mxu0 0
        %3159 = vmatprep.subr.bf16.mxu0 0
        %3160 = vmatpush1.bf16.xpose.msra.mxu0 0
        %3161 = vmatprep.subr.bf16.mxu0 0
        %3162 = vmatpush1.bf16.xpose.msra.mxu0 %v3147
        %3163 = vmatprep.subr.bf16.mxu0 0
        %3164 = vmatpush1.bf16.xpose.msra.mxu0 %v3144
        %3165 = vmatprep.subr.bf16.mxu0 0
        %3166 = vmatpush2.bf16.xpose.msra.mxu0 0
        %3167 = vmatprep.subr.bf16.mxu0 0
        %3168 = vmatpush2.bf16.xpose.msra.mxu0 0
        %3169 = vmatprep.subr.bf16.mxu0 0
        %3170 = vmatpush2.bf16.xpose.msra.mxu0 0
        %3171 = vmatprep.subr.bf16.mxu0 0
        %3172 = vmatpush2.bf16.xpose.msra.mxu0 0
        %3173 = vmatprep.subr.bf16.mxu0 0
        %3174 = vmatpush2.bf16.xpose.msra.mxu0 0
        %3175 = vmatprep.subr.bf16.mxu0 0
        %3176 = vmatpush2.bf16.xpose.msra.mxu0 0
        %3177 = vmatprep.subr.bf16.mxu0 0
        %3178 = vmatpush2.bf16.xpose.msra.mxu0 0
        %3179 = vmatprep.subr.bf16.mxu0 0
        %3180 = vmatpush2.bf16.xpose.msra.mxu0 0
        %3181 = vmatprep.mubr.bf16.mxu0 0
        %3182 = vmatmul.mubr.bf16.gmra.mxu0 %v3138
        %v3183 = vpop.f32.mrf.mxu0
        %v3184 = vadd.f32 0.0, %v3183
        %v3185 = vpop.f32.mrf.mxu0
        %v3186 = vpop.f32.mrf.mxu0
        %v3187 = vadd.f32 0.0, %v3186
        %v3188 = vpop.f32.mrf.mxu0
        %3189 = vmatprep.mubr.bf16.mxu0 0
        %3190 = vmatmul.mubr.bf16.gmra.mxu0 %v3141
        %v3191 = vpop.f32.mrf.mxu0
        %v3192 = vadd.f32 0.0, %v3191
        %v3193 = vpop.f32.mrf.mxu0
        %v3194 = vpop.f32.mrf.mxu0
        %v3195 = vadd.f32 0.0, %v3194
        %v3196 = vpop.f32.mrf.mxu0
        %3197 = vdwg.mxu0
        %v3199 = vsel %vm746, %v2871, 0
        %v3202 = vsel %vm746, %v2872, 0
        %v3205 = vsel %vm746, %v2887, 0
        %v3208 = vsel %vm746, %v2888, 0
        %3210 = vmatprep.subr.bf16.mxu0 0
        %3211 = vmatpush1.bf16.xpose.msra.mxu0 0
        %3212 = vmatprep.subr.bf16.mxu0 0
        %3213 = vmatpush1.bf16.xpose.msra.mxu0 0
        %3214 = vmatprep.subr.bf16.mxu0 0
        %3215 = vmatpush1.bf16.xpose.msra.mxu0 0
        %3216 = vmatprep.subr.bf16.mxu0 0
        %3217 = vmatpush1.bf16.xpose.msra.mxu0 0
        %3218 = vmatprep.subr.bf16.mxu0 0
        %3219 = vmatpush1.bf16.xpose.msra.mxu0 0
        %3220 = vmatprep.subr.bf16.mxu0 0
        %3221 = vmatpush1.bf16.xpose.msra.mxu0 0
        %3222 = vmatprep.subr.bf16.mxu0 0
        %3223 = vmatpush1.bf16.xpose.msra.mxu0 %v3208
        %3224 = vmatprep.subr.bf16.mxu0 0
        %3225 = vmatpush1.bf16.xpose.msra.mxu0 %v3205
        %3226 = vmatprep.subr.bf16.mxu0 0
        %3227 = vmatpush2.bf16.xpose.msra.mxu0 0
        %3228 = vmatprep.subr.bf16.mxu0 0
        %3229 = vmatpush2.bf16.xpose.msra.mxu0 0
        %3230 = vmatprep.subr.bf16.mxu0 0
        %3231 = vmatpush2.bf16.xpose.msra.mxu0 0
        %3232 = vmatprep.subr.bf16.mxu0 0
        %3233 = vmatpush2.bf16.xpose.msra.mxu0 0
        %3234 = vmatprep.subr.bf16.mxu0 0
        %3235 = vmatpush2.bf16.xpose.msra.mxu0 0
        %3236 = vmatprep.subr.bf16.mxu0 0
        %3237 = vmatpush2.bf16.xpose.msra.mxu0 0
        %3238 = vmatprep.subr.bf16.mxu0 0
        %3239 = vmatpush2.bf16.xpose.msra.mxu0 0
        %3240 = vmatprep.subr.bf16.mxu0 0
        %3241 = vmatpush2.bf16.xpose.msra.mxu0 0
        %3242 = vmatprep.mubr.bf16.mxu0 0
        %3243 = vmatmul.mubr.bf16.gmra.mxu0 %v3199
        %v3244 = vpop.f32.mrf.mxu0
        %v3245 = vadd.f32 0.0, %v3244
        %v3246 = vpop.f32.mrf.mxu0
        %v3247 = vpop.f32.mrf.mxu0
        %v3248 = vadd.f32 0.0, %v3247
        %v3249 = vpop.f32.mrf.mxu0
        %3250 = vmatprep.mubr.bf16.mxu0 0
        %3251 = vmatmul.mubr.bf16.gmra.mxu0 %v3202
        %v3252 = vpop.f32.mrf.mxu0
        %v3253 = vadd.f32 0.0, %v3252
        %v3254 = vpop.f32.mrf.mxu0
        %v3255 = vpop.f32.mrf.mxu0
        %v3256 = vadd.f32 0.0, %v3255
        %v3257 = vpop.f32.mrf.mxu0
        %3258 = vdwg.mxu0
        %v3260 = vsel %vm746, %v2873, 0
        %v3263 = vsel %vm746, %v2874, 0
        %v3266 = vsel %vm746, %v2889, 0
        %v3269 = vsel %vm746, %v2890, 0
        %3271 = vmatprep.subr.bf16.mxu0 0
        %3272 = vmatpush1.bf16.xpose.msra.mxu0 0
        %3273 = vmatprep.subr.bf16.mxu0 0
        %3274 = vmatpush1.bf16.xpose.msra.mxu0 0
        %3275 = vmatprep.subr.bf16.mxu0 0
        %3276 = vmatpush1.bf16.xpose.msra.mxu0 0
        %3277 = vmatprep.subr.bf16.mxu0 0
        %3278 = vmatpush1.bf16.xpose.msra.mxu0 0
        %3279 = vmatprep.subr.bf16.mxu0 0
        %3280 = vmatpush1.bf16.xpose.msra.mxu0 0
        %3281 = vmatprep.subr.bf16.mxu0 0
        %3282 = vmatpush1.bf16.xpose.msra.mxu0 0
        %3283 = vmatprep.subr.bf16.mxu0 0
        %3284 = vmatpush1.bf16.xpose.msra.mxu0 %v3269
        %3285 = vmatprep.subr.bf16.mxu0 0
        %3286 = vmatpush1.bf16.xpose.msra.mxu0 %v3266
        %3287 = vmatprep.subr.bf16.mxu0 0
        %3288 = vmatpush2.bf16.xpose.msra.mxu0 0
        %3289 = vmatprep.subr.bf16.mxu0 0
        %3290 = vmatpush2.bf16.xpose.msra.mxu0 0
        %3291 = vmatprep.subr.bf16.mxu0 0
        %3292 = vmatpush2.bf16.xpose.msra.mxu0 0
        %3293 = vmatprep.subr.bf16.mxu0 0
        %3294 = vmatpush2.bf16.xpose.msra.mxu0 0
        %3295 = vmatprep.subr.bf16.mxu0 0
        %3296 = vmatpush2.bf16.xpose.msra.mxu0 0
        %3297 = vmatprep.subr.bf16.mxu0 0
        %3298 = vmatpush2.bf16.xpose.msra.mxu0 0
        %3299 = vmatprep.subr.bf16.mxu0 0
        %3300 = vmatpush2.bf16.xpose.msra.mxu0 0
        %3301 = vmatprep.subr.bf16.mxu0 0
        %3302 = vmatpush2.bf16.xpose.msra.mxu0 0
        %3303 = vmatprep.mubr.bf16.mxu0 0
        %3304 = vmatmul.mubr.bf16.gmra.mxu0 %v3260
        %v3305 = vpop.f32.mrf.mxu0
        %v3306 = vadd.f32 0.0, %v3305
        %v3307 = vpop.f32.mrf.mxu0
        %v3308 = vpop.f32.mrf.mxu0
        %v3309 = vadd.f32 0.0, %v3308
        %v3310 = vpop.f32.mrf.mxu0
        %3311 = vmatprep.mubr.bf16.mxu0 0
        %3312 = vmatmul.mubr.bf16.gmra.mxu0 %v3263
        %v3313 = vpop.f32.mrf.mxu0
        %v3314 = vadd.f32 0.0, %v3313
        %v3315 = vpop.f32.mrf.mxu0
        %v3316 = vpop.f32.mrf.mxu0
        %v3317 = vadd.f32 0.0, %v3316
        %v3318 = vpop.f32.mrf.mxu0
        %3319 = vdwg.mxu0
        %v3321 = vsel %vm746, %v2875, 0
        %v3324 = vsel %vm746, %v2876, 0
        %v3327 = vsel %vm746, %v2891, 0
        %v3330 = vsel %vm746, %v2892, 0
        %3332 = vmatprep.subr.bf16.mxu0 0
        %3333 = vmatpush1.bf16.xpose.msra.mxu0 0
        %3334 = vmatprep.subr.bf16.mxu0 0
        %3335 = vmatpush1.bf16.xpose.msra.mxu0 0
        %3336 = vmatprep.subr.bf16.mxu0 0
        %3337 = vmatpush1.bf16.xpose.msra.mxu0 0
        %3338 = vmatprep.subr.bf16.mxu0 0
        %3339 = vmatpush1.bf16.xpose.msra.mxu0 0
        %3340 = vmatprep.subr.bf16.mxu0 0
        %3341 = vmatpush1.bf16.xpose.msra.mxu0 0
        %3342 = vmatprep.subr.bf16.mxu0 0
        %3343 = vmatpush1.bf16.xpose.msra.mxu0 0
        %3344 = vmatprep.subr.bf16.mxu0 0
        %3345 = vmatpush1.bf16.xpose.msra.mxu0 %v3330
        %3346 = vmatprep.subr.bf16.mxu0 0
        %3347 = vmatpush1.bf16.xpose.msra.mxu0 %v3327
        %3348 = vmatprep.subr.bf16.mxu0 0
        %3349 = vmatpush2.bf16.xpose.msra.mxu0 0
        %3350 = vmatprep.subr.bf16.mxu0 0
        %3351 = vmatpush2.bf16.xpose.msra.mxu0 0
        %3352 = vmatprep.subr.bf16.mxu0 0
        %3353 = vmatpush2.bf16.xpose.msra.mxu0 0
        %3354 = vmatprep.subr.bf16.mxu0 0
        %3355 = vmatpush2.bf16.xpose.msra.mxu0 0
        %3356 = vmatprep.subr.bf16.mxu0 0
        %3357 = vmatpush2.bf16.xpose.msra.mxu0 0
        %3358 = vmatprep.subr.bf16.mxu0 0
        %3359 = vmatpush2.bf16.xpose.msra.mxu0 0
        %3360 = vmatprep.subr.bf16.mxu0 0
        %3361 = vmatpush2.bf16.xpose.msra.mxu0 0
        %3362 = vmatprep.subr.bf16.mxu0 0
        %3363 = vmatpush2.bf16.xpose.msra.mxu0 0
        %3364 = vmatprep.mubr.bf16.mxu0 0
        %3365 = vmatmul.mubr.bf16.gmra.mxu0 %v3321
        %v3366 = vpop.f32.mrf.mxu0
        %v3367 = vadd.f32 0.0, %v3366
        %v3368 = vpop.f32.mrf.mxu0
        %v3369 = vpop.f32.mrf.mxu0
        %v3370 = vadd.f32 0.0, %v3369
        %v3371 = vpop.f32.mrf.mxu0
        %3372 = vmatprep.mubr.bf16.mxu0 0
        %3373 = vmatmul.mubr.bf16.gmra.mxu0 %v3324
        %v3374 = vpop.f32.mrf.mxu0
        %v3375 = vadd.f32 0.0, %v3374
        %v3376 = vpop.f32.mrf.mxu0
        %v3377 = vpop.f32.mrf.mxu0
        %v3378 = vadd.f32 0.0, %v3377
        %v3379 = vpop.f32.mrf.mxu0
        %3380 = vdwg.mxu0
        %v3381 = vsel %vm1235, %v2940, -inf
        %3382 = vmax.xlane.f32.xlu0 %v3381
        %v3383 = vpop.xlane.xlu0 %3382
        %v3384 = vsel %vm1235, %v2943, -inf
        %3385 = vmax.xlane.f32.xlu0 %v3384
        %v3386 = vpop.xlane.xlu0 %3385
        %v3387 = vsel %vm1235, %v2948, -inf
        %3388 = vmax.xlane.f32.xlu0 %v3387
        %v3389 = vpop.xlane.xlu0 %3388
        %v3390 = vsel %vm1235, %v2951, -inf
        %3391 = vmax.xlane.f32.xlu0 %v3390
        %v3392 = vpop.xlane.xlu0 %3391
        %v3393 = vsel %vm1235, %v3001, -inf
        %3394 = vmax.xlane.f32.xlu0 %v3393
        %v3395 = vpop.xlane.xlu0 %3394
        %v3396 = vsel %vm1235, %v3004, -inf
        %3397 = vmax.xlane.f32.xlu0 %v3396
        %v3398 = vpop.xlane.xlu0 %3397
        %v3399 = vsel %vm1235, %v3009, -inf
        %3400 = vmax.xlane.f32.xlu0 %v3399
        %v3401 = vpop.xlane.xlu0 %3400
        %v3402 = vsel %vm1235, %v3012, -inf
        %3403 = vmax.xlane.f32.xlu0 %v3402
        %v3404 = vpop.xlane.xlu0 %3403
        %v3405 = vsel %vm1235, %v3062, -inf
        %3406 = vmax.xlane.f32.xlu0 %v3405
        %v3407 = vpop.xlane.xlu0 %3406
        %v3408 = vsel %vm1235, %v3065, -inf
        %3409 = vmax.xlane.f32.xlu0 %v3408
        %v3410 = vpop.xlane.xlu0 %3409
        %v3411 = vsel %vm1235, %v3070, -inf
        %3412 = vmax.xlane.f32.xlu0 %v3411
        %v3413 = vpop.xlane.xlu0 %3412
        %v3414 = vsel %vm1235, %v3073, -inf
        %3415 = vmax.xlane.f32.xlu0 %v3414
        %v3416 = vpop.xlane.xlu0 %3415
        %v3417 = vsel %vm1235, %v3123, -inf
        %3418 = vmax.xlane.f32.xlu0 %v3417
        %v3419 = vpop.xlane.xlu0 %3418
        %v3420 = vsel %vm1235, %v3126, -inf
        %3421 = vmax.xlane.f32.xlu0 %v3420
        %v3422 = vpop.xlane.xlu0 %3421
        %v3423 = vsel %vm1235, %v3131, -inf
        %3424 = vmax.xlane.f32.xlu0 %v3423
        %v3425 = vpop.xlane.xlu0 %3424
        %v3426 = vsel %vm1235, %v3134, -inf
        %3427 = vmax.xlane.f32.xlu0 %v3426
        %v3428 = vpop.xlane.xlu0 %3427
        %v3429 = vsel %vm1235, %v3184, -inf
        %3430 = vmax.xlane.f32.xlu0 %v3429
        %v3431 = vpop.xlane.xlu0 %3430
        %v3432 = vsel %vm1235, %v3187, -inf
        %3433 = vmax.xlane.f32.xlu0 %v3432
        %v3434 = vpop.xlane.xlu0 %3433
        %v3435 = vsel %vm1235, %v3192, -inf
        %3436 = vmax.xlane.f32.xlu0 %v3435
        %v3437 = vpop.xlane.xlu0 %3436
        %v3438 = vsel %vm1235, %v3195, -inf
        %3439 = vmax.xlane.f32.xlu0 %v3438
        %v3440 = vpop.xlane.xlu0 %3439
        %v3441 = vsel %vm1235, %v3245, -inf
        %3442 = vmax.xlane.f32.xlu0 %v3441
        %v3443 = vpop.xlane.xlu0 %3442
        %v3444 = vsel %vm1235, %v3248, -inf
        %3445 = vmax.xlane.f32.xlu0 %v3444
        %v3446 = vpop.xlane.xlu0 %3445
        %v3447 = vsel %vm1235, %v3253, -inf
        %3448 = vmax.xlane.f32.xlu0 %v3447
        %v3449 = vpop.xlane.xlu0 %3448
        %v3450 = vsel %vm1235, %v3256, -inf
        %3451 = vmax.xlane.f32.xlu0 %v3450
        %v3452 = vpop.xlane.xlu0 %3451
        %v3453 = vsel %vm1235, %v3306, -inf
        %3454 = vmax.xlane.f32.xlu0 %v3453
        %v3455 = vpop.xlane.xlu0 %3454
        %v3456 = vsel %vm1235, %v3309, -inf
        %3457 = vmax.xlane.f32.xlu0 %v3456
        %v3458 = vpop.xlane.xlu0 %3457
        %v3459 = vsel %vm1235, %v3314, -inf
        %3460 = vmax.xlane.f32.xlu0 %v3459
        %v3461 = vpop.xlane.xlu0 %3460
        %v3462 = vsel %vm1235, %v3317, -inf
        %3463 = vmax.xlane.f32.xlu0 %v3462
        %v3464 = vpop.xlane.xlu0 %3463
        %v3465 = vsel %vm1235, %v3367, -inf
        %3466 = vmax.xlane.f32.xlu0 %v3465
        %v3467 = vpop.xlane.xlu0 %3466
        %v3468 = vsel %vm1235, %v3370, -inf
        %3469 = vmax.xlane.f32.xlu0 %v3468
        %v3470 = vpop.xlane.xlu0 %3469
        %v3471 = vsel %vm1235, %v3375, -inf
        %3472 = vmax.xlane.f32.xlu0 %v3471
        %v3473 = vpop.xlane.xlu0 %3472
        %v3474 = vsel %vm1235, %v3378, -inf
        %3475 = vmax.xlane.f32.xlu0 %v3474
        %v3476 = vpop.xlane.xlu0 %3475
        %v3477 = vsub.f32 %v2940, %v3383
        %v3478 = vsub.f32 %v2943, %v3386
        %v3479 = vsub.f32 %v2948, %v3389
        %v3480 = vsub.f32 %v2951, %v3392
        %v3481 = vsub.f32 %v3001, %v3395
        %v3482 = vsub.f32 %v3004, %v3398
        %v3483 = vsub.f32 %v3009, %v3401
        %v3484 = vsub.f32 %v3012, %v3404
        %v3485 = vsub.f32 %v3062, %v3407
        %v3486 = vsub.f32 %v3065, %v3410
        %v3487 = vsub.f32 %v3070, %v3413
        %v3488 = vsub.f32 %v3073, %v3416
        %v3489 = vsub.f32 %v3123, %v3419
        %v3490 = vsub.f32 %v3126, %v3422
        %v3491 = vsub.f32 %v3131, %v3425
        %v3492 = vsub.f32 %v3134, %v3428
        %v3493 = vsub.f32 %v3184, %v3431
        %v3494 = vsub.f32 %v3187, %v3434
        %v3495 = vsub.f32 %v3192, %v3437
        %v3496 = vsub.f32 %v3195, %v3440
        %v3497 = vsub.f32 %v3245, %v3443
        %v3498 = vsub.f32 %v3248, %v3446
        %v3499 = vsub.f32 %v3253, %v3449
        %v3500 = vsub.f32 %v3256, %v3452
        %v3501 = vsub.f32 %v3306, %v3455
        %v3502 = vsub.f32 %v3309, %v3458
        %v3503 = vsub.f32 %v3314, %v3461
        %v3504 = vsub.f32 %v3317, %v3464
        %v3505 = vsub.f32 %v3367, %v3467
        %v3506 = vsub.f32 %v3370, %v3470
        %v3507 = vsub.f32 %v3375, %v3473
        %v3508 = vsub.f32 %v3378, %v3476
        %v3509 = vmul.f32 %v3477, 1.442695
        %v3510 = vpow.pop %v3509
        %v3511 = vmul.f32 %v3478, 1.442695
        %v3512 = vpow.pop %v3511
        %v3513 = vmul.f32 %v3479, 1.442695
        %v3514 = vpow.pop %v3513
        %v3515 = vmul.f32 %v3480, 1.442695
        %v3516 = vpow.pop %v3515
        %v3517 = vmul.f32 %v3481, 1.442695
        %v3518 = vpow.pop %v3517
        %v3519 = vmul.f32 %v3482, 1.442695
        %v3520 = vpow.pop %v3519
        %v3521 = vmul.f32 %v3483, 1.442695
        %v3522 = vpow.pop %v3521
        %v3523 = vmul.f32 %v3484, 1.442695
        %v3524 = vpow.pop %v3523
        %v3525 = vmul.f32 %v3485, 1.442695
        %v3526 = vpow.pop %v3525
        %v3527 = vmul.f32 %v3486, 1.442695
        %v3528 = vpow.pop %v3527
        %v3529 = vmul.f32 %v3487, 1.442695
        %v3530 = vpow.pop %v3529
        %v3531 = vmul.f32 %v3488, 1.442695
        %v3532 = vpow.pop %v3531
        %v3533 = vmul.f32 %v3489, 1.442695
        %v3534 = vpow.pop %v3533
        %v3535 = vmul.f32 %v3490, 1.442695
        %v3536 = vpow.pop %v3535
        %v3537 = vmul.f32 %v3491, 1.442695
        %v3538 = vpow.pop %v3537
        %v3539 = vmul.f32 %v3492, 1.442695
        %v3540 = vpow.pop %v3539
        %v3541 = vmul.f32 %v3493, 1.442695
        %v3542 = vpow.pop %v3541
        %v3543 = vmul.f32 %v3494, 1.442695
        %v3544 = vpow.pop %v3543
        %v3545 = vmul.f32 %v3495, 1.442695
        %v3546 = vpow.pop %v3545
        %v3547 = vmul.f32 %v3496, 1.442695
        %v3548 = vpow.pop %v3547
        %v3549 = vmul.f32 %v3497, 1.442695
        %v3550 = vpow.pop %v3549
        %v3551 = vmul.f32 %v3498, 1.442695
        %v3552 = vpow.pop %v3551
        %v3553 = vmul.f32 %v3499, 1.442695
        %v3554 = vpow.pop %v3553
        %v3555 = vmul.f32 %v3500, 1.442695
        %v3556 = vpow.pop %v3555
        %v3557 = vmul.f32 %v3501, 1.442695
        %v3558 = vpow.pop %v3557
        %v3559 = vmul.f32 %v3502, 1.442695
        %v3560 = vpow.pop %v3559
        %v3561 = vmul.f32 %v3503, 1.442695
        %v3562 = vpow.pop %v3561
        %v3563 = vmul.f32 %v3504, 1.442695
        %v3564 = vpow.pop %v3563
        %v3565 = vmul.f32 %v3505, 1.442695
        %v3566 = vpow.pop %v3565
        %v3567 = vmul.f32 %v3506, 1.442695
        %v3568 = vpow.pop %v3567
        %v3569 = vmul.f32 %v3507, 1.442695
        %v3570 = vpow.pop %v3569
        %v3571 = vmul.f32 %v3508, 1.442695
        %v3572 = vpow.pop %v3571
        %v3573 = vsel %vm1235, %v3510, 0.0
        %3574 = vadd.xlane.f32.xlu0 %v3573
        %v3575 = vpop.xlane.xlu0 %3574
        %v3576 = vsel %vm1235, %v3512, 0.0
        %3577 = vadd.xlane.f32.xlu0 %v3576
        %v3578 = vpop.xlane.xlu0 %3577
        %v3579 = vsel %vm1235, %v3514, 0.0
        %3580 = vadd.xlane.f32.xlu0 %v3579
        %v3581 = vpop.xlane.xlu0 %3580
        %v3582 = vsel %vm1235, %v3516, 0.0
        %3583 = vadd.xlane.f32.xlu0 %v3582
        %v3584 = vpop.xlane.xlu0 %3583
        %v3585 = vsel %vm1235, %v3518, 0.0
        %3586 = vadd.xlane.f32.xlu0 %v3585
        %v3587 = vpop.xlane.xlu0 %3586
        %v3588 = vsel %vm1235, %v3520, 0.0
        %3589 = vadd.xlane.f32.xlu0 %v3588
        %v3590 = vpop.xlane.xlu0 %3589
        %v3591 = vsel %vm1235, %v3522, 0.0
        %3592 = vadd.xlane.f32.xlu0 %v3591
        %v3593 = vpop.xlane.xlu0 %3592
        %v3594 = vsel %vm1235, %v3524, 0.0
        %3595 = vadd.xlane.f32.xlu0 %v3594
        %v3596 = vpop.xlane.xlu0 %3595
        %v3597 = vsel %vm1235, %v3526, 0.0
        %3598 = vadd.xlane.f32.xlu0 %v3597
        %v3599 = vpop.xlane.xlu0 %3598
        %v3600 = vsel %vm1235, %v3528, 0.0
        %3601 = vadd.xlane.f32.xlu0 %v3600
        %v3602 = vpop.xlane.xlu0 %3601
        %v3603 = vsel %vm1235, %v3530, 0.0
        %3604 = vadd.xlane.f32.xlu0 %v3603
        %v3605 = vpop.xlane.xlu0 %3604
        %v3606 = vsel %vm1235, %v3532, 0.0
        %3607 = vadd.xlane.f32.xlu0 %v3606
        %v3608 = vpop.xlane.xlu0 %3607
        %v3609 = vsel %vm1235, %v3534, 0.0
        %3610 = vadd.xlane.f32.xlu0 %v3609
        %v3611 = vpop.xlane.xlu0 %3610
        %v3612 = vsel %vm1235, %v3536, 0.0
        %3613 = vadd.xlane.f32.xlu0 %v3612
        %v3614 = vpop.xlane.xlu0 %3613
        %v3615 = vsel %vm1235, %v3538, 0.0
        %3616 = vadd.xlane.f32.xlu0 %v3615
        %v3617 = vpop.xlane.xlu0 %3616
        %v3618 = vsel %vm1235, %v3540, 0.0
        %3619 = vadd.xlane.f32.xlu0 %v3618
        %v3620 = vpop.xlane.xlu0 %3619
        %v3621 = vsel %vm1235, %v3542, 0.0
        %3622 = vadd.xlane.f32.xlu0 %v3621
        %v3623 = vpop.xlane.xlu0 %3622
        %v3624 = vsel %vm1235, %v3544, 0.0
        %3625 = vadd.xlane.f32.xlu0 %v3624
        %v3626 = vpop.xlane.xlu0 %3625
        %v3627 = vsel %vm1235, %v3546, 0.0
        %3628 = vadd.xlane.f32.xlu0 %v3627
        %v3629 = vpop.xlane.xlu0 %3628
        %v3630 = vsel %vm1235, %v3548, 0.0
        %3631 = vadd.xlane.f32.xlu0 %v3630
        %v3632 = vpop.xlane.xlu0 %3631
        %v3633 = vsel %vm1235, %v3550, 0.0
        %3634 = vadd.xlane.f32.xlu0 %v3633
        %v3635 = vpop.xlane.xlu0 %3634
        %v3636 = vsel %vm1235, %v3552, 0.0
        %3637 = vadd.xlane.f32.xlu0 %v3636
        %v3638 = vpop.xlane.xlu0 %3637
        %v3639 = vsel %vm1235, %v3554, 0.0
        %3640 = vadd.xlane.f32.xlu0 %v3639
        %v3641 = vpop.xlane.xlu0 %3640
        %v3642 = vsel %vm1235, %v3556, 0.0
        %3643 = vadd.xlane.f32.xlu0 %v3642
        %v3644 = vpop.xlane.xlu0 %3643
        %v3645 = vsel %vm1235, %v3558, 0.0
        %3646 = vadd.xlane.f32.xlu0 %v3645
        %v3647 = vpop.xlane.xlu0 %3646
        %v3648 = vsel %vm1235, %v3560, 0.0
        %3649 = vadd.xlane.f32.xlu0 %v3648
        %v3650 = vpop.xlane.xlu0 %3649
        %v3651 = vsel %vm1235, %v3562, 0.0
        %3652 = vadd.xlane.f32.xlu0 %v3651
        %v3653 = vpop.xlane.xlu0 %3652
        %v3654 = vsel %vm1235, %v3564, 0.0
        %3655 = vadd.xlane.f32.xlu0 %v3654
        %v3656 = vpop.xlane.xlu0 %3655
        %v3657 = vsel %vm1235, %v3566, 0.0
        %3658 = vadd.xlane.f32.xlu0 %v3657
        %v3659 = vpop.xlane.xlu0 %3658
        %v3660 = vsel %vm1235, %v3568, 0.0
        %3661 = vadd.xlane.f32.xlu0 %v3660
        %v3662 = vpop.xlane.xlu0 %3661
        %v3663 = vsel %vm1235, %v3570, 0.0
        %3664 = vadd.xlane.f32.xlu0 %v3663
        %v3665 = vpop.xlane.xlu0 %3664
        %v3666 = vsel %vm1235, %v3572, 0.0
        %3667 = vadd.xlane.f32.xlu0 %v3666
        %v3668 = vpop.xlane.xlu0 %3667
        %v3669 = vrcp.pop %v3575
        %v3670 = vrcp.pop %v3578
        %v3671 = vrcp.pop %v3581
        %v3672 = vrcp.pop %v3584
        %v3673 = vrcp.pop %v3587
        %v3674 = vrcp.pop %v3590
        %v3675 = vrcp.pop %v3593
        %v3676 = vrcp.pop %v3596
        %v3677 = vrcp.pop %v3599
        %v3678 = vrcp.pop %v3602
        %v3679 = vrcp.pop %v3605
        %v3680 = vrcp.pop %v3608
        %v3681 = vrcp.pop %v3611
        %v3682 = vrcp.pop %v3614
        %v3683 = vrcp.pop %v3617
        %v3684 = vrcp.pop %v3620
        %v3685 = vrcp.pop %v3623
        %v3686 = vrcp.pop %v3626
        %v3687 = vrcp.pop %v3629
        %v3688 = vrcp.pop %v3632
        %v3689 = vrcp.pop %v3635
        %v3690 = vrcp.pop %v3638
        %v3691 = vrcp.pop %v3641
        %v3692 = vrcp.pop %v3644
        %v3693 = vrcp.pop %v3647
        %v3694 = vrcp.pop %v3650
        %v3695 = vrcp.pop %v3653
        %v3696 = vrcp.pop %v3656
        %v3697 = vrcp.pop %v3659
        %v3698 = vrcp.pop %v3662
        %v3699 = vrcp.pop %v3665
        %v3700 = vrcp.pop %v3668
        %v3701 = vmul.f32 %v3510, %v3669
        %v3702 = vmul.f32 %v3512, %v3670
        %v3703 = vmul.f32 %v3514, %v3671
        %v3704 = vmul.f32 %v3516, %v3672
        %v3705 = vmul.f32 %v3518, %v3673
        %v3706 = vmul.f32 %v3520, %v3674
        %v3707 = vmul.f32 %v3522, %v3675
        %v3708 = vmul.f32 %v3524, %v3676
        %v3709 = vmul.f32 %v3526, %v3677
        %v3710 = vmul.f32 %v3528, %v3678
        %v3711 = vmul.f32 %v3530, %v3679
        %v3712 = vmul.f32 %v3532, %v3680
        %v3713 = vmul.f32 %v3534, %v3681
        %v3714 = vmul.f32 %v3536, %v3682
        %v3715 = vmul.f32 %v3538, %v3683
        %v3716 = vmul.f32 %v3540, %v3684
        %v3717 = vmul.f32 %v3542, %v3685
        %v3718 = vmul.f32 %v3544, %v3686
        %v3719 = vmul.f32 %v3546, %v3687
        %v3720 = vmul.f32 %v3548, %v3688
        %v3721 = vmul.f32 %v3550, %v3689
        %v3722 = vmul.f32 %v3552, %v3690
        %v3723 = vmul.f32 %v3554, %v3691
        %v3724 = vmul.f32 %v3556, %v3692
        %v3725 = vmul.f32 %v3558, %v3693
        %v3726 = vmul.f32 %v3560, %v3694
        %v3727 = vmul.f32 %v3562, %v3695
        %v3728 = vmul.f32 %v3564, %v3696
        %v3729 = vmul.f32 %v3566, %v3697
        %v3730 = vmul.f32 %v3568, %v3698
        %v3731 = vmul.f32 %v3570, %v3699
        %v3732 = vmul.f32 %v3572, %v3700
        %v3733 = vpack.c.bf16 %v3702, %v3701
        %v3734 = vpack.c.bf16 %v3704, %v3703
        %v3735 = vpack.c.bf16 %v3706, %v3705
        %v3736 = vpack.c.bf16 %v3708, %v3707
        %v3737 = vpack.c.bf16 %v3710, %v3709
        %v3738 = vpack.c.bf16 %v3712, %v3711
        %v3739 = vpack.c.bf16 %v3714, %v3713
        %v3740 = vpack.c.bf16 %v3716, %v3715
        %v3741 = vpack.c.bf16 %v3718, %v3717
        %v3742 = vpack.c.bf16 %v3720, %v3719
        %v3743 = vpack.c.bf16 %v3722, %v3721
        %v3744 = vpack.c.bf16 %v3724, %v3723
        %v3745 = vpack.c.bf16 %v3726, %v3725
        %v3746 = vpack.c.bf16 %v3728, %v3727
        %v3747 = vpack.c.bf16 %v3730, %v3729
        %v3748 = vpack.c.bf16 %v3732, %v3731
        %v3749 = vpack.c.bf16 %v2573, %v2569
        %v3750 = vpack.c.bf16 %v2583, %v2579
        %v3751 = vpack.c.bf16 %v2593, %v2589
        %v3752 = vpack.c.bf16 %v2603, %v2599
        %v3753 = vpack.c.bf16 %v2792, %v2790
        %v3754 = vpack.c.bf16 %v2796, %v2794
        %v3755 = vpack.c.bf16 %v2800, %v2798
        %v3756 = vpack.c.bf16 %v2804, %v2802
        %v3757 = vpack.c.bf16 %v2816, %v2814
        %v3758 = vpack.c.bf16 %v2820, %v2818
        %v3759 = vpack.c.bf16 %v2824, %v2822
        %v3760 = vpack.c.bf16 %v2828, %v2826
        %v3761 = vpack.c.bf16 %v2840, %v2838
        %v3762 = vpack.c.bf16 %v2844, %v2842
        %v3763 = vpack.c.bf16 %v2848, %v2846
        %v3764 = vpack.c.bf16 %v2852, %v2850
        %v3766 = vsel %vm1235, %v3733, 0
        %v3769 = vsel %vm1235, %v3734, 0
        %3771 = vmatprep.subr.bf16.mxu0 0
        %3772 = vmatpush1.bf16.msra.mxu0 0
        %3773 = vmatprep.subr.bf16.mxu0 0
        %3774 = vmatpush1.bf16.msra.mxu0 0
        %3775 = vmatprep.subr.bf16.mxu0 0
        %3776 = vmatpush1.bf16.msra.mxu0 0
        %3777 = vmatprep.subr.bf16.mxu0 0
        %3778 = vmatpush1.bf16.msra.mxu0 0
        %3779 = vmatprep.subr.bf16.mxu0 0
        %3780 = vmatpush1.bf16.msra.mxu0 0
        %3781 = vmatprep.subr.bf16.mxu0 0
        %3782 = vmatpush1.bf16.msra.mxu0 0
        %3783 = vmatprep.subr.bf16.mxu0 0
        %3784 = vmatpush1.bf16.msra.mxu0 %v3750
        %3785 = vmatprep.subr.bf16.mxu0 0
        %3786 = vmatpush1.bf16.msra.mxu0 %v3749
        %3787 = vmatprep.subr.bf16.mxu0 0
        %3788 = vmatpush2.bf16.msra.mxu0 0
        %3789 = vmatprep.subr.bf16.mxu0 0
        %3790 = vmatpush2.bf16.msra.mxu0 0
        %3791 = vmatprep.subr.bf16.mxu0 0
        %3792 = vmatpush2.bf16.msra.mxu0 0
        %3793 = vmatprep.subr.bf16.mxu0 0
        %3794 = vmatpush2.bf16.msra.mxu0 0
        %3795 = vmatprep.subr.bf16.mxu0 0
        %3796 = vmatpush2.bf16.msra.mxu0 0
        %3797 = vmatprep.subr.bf16.mxu0 0
        %3798 = vmatpush2.bf16.msra.mxu0 0
        %3799 = vmatprep.subr.bf16.mxu0 0
        %3800 = vmatpush2.bf16.msra.mxu0 0
        %3801 = vmatprep.subr.bf16.mxu0 0
        %3802 = vmatpush2.bf16.msra.mxu0 0
        %3803 = vmatprep.mubr.bf16.mxu0 0
        %3804 = vmatmul.mubr.bf16.gmra.mxu0 %v3766
        %v3805 = vpop.f32.mrf.mxu0
        %v3806 = vadd.f32 0.0, %v3805
        %v3807 = vpop.f32.mrf.mxu0
        %v3808 = vpop.f32.mrf.mxu0
        %v3809 = vadd.f32 0.0, %v3808
        %v3810 = vpop.f32.mrf.mxu0
        %3811 = vmatprep.mubr.bf16.mxu0 0
        %3812 = vmatmul.mubr.bf16.gmra.mxu0 %v3769
        %v3813 = vpop.f32.mrf.mxu0
        %v3814 = vadd.f32 0.0, %v3813
        %v3815 = vpop.f32.mrf.mxu0
        %v3816 = vpop.f32.mrf.mxu0
        %v3817 = vadd.f32 0.0, %v3816
        %v3818 = vpop.f32.mrf.mxu0
        %3819 = vdwg.mxu0
        %v3821 = vsel %vm1235, %v3735, 0
        %v3824 = vsel %vm1235, %v3736, 0
        %3826 = vmatprep.subr.bf16.mxu0 0
        %3827 = vmatpush1.bf16.msra.mxu0 0
        %3828 = vmatprep.subr.bf16.mxu0 0
        %3829 = vmatpush1.bf16.msra.mxu0 0
        %3830 = vmatprep.subr.bf16.mxu0 0
        %3831 = vmatpush1.bf16.msra.mxu0 0
        %3832 = vmatprep.subr.bf16.mxu0 0
        %3833 = vmatpush1.bf16.msra.mxu0 0
        %3834 = vmatprep.subr.bf16.mxu0 0
        %3835 = vmatpush1.bf16.msra.mxu0 0
        %3836 = vmatprep.subr.bf16.mxu0 0
        %3837 = vmatpush1.bf16.msra.mxu0 0
        %3838 = vmatprep.subr.bf16.mxu0 0
        %3839 = vmatpush1.bf16.msra.mxu0 %v3752
        %3840 = vmatprep.subr.bf16.mxu0 0
        %3841 = vmatpush1.bf16.msra.mxu0 %v3751
        %3842 = vmatprep.subr.bf16.mxu0 0
        %3843 = vmatpush2.bf16.msra.mxu0 0
        %3844 = vmatprep.subr.bf16.mxu0 0
        %3845 = vmatpush2.bf16.msra.mxu0 0
        %3846 = vmatprep.subr.bf16.mxu0 0
        %3847 = vmatpush2.bf16.msra.mxu0 0
        %3848 = vmatprep.subr.bf16.mxu0 0
        %3849 = vmatpush2.bf16.msra.mxu0 0
        %3850 = vmatprep.subr.bf16.mxu0 0
        %3851 = vmatpush2.bf16.msra.mxu0 0
        %3852 = vmatprep.subr.bf16.mxu0 0
        %3853 = vmatpush2.bf16.msra.mxu0 0
        %3854 = vmatprep.subr.bf16.mxu0 0
        %3855 = vmatpush2.bf16.msra.mxu0 0
        %3856 = vmatprep.subr.bf16.mxu0 0
        %3857 = vmatpush2.bf16.msra.mxu0 0
        %3858 = vmatprep.mubr.bf16.mxu0 0
        %3859 = vmatmul.mubr.bf16.gmra.mxu0 %v3821
        %v3860 = vpop.f32.mrf.mxu0
        %v3861 = vadd.f32 0.0, %v3860
        %v3862 = vpop.f32.mrf.mxu0
        %v3863 = vpop.f32.mrf.mxu0
        %v3864 = vadd.f32 0.0, %v3863
        %v3865 = vpop.f32.mrf.mxu0
        %3866 = vmatprep.mubr.bf16.mxu0 0
        %3867 = vmatmul.mubr.bf16.gmra.mxu0 %v3824
        %v3868 = vpop.f32.mrf.mxu0
        %v3869 = vadd.f32 0.0, %v3868
        %v3870 = vpop.f32.mrf.mxu0
        %v3871 = vpop.f32.mrf.mxu0
        %v3872 = vadd.f32 0.0, %v3871
        %v3873 = vpop.f32.mrf.mxu0
        %3874 = vdwg.mxu0
        %v3876 = vsel %vm1235, %v3737, 0
        %v3879 = vsel %vm1235, %v3738, 0
        %3881 = vmatprep.subr.bf16.mxu0 0
        %3882 = vmatpush1.bf16.msra.mxu0 0
        %3883 = vmatprep.subr.bf16.mxu0 0
        %3884 = vmatpush1.bf16.msra.mxu0 0
        %3885 = vmatprep.subr.bf16.mxu0 0
        %3886 = vmatpush1.bf16.msra.mxu0 0
        %3887 = vmatprep.subr.bf16.mxu0 0
        %3888 = vmatpush1.bf16.msra.mxu0 0
        %3889 = vmatprep.subr.bf16.mxu0 0
        %3890 = vmatpush1.bf16.msra.mxu0 0
        %3891 = vmatprep.subr.bf16.mxu0 0
        %3892 = vmatpush1.bf16.msra.mxu0 0
        %3893 = vmatprep.subr.bf16.mxu0 0
        %3894 = vmatpush1.bf16.msra.mxu0 %v3754
        %3895 = vmatprep.subr.bf16.mxu0 0
        %3896 = vmatpush1.bf16.msra.mxu0 %v3753
        %3897 = vmatprep.subr.bf16.mxu0 0
        %3898 = vmatpush2.bf16.msra.mxu0 0
        %3899 = vmatprep.subr.bf16.mxu0 0
        %3900 = vmatpush2.bf16.msra.mxu0 0
        %3901 = vmatprep.subr.bf16.mxu0 0
        %3902 = vmatpush2.bf16.msra.mxu0 0
        %3903 = vmatprep.subr.bf16.mxu0 0
        %3904 = vmatpush2.bf16.msra.mxu0 0
        %3905 = vmatprep.subr.bf16.mxu0 0
        %3906 = vmatpush2.bf16.msra.mxu0 0
        %3907 = vmatprep.subr.bf16.mxu0 0
        %3908 = vmatpush2.bf16.msra.mxu0 0
        %3909 = vmatprep.subr.bf16.mxu0 0
        %3910 = vmatpush2.bf16.msra.mxu0 0
        %3911 = vmatprep.subr.bf16.mxu0 0
        %3912 = vmatpush2.bf16.msra.mxu0 0
        %3913 = vmatprep.mubr.bf16.mxu0 0
        %3914 = vmatmul.mubr.bf16.gmra.mxu0 %v3876
        %v3915 = vpop.f32.mrf.mxu0
        %v3916 = vadd.f32 0.0, %v3915
        %v3917 = vpop.f32.mrf.mxu0
        %v3918 = vpop.f32.mrf.mxu0
        %v3919 = vadd.f32 0.0, %v3918
        %v3920 = vpop.f32.mrf.mxu0
        %3921 = vmatprep.mubr.bf16.mxu0 0
        %3922 = vmatmul.mubr.bf16.gmra.mxu0 %v3879
        %v3923 = vpop.f32.mrf.mxu0
        %v3924 = vadd.f32 0.0, %v3923
        %v3925 = vpop.f32.mrf.mxu0
        %v3926 = vpop.f32.mrf.mxu0
        %v3927 = vadd.f32 0.0, %v3926
        %v3928 = vpop.f32.mrf.mxu0
        %3929 = vdwg.mxu0
        %v3931 = vsel %vm1235, %v3739, 0
        %v3934 = vsel %vm1235, %v3740, 0
        %3936 = vmatprep.subr.bf16.mxu0 0
        %3937 = vmatpush1.bf16.msra.mxu0 0
        %3938 = vmatprep.subr.bf16.mxu0 0
        %3939 = vmatpush1.bf16.msra.mxu0 0
        %3940 = vmatprep.subr.bf16.mxu0 0
        %3941 = vmatpush1.bf16.msra.mxu0 0
        %3942 = vmatprep.subr.bf16.mxu0 0
        %3943 = vmatpush1.bf16.msra.mxu0 0
        %3944 = vmatprep.subr.bf16.mxu0 0
        %3945 = vmatpush1.bf16.msra.mxu0 0
        %3946 = vmatprep.subr.bf16.mxu0 0
        %3947 = vmatpush1.bf16.msra.mxu0 0
        %3948 = vmatprep.subr.bf16.mxu0 0
        %3949 = vmatpush1.bf16.msra.mxu0 %v3756
        %3950 = vmatprep.subr.bf16.mxu0 0
        %3951 = vmatpush1.bf16.msra.mxu0 %v3755
        %3952 = vmatprep.subr.bf16.mxu0 0
        %3953 = vmatpush2.bf16.msra.mxu0 0
        %3954 = vmatprep.subr.bf16.mxu0 0
        %3955 = vmatpush2.bf16.msra.mxu0 0
        %3956 = vmatprep.subr.bf16.mxu0 0
        %3957 = vmatpush2.bf16.msra.mxu0 0
        %3958 = vmatprep.subr.bf16.mxu0 0
        %3959 = vmatpush2.bf16.msra.mxu0 0
        %3960 = vmatprep.subr.bf16.mxu0 0
        %3961 = vmatpush2.bf16.msra.mxu0 0
        %3962 = vmatprep.subr.bf16.mxu0 0
        %3963 = vmatpush2.bf16.msra.mxu0 0
        %3964 = vmatprep.subr.bf16.mxu0 0
        %3965 = vmatpush2.bf16.msra.mxu0 0
        %3966 = vmatprep.subr.bf16.mxu0 0
        %3967 = vmatpush2.bf16.msra.mxu0 0
        %3968 = vmatprep.mubr.bf16.mxu0 0
        %3969 = vmatmul.mubr.bf16.gmra.mxu0 %v3931
        %v3970 = vpop.f32.mrf.mxu0
        %v3971 = vadd.f32 0.0, %v3970
        %v3972 = vpop.f32.mrf.mxu0
        %v3973 = vpop.f32.mrf.mxu0
        %v3974 = vadd.f32 0.0, %v3973
        %v3975 = vpop.f32.mrf.mxu0
        %3976 = vmatprep.mubr.bf16.mxu0 0
        %3977 = vmatmul.mubr.bf16.gmra.mxu0 %v3934
        %v3978 = vpop.f32.mrf.mxu0
        %v3979 = vadd.f32 0.0, %v3978
        %v3980 = vpop.f32.mrf.mxu0
        %v3981 = vpop.f32.mrf.mxu0
        %v3982 = vadd.f32 0.0, %v3981
        %v3983 = vpop.f32.mrf.mxu0
        %3984 = vdwg.mxu0
        %v3986 = vsel %vm1235, %v3741, 0
        %v3989 = vsel %vm1235, %v3742, 0
        %3991 = vmatprep.subr.bf16.mxu0 0
        %3992 = vmatpush1.bf16.msra.mxu0 0
        %3993 = vmatprep.subr.bf16.mxu0 0
        %3994 = vmatpush1.bf16.msra.mxu0 0
        %3995 = vmatprep.subr.bf16.mxu0 0
        %3996 = vmatpush1.bf16.msra.mxu0 0
        %3997 = vmatprep.subr.bf16.mxu0 0
        %3998 = vmatpush1.bf16.msra.mxu0 0
        %3999 = vmatprep.subr.bf16.mxu0 0
        %4000 = vmatpush1.bf16.msra.mxu0 0
        %4001 = vmatprep.subr.bf16.mxu0 0
        %4002 = vmatpush1.bf16.msra.mxu0 0
        %4003 = vmatprep.subr.bf16.mxu0 0
        %4004 = vmatpush1.bf16.msra.mxu0 %v3758
        %4005 = vmatprep.subr.bf16.mxu0 0
        %4006 = vmatpush1.bf16.msra.mxu0 %v3757
        %4007 = vmatprep.subr.bf16.mxu0 0
        %4008 = vmatpush2.bf16.msra.mxu0 0
        %4009 = vmatprep.subr.bf16.mxu0 0
        %4010 = vmatpush2.bf16.msra.mxu0 0
        %4011 = vmatprep.subr.bf16.mxu0 0
        %4012 = vmatpush2.bf16.msra.mxu0 0
        %4013 = vmatprep.subr.bf16.mxu0 0
        %4014 = vmatpush2.bf16.msra.mxu0 0
        %4015 = vmatprep.subr.bf16.mxu0 0
        %4016 = vmatpush2.bf16.msra.mxu0 0
        %4017 = vmatprep.subr.bf16.mxu0 0
        %4018 = vmatpush2.bf16.msra.mxu0 0
        %4019 = vmatprep.subr.bf16.mxu0 0
        %4020 = vmatpush2.bf16.msra.mxu0 0
        %4021 = vmatprep.subr.bf16.mxu0 0
        %4022 = vmatpush2.bf16.msra.mxu0 0
        %4023 = vmatprep.mubr.bf16.mxu0 0
        %4024 = vmatmul.mubr.bf16.gmra.mxu0 %v3986
        %v4025 = vpop.f32.mrf.mxu0
        %v4026 = vadd.f32 0.0, %v4025
        %v4027 = vpop.f32.mrf.mxu0
        %v4028 = vpop.f32.mrf.mxu0
        %v4029 = vadd.f32 0.0, %v4028
        %v4030 = vpop.f32.mrf.mxu0
        %4031 = vmatprep.mubr.bf16.mxu0 0
        %4032 = vmatmul.mubr.bf16.gmra.mxu0 %v3989
        %v4033 = vpop.f32.mrf.mxu0
        %v4034 = vadd.f32 0.0, %v4033
        %v4035 = vpop.f32.mrf.mxu0
        %v4036 = vpop.f32.mrf.mxu0
        %v4037 = vadd.f32 0.0, %v4036
        %v4038 = vpop.f32.mrf.mxu0
        %4039 = vdwg.mxu0
        %v4041 = vsel %vm1235, %v3743, 0
        %v4044 = vsel %vm1235, %v3744, 0
        %4046 = vmatprep.subr.bf16.mxu0 0
        %4047 = vmatpush1.bf16.msra.mxu0 0
        %4048 = vmatprep.subr.bf16.mxu0 0
        %4049 = vmatpush1.bf16.msra.mxu0 0
        %4050 = vmatprep.subr.bf16.mxu0 0
        %4051 = vmatpush1.bf16.msra.mxu0 0
        %4052 = vmatprep.subr.bf16.mxu0 0
        %4053 = vmatpush1.bf16.msra.mxu0 0
        %4054 = vmatprep.subr.bf16.mxu0 0
        %4055 = vmatpush1.bf16.msra.mxu0 0
        %4056 = vmatprep.subr.bf16.mxu0 0
        %4057 = vmatpush1.bf16.msra.mxu0 0
        %4058 = vmatprep.subr.bf16.mxu0 0
        %4059 = vmatpush1.bf16.msra.mxu0 %v3760
        %4060 = vmatprep.subr.bf16.mxu0 0
        %4061 = vmatpush1.bf16.msra.mxu0 %v3759
        %4062 = vmatprep.subr.bf16.mxu0 0
        %4063 = vmatpush2.bf16.msra.mxu0 0
        %4064 = vmatprep.subr.bf16.mxu0 0
        %4065 = vmatpush2.bf16.msra.mxu0 0
        %4066 = vmatprep.subr.bf16.mxu0 0
        %4067 = vmatpush2.bf16.msra.mxu0 0
        %4068 = vmatprep.subr.bf16.mxu0 0
        %4069 = vmatpush2.bf16.msra.mxu0 0
        %4070 = vmatprep.subr.bf16.mxu0 0
        %4071 = vmatpush2.bf16.msra.mxu0 0
        %4072 = vmatprep.subr.bf16.mxu0 0
        %4073 = vmatpush2.bf16.msra.mxu0 0
        %4074 = vmatprep.subr.bf16.mxu0 0
        %4075 = vmatpush2.bf16.msra.mxu0 0
        %4076 = vmatprep.subr.bf16.mxu0 0
        %4077 = vmatpush2.bf16.msra.mxu0 0
        %4078 = vmatprep.mubr.bf16.mxu0 0
        %4079 = vmatmul.mubr.bf16.gmra.mxu0 %v4041
        %v4080 = vpop.f32.mrf.mxu0
        %v4081 = vadd.f32 0.0, %v4080
        %v4082 = vpop.f32.mrf.mxu0
        %v4083 = vpop.f32.mrf.mxu0
        %v4084 = vadd.f32 0.0, %v4083
        %v4085 = vpop.f32.mrf.mxu0
        %4086 = vmatprep.mubr.bf16.mxu0 0
        %4087 = vmatmul.mubr.bf16.gmra.mxu0 %v4044
        %v4088 = vpop.f32.mrf.mxu0
        %v4089 = vadd.f32 0.0, %v4088
        %v4090 = vpop.f32.mrf.mxu0
        %v4091 = vpop.f32.mrf.mxu0
        %v4092 = vadd.f32 0.0, %v4091
        %v4093 = vpop.f32.mrf.mxu0
        %4094 = vdwg.mxu0
        %v4096 = vsel %vm1235, %v3745, 0
        %v4099 = vsel %vm1235, %v3746, 0
        %4101 = vmatprep.subr.bf16.mxu0 0
        %4102 = vmatpush1.bf16.msra.mxu0 0
        %4103 = vmatprep.subr.bf16.mxu0 0
        %4104 = vmatpush1.bf16.msra.mxu0 0
        %4105 = vmatprep.subr.bf16.mxu0 0
        %4106 = vmatpush1.bf16.msra.mxu0 0
        %4107 = vmatprep.subr.bf16.mxu0 0
        %4108 = vmatpush1.bf16.msra.mxu0 0
        %4109 = vmatprep.subr.bf16.mxu0 0
        %4110 = vmatpush1.bf16.msra.mxu0 0
        %4111 = vmatprep.subr.bf16.mxu0 0
        %4112 = vmatpush1.bf16.msra.mxu0 0
        %4113 = vmatprep.subr.bf16.mxu0 0
        %4114 = vmatpush1.bf16.msra.mxu0 %v3762
        %4115 = vmatprep.subr.bf16.mxu0 0
        %4116 = vmatpush1.bf16.msra.mxu0 %v3761
        %4117 = vmatprep.subr.bf16.mxu0 0
        %4118 = vmatpush2.bf16.msra.mxu0 0
        %4119 = vmatprep.subr.bf16.mxu0 0
        %4120 = vmatpush2.bf16.msra.mxu0 0
        %4121 = vmatprep.subr.bf16.mxu0 0
        %4122 = vmatpush2.bf16.msra.mxu0 0
        %4123 = vmatprep.subr.bf16.mxu0 0
        %4124 = vmatpush2.bf16.msra.mxu0 0
        %4125 = vmatprep.subr.bf16.mxu0 0
        %4126 = vmatpush2.bf16.msra.mxu0 0
        %4127 = vmatprep.subr.bf16.mxu0 0
        %4128 = vmatpush2.bf16.msra.mxu0 0
        %4129 = vmatprep.subr.bf16.mxu0 0
        %4130 = vmatpush2.bf16.msra.mxu0 0
        %4131 = vmatprep.subr.bf16.mxu0 0
        %4132 = vmatpush2.bf16.msra.mxu0 0
        %4133 = vmatprep.mubr.bf16.mxu0 0
        %4134 = vmatmul.mubr.bf16.gmra.mxu0 %v4096
        %v4135 = vpop.f32.mrf.mxu0
        %v4136 = vadd.f32 0.0, %v4135
        %v4137 = vpop.f32.mrf.mxu0
        %v4138 = vpop.f32.mrf.mxu0
        %v4139 = vadd.f32 0.0, %v4138
        %v4140 = vpop.f32.mrf.mxu0
        %4141 = vmatprep.mubr.bf16.mxu0 0
        %4142 = vmatmul.mubr.bf16.gmra.mxu0 %v4099
        %v4143 = vpop.f32.mrf.mxu0
        %v4144 = vadd.f32 0.0, %v4143
        %v4145 = vpop.f32.mrf.mxu0
        %v4146 = vpop.f32.mrf.mxu0
        %v4147 = vadd.f32 0.0, %v4146
        %v4148 = vpop.f32.mrf.mxu0
        %4149 = vdwg.mxu0
        %v4151 = vsel %vm1235, %v3747, 0
        %v4154 = vsel %vm1235, %v3748, 0
        %4156 = vmatprep.subr.bf16.mxu0 0
        %4157 = vmatpush1.bf16.msra.mxu0 0
        %4158 = vmatprep.subr.bf16.mxu0 0
        %4159 = vmatpush1.bf16.msra.mxu0 0
        %4160 = vmatprep.subr.bf16.mxu0 0
        %4161 = vmatpush1.bf16.msra.mxu0 0
        %4162 = vmatprep.subr.bf16.mxu0 0
        %4163 = vmatpush1.bf16.msra.mxu0 0
        %4164 = vmatprep.subr.bf16.mxu0 0
        %4165 = vmatpush1.bf16.msra.mxu0 0
        %4166 = vmatprep.subr.bf16.mxu0 0
        %4167 = vmatpush1.bf16.msra.mxu0 0
        %4168 = vmatprep.subr.bf16.mxu0 0
        %4169 = vmatpush1.bf16.msra.mxu0 %v3764
        %4170 = vmatprep.subr.bf16.mxu0 0
        %4171 = vmatpush1.bf16.msra.mxu0 %v3763
        %4172 = vmatprep.subr.bf16.mxu0 0
        %4173 = vmatpush2.bf16.msra.mxu0 0
        %4174 = vmatprep.subr.bf16.mxu0 0
        %4175 = vmatpush2.bf16.msra.mxu0 0
        %4176 = vmatprep.subr.bf16.mxu0 0
        %4177 = vmatpush2.bf16.msra.mxu0 0
        %4178 = vmatprep.subr.bf16.mxu0 0
        %4179 = vmatpush2.bf16.msra.mxu0 0
        %4180 = vmatprep.subr.bf16.mxu0 0
        %4181 = vmatpush2.bf16.msra.mxu0 0
        %4182 = vmatprep.subr.bf16.mxu0 0
        %4183 = vmatpush2.bf16.msra.mxu0 0
        %4184 = vmatprep.subr.bf16.mxu0 0
        %4185 = vmatpush2.bf16.msra.mxu0 0
        %4186 = vmatprep.subr.bf16.mxu0 0
        %4187 = vmatpush2.bf16.msra.mxu0 0
        %4188 = vmatprep.mubr.bf16.mxu0 0
        %4189 = vmatmul.mubr.bf16.gmra.mxu0 %v4151
        %v4190 = vpop.f32.mrf.mxu0
        %v4191 = vadd.f32 0.0, %v4190
        %v4192 = vpop.f32.mrf.mxu0
        %v4193 = vpop.f32.mrf.mxu0
        %v4194 = vadd.f32 0.0, %v4193
        %v4195 = vpop.f32.mrf.mxu0
        %4196 = vmatprep.mubr.bf16.mxu0 0
        %4197 = vmatmul.mubr.bf16.gmra.mxu0 %v4154
        %v4198 = vpop.f32.mrf.mxu0
        %v4199 = vadd.f32 0.0, %v4198
        %v4200 = vpop.f32.mrf.mxu0
        %v4201 = vpop.f32.mrf.mxu0
        %v4202 = vadd.f32 0.0, %v4201
        %v4203 = vpop.f32.mrf.mxu0
        %4204 = vdwg.mxu0
        %4213 = vrot.lane.b32.xlu0 %v3916, 16
        %v4214 = vpop.permute.xlu0 %4213
        %4215 = vrot.lane.b32.xlu0 %v3919, 16
        %v4216 = vpop.permute.xlu0 %4215
        %4217 = vrot.lane.b32.xlu0 %v3924, 16
        %v4218 = vpop.permute.xlu0 %4217
        %4219 = vrot.lane.b32.xlu0 %v3927, 16
        %v4220 = vpop.permute.xlu0 %4219
        %4221 = vrot.lane.b32.xlu0 %v3971, 16
        %v4222 = vpop.permute.xlu0 %4221
        %4223 = vrot.lane.b32.xlu0 %v3974, 16
        %v4224 = vpop.permute.xlu0 %4223
        %4225 = vrot.lane.b32.xlu0 %v3979, 16
        %v4226 = vpop.permute.xlu0 %4225
        %4227 = vrot.lane.b32.xlu0 %v3982, 16
        %v4228 = vpop.permute.xlu0 %4227
        %4245 = vrot.lane.b32.xlu0 %v4026, 32
        %v4246 = vpop.permute.xlu0 %4245
        %4247 = vrot.lane.b32.xlu0 %v4029, 32
        %v4248 = vpop.permute.xlu0 %4247
        %4249 = vrot.lane.b32.xlu0 %v4034, 32
        %v4250 = vpop.permute.xlu0 %4249
        %4251 = vrot.lane.b32.xlu0 %v4037, 32
        %v4252 = vpop.permute.xlu0 %4251
        %4253 = vrot.lane.b32.xlu0 %v4081, 32
        %v4254 = vpop.permute.xlu0 %4253
        %4255 = vrot.lane.b32.xlu0 %v4084, 32
        %v4256 = vpop.permute.xlu0 %4255
        %4257 = vrot.lane.b32.xlu0 %v4089, 32
        %v4258 = vpop.permute.xlu0 %4257
        %4259 = vrot.lane.b32.xlu0 %v4092, 32
        %v4260 = vpop.permute.xlu0 %4259
        %4277 = vrot.lane.b32.xlu0 %v4136, 48
        %v4278 = vpop.permute.xlu0 %4277
        %4279 = vrot.lane.b32.xlu0 %v4139, 48
        %v4280 = vpop.permute.xlu0 %4279
        %4281 = vrot.lane.b32.xlu0 %v4144, 48
        %v4282 = vpop.permute.xlu0 %4281
        %4283 = vrot.lane.b32.xlu0 %v4147, 48
        %v4284 = vpop.permute.xlu0 %4283
        %4285 = vrot.lane.b32.xlu0 %v4191, 48
        %v4286 = vpop.permute.xlu0 %4285
        %4287 = vrot.lane.b32.xlu0 %v4194, 48
        %v4288 = vpop.permute.xlu0 %4287
        %4289 = vrot.lane.b32.xlu0 %v4199, 48
        %v4290 = vpop.permute.xlu0 %4289
        %4291 = vrot.lane.b32.xlu0 %v4202, 48
        %v4292 = vpop.permute.xlu0 %4291
        %v4301 = vsel %vm746, %v3806, %v4214
        %v4302 = vsel %vm746, %v3809, %v4216
        %v4303 = vsel %vm746, %v3814, %v4218
        %v4304 = vsel %vm746, %v3817, %v4220
        %v4305 = vsel %vm746, %v3861, %v4222
        %v4306 = vsel %vm746, %v3864, %v4224
        %v4307 = vsel %vm746, %v3869, %v4226
        %v4308 = vsel %vm746, %v3872, %v4228
        %v4309 = vsel %vm1235, %v4301, %v4246
        %v4310 = vsel %vm1235, %v4302, %v4248
        %v4311 = vsel %vm1235, %v4303, %v4250
        %v4312 = vsel %vm1235, %v4304, %v4252
        %v4313 = vsel %vm1235, %v4305, %v4254
        %v4314 = vsel %vm1235, %v4306, %v4256
        %v4315 = vsel %vm1235, %v4307, %v4258
        %v4316 = vsel %vm1235, %v4308, %v4260
        %v4317 = vsel %vm2172, %v4309, %v4278
        %v4318 = vsel %vm2172, %v4310, %v4280
        %v4319 = vsel %vm2172, %v4311, %v4282
        %v4320 = vsel %vm2172, %v4312, %v4284
        %v4321 = vsel %vm2172, %v4313, %v4286
        %v4322 = vsel %vm2172, %v4314, %v4288
        %v4323 = vsel %vm2172, %v4315, %v4290
        %v4324 = vsel %vm2172, %v4316, %v4292
        %v4325 = vpack.c.bf16 %v4318, %v4317
        %v4326 = vpack.c.bf16 %v4320, %v4319
        %v4327 = vpack.c.bf16 %v4322, %v4321
        %v4328 = vpack.c.bf16 %v4324, %v4323
        %s4329 = scalar_lea.vmem %s3, 32
        %v4330 = vld [vmem:[%s4329] sm:$0xf]
        %v4331 = vld [vmem:[%s4329 + $0x4] sm:$0xf]
        %v4332 = vld [vmem:[%s4329 + $0x8] sm:$0xf]
        %v4333 = vld [vmem:[%s4329 + $0xc] sm:$0xf]
        %v4334 = vld [vmem:[%s4329 + $0x10] sm:$0xf]
        %v4335 = vld [vmem:[%s4329 + $0x14] sm:$0xf]
        %v4336 = vld [vmem:[%s4329 + $0x18] sm:$0xf]
        %v4337 = vld [vmem:[%s4329 + $0x1c] sm:$0xf]
        %v4338 = vld [vmem:[#allocation6 + $0x1] sm:$0x1]
        %v4339 = vlaneseq
        %v4340 = vshrl.u32 %v4339, 7
        %v4341 = vsub.s32 0, %v4340
        %v4342 = vrot.slane %v4338, %v4341
        %v4351 = vunpack.c.l.b16 %v4330
        %v4352 = vunpack.c.l.b16 %v4331
        %v4353 = vunpack.c.l.b16 %v4332
        %v4354 = vunpack.c.l.b16 %v4333
        %v4355 = vunpack.c.l.b16 %v4334
        %v4356 = vunpack.c.l.b16 %v4335
        %v4357 = vunpack.c.l.b16 %v4336
        %v4358 = vunpack.c.l.b16 %v4337
        %v4359 = vpack.c.b16 %v4352, %v4351
        %v4360 = vpack.c.b16 %v4354, %v4353
        %v4361 = vpack.c.b16 %v4356, %v4355
        %v4362 = vpack.c.b16 %v4358, %v4357
        %v4368 = vsel %vm372, %v4325, 0
        %v4371 = vsel %vm372, %v4326, 0
        %v4374 = vsel %vm372, %v4327, 0
        %v4377 = vsel %vm372, %v4328, 0
        %4379 = vmatprep.subr.bf16.mxu0 0
        %4380 = vmatpush1.bf16.msra.mxu0 0
        %4381 = vmatprep.subr.bf16.mxu0 0
        %4382 = vmatpush1.bf16.msra.mxu0 0
        %4383 = vmatprep.subr.bf16.mxu0 0
        %4384 = vmatpush1.bf16.msra.mxu0 0
        %4385 = vmatprep.subr.bf16.mxu0 0
        %4386 = vmatpush1.bf16.msra.mxu0 0
        %4387 = vmatprep.subr.bf16.mxu0 0
        %4388 = vmatpush1.bf16.msra.mxu0 %v4362
        %4389 = vmatprep.subr.bf16.mxu0 0
        %4390 = vmatpush1.bf16.msra.mxu0 %v4361
        %4391 = vmatprep.subr.bf16.mxu0 0
        %4392 = vmatpush1.bf16.msra.mxu0 %v4360
        %4393 = vmatprep.subr.bf16.mxu0 0
        %4394 = vmatpush1.bf16.msra.mxu0 %v4359
        %4395 = vmatprep.subr.bf16.mxu0 0
        %4396 = vmatpush2.bf16.msra.mxu0 0
        %4397 = vmatprep.subr.bf16.mxu0 0
        %4398 = vmatpush2.bf16.msra.mxu0 0
        %4399 = vmatprep.subr.bf16.mxu0 0
        %4400 = vmatpush2.bf16.msra.mxu0 0
        %4401 = vmatprep.subr.bf16.mxu0 0
        %4402 = vmatpush2.bf16.msra.mxu0 0
        %4403 = vmatprep.subr.bf16.mxu0 0
        %4404 = vmatpush2.bf16.msra.mxu0 0
        %4405 = vmatprep.subr.bf16.mxu0 0
        %4406 = vmatpush2.bf16.msra.mxu0 0
        %4407 = vmatprep.subr.bf16.mxu0 0
        %4408 = vmatpush2.bf16.msra.mxu0 0
        %4409 = vmatprep.subr.bf16.mxu0 0
        %4410 = vmatpush2.bf16.msra.mxu0 0
        %4411 = vmatprep.mubr.bf16.mxu0 0
        %4412 = vmatmul.mubr.bf16.gmra.mxu0 %v4368
        %v4413 = vpop.f32.mrf.mxu0
        %v4414 = vadd.f32 %v4342, %v4413
        %v4415 = vpop.f32.mrf.mxu0
        %v4416 = vpop.f32.mrf.mxu0
        %v4417 = vadd.f32 %v4342, %v4416
        %v4418 = vpop.f32.mrf.mxu0
        %4419 = vmatprep.mubr.bf16.mxu0 0
        %4420 = vmatmul.mubr.bf16.gmra.mxu0 %v4371
        %v4421 = vpop.f32.mrf.mxu0
        %v4422 = vadd.f32 %v4342, %v4421
        %v4423 = vpop.f32.mrf.mxu0
        %v4424 = vpop.f32.mrf.mxu0
        %v4425 = vadd.f32 %v4342, %v4424
        %v4426 = vpop.f32.mrf.mxu0
        %4427 = vmatprep.mubr.bf16.mxu0 0
        %4428 = vmatmul.mubr.bf16.gmra.mxu0 %v4374
        %v4429 = vpop.f32.mrf.mxu0
        %v4430 = vadd.f32 %v4342, %v4429
        %v4431 = vpop.f32.mrf.mxu0
        %v4432 = vpop.f32.mrf.mxu0
        %v4433 = vadd.f32 %v4342, %v4432
        %v4434 = vpop.f32.mrf.mxu0
        %4435 = vmatprep.mubr.bf16.mxu0 0
        %4436 = vmatmul.mubr.bf16.gmra.mxu0 %v4377
        %v4437 = vpop.f32.mrf.mxu0
        %v4438 = vadd.f32 %v4342, %v4437
        %v4439 = vpop.f32.mrf.mxu0
        %v4440 = vpop.f32.mrf.mxu0
        %v4441 = vadd.f32 %v4342, %v4440
        %v4442 = vpop.f32.mrf.mxu0
        %4443 = vdwg.mxu0
        %v4444 = vadd.f32 %v4414, %v2446
        %v4445 = vadd.f32 %v4417, %v2447
        %v4446 = vadd.f32 %v4422, %v2448
        %v4447 = vadd.f32 %v4425, %v2449
        %v4448 = vadd.f32 %v4430, %v2450
        %v4449 = vadd.f32 %v4433, %v2451
        %v4450 = vadd.f32 %v4438, %v2452
        %v4451 = vadd.f32 %v4441, %v2453
        %v4452 = vld [vmem:[#allocation6 + $0x6] sm:$0x1]
        %v4453 = vld [vmem:[#allocation6 + $0x7] sm:$0x1]
        %v4454 = vsel %vm372, %v4444, 0.0
        %4455 = vadd.xlane.f32.xlu0 %v4454
        %v4456 = vpop.xlane.xlu0 %4455
        %v4457 = vsel %vm372, %v4445, 0.0
        %4458 = vadd.xlane.f32.xlu0 %v4457
        %v4459 = vpop.xlane.xlu0 %4458
        %v4460 = vsel %vm372, %v4446, 0.0
        %4461 = vadd.xlane.f32.xlu0 %v4460
        %v4462 = vpop.xlane.xlu0 %4461
        %v4463 = vsel %vm372, %v4447, 0.0
        %4464 = vadd.xlane.f32.xlu0 %v4463
        %v4465 = vpop.xlane.xlu0 %4464
        %v4466 = vsel %vm372, %v4448, 0.0
        %4467 = vadd.xlane.f32.xlu0 %v4466
        %v4468 = vpop.xlane.xlu0 %4467
        %v4469 = vsel %vm372, %v4449, 0.0
        %4470 = vadd.xlane.f32.xlu0 %v4469
        %v4471 = vpop.xlane.xlu0 %4470
        %v4472 = vsel %vm372, %v4450, 0.0
        %4473 = vadd.xlane.f32.xlu0 %v4472
        %v4474 = vpop.xlane.xlu0 %4473
        %v4475 = vsel %vm372, %v4451, 0.0
        %4476 = vadd.xlane.f32.xlu0 %v4475
        %v4477 = vpop.xlane.xlu0 %4476
        %v4478 = vmul.f32 %v4456, %v2333
        %v4479 = vmul.f32 %v4459, %v2333
        %v4480 = vmul.f32 %v4462, %v2333
        %v4481 = vmul.f32 %v4465, %v2333
        %v4482 = vmul.f32 %v4468, %v2333
        %v4483 = vmul.f32 %v4471, %v2333
        %v4484 = vmul.f32 %v4474, %v2333
        %v4485 = vmul.f32 %v4477, %v2333
        %v4486 = vmul.f32 %v4444, %v4444
        %v4487 = vmul.f32 %v4445, %v4445
        %v4488 = vmul.f32 %v4446, %v4446
        %v4489 = vmul.f32 %v4447, %v4447
        %v4490 = vmul.f32 %v4448, %v4448
        %v4491 = vmul.f32 %v4449, %v4449
        %v4492 = vmul.f32 %v4450, %v4450
        %v4493 = vmul.f32 %v4451, %v4451
        %v4494 = vsel %vm372, %v4486, 0.0
        %4495 = vadd.xlane.f32.xlu0 %v4494
        %v4496 = vpop.xlane.xlu0 %4495
        %v4497 = vsel %vm372, %v4487, 0.0
        %4498 = vadd.xlane.f32.xlu0 %v4497
        %v4499 = vpop.xlane.xlu0 %4498
        %v4500 = vsel %vm372, %v4488, 0.0
        %4501 = vadd.xlane.f32.xlu0 %v4500
        %v4502 = vpop.xlane.xlu0 %4501
        %v4503 = vsel %vm372, %v4489, 0.0
        %4504 = vadd.xlane.f32.xlu0 %v4503
        %v4505 = vpop.xlane.xlu0 %4504
        %v4506 = vsel %vm372, %v4490, 0.0
        %4507 = vadd.xlane.f32.xlu0 %v4506
        %v4508 = vpop.xlane.xlu0 %4507
        %v4509 = vsel %vm372, %v4491, 0.0
        %4510 = vadd.xlane.f32.xlu0 %v4509
        %v4511 = vpop.xlane.xlu0 %4510
        %v4512 = vsel %vm372, %v4492, 0.0
        %4513 = vadd.xlane.f32.xlu0 %v4512
        %v4514 = vpop.xlane.xlu0 %4513
        %v4515 = vsel %vm372, %v4493, 0.0
        %4516 = vadd.xlane.f32.xlu0 %v4515
        %v4517 = vpop.xlane.xlu0 %4516
        %v4518 = vmul.f32 %v4496, %v2333
        %v4519 = vmul.f32 %v4499, %v2333
        %v4520 = vmul.f32 %v4502, %v2333
        %v4521 = vmul.f32 %v4505, %v2333
        %v4522 = vmul.f32 %v4508, %v2333
        %v4523 = vmul.f32 %v4511, %v2333
        %v4524 = vmul.f32 %v4514, %v2333
        %v4525 = vmul.f32 %v4517, %v2333
        %v4526 = vmul.f32 %v4478, %v4478
        %v4527 = vmul.f32 %v4479, %v4479
        %v4528 = vmul.f32 %v4480, %v4480
        %v4529 = vmul.f32 %v4481, %v4481
        %v4530 = vmul.f32 %v4482, %v4482
        %v4531 = vmul.f32 %v4483, %v4483
        %v4532 = vmul.f32 %v4484, %v4484
        %v4533 = vmul.f32 %v4485, %v4485
        %v4534 = vsub.f32 %v4518, %v4526
        %v4535 = vsub.f32 %v4519, %v4527
        %v4536 = vsub.f32 %v4520, %v4528
        %v4537 = vsub.f32 %v4521, %v4529
        %v4538 = vsub.f32 %v4522, %v4530
        %v4539 = vsub.f32 %v4523, %v4531
        %v4540 = vsub.f32 %v4524, %v4532
        %v4541 = vsub.f32 %v4525, %v4533
        %v4542 = vsub.f32 %v4444, %v4478
        %v4543 = vsub.f32 %v4445, %v4479
        %v4544 = vsub.f32 %v4446, %v4480
        %v4545 = vsub.f32 %v4447, %v4481
        %v4546 = vsub.f32 %v4448, %v4482
        %v4547 = vsub.f32 %v4449, %v4483
        %v4548 = vsub.f32 %v4450, %v4484
        %v4549 = vsub.f32 %v4451, %v4485
        %v4550 = vadd.f32 %v4534, 1e-05
        %v4551 = vadd.f32 %v4535, 1e-05
        %v4552 = vadd.f32 %v4536, 1e-05
        %v4553 = vadd.f32 %v4537, 1e-05
        %v4554 = vadd.f32 %v4538, 1e-05
        %v4555 = vadd.f32 %v4539, 1e-05
        %v4556 = vadd.f32 %v4540, 1e-05
        %v4557 = vadd.f32 %v4541, 1e-05
        %v4558 = vrsqrt.pop %v4550
        %v4559 = vrsqrt.pop %v4551
        %v4560 = vrsqrt.pop %v4552
        %v4561 = vrsqrt.pop %v4553
        %v4562 = vrsqrt.pop %v4554
        %v4563 = vrsqrt.pop %v4555
        %v4564 = vrsqrt.pop %v4556
        %v4565 = vrsqrt.pop %v4557
        %v4566 = vmul.f32 %v4542, %v4558
        %v4567 = vmul.f32 %v4543, %v4559
        %v4568 = vmul.f32 %v4544, %v4560
        %v4569 = vmul.f32 %v4545, %v4561
        %v4570 = vmul.f32 %v4546, %v4562
        %v4571 = vmul.f32 %v4547, %v4563
        %v4572 = vmul.f32 %v4548, %v4564
        %v4573 = vmul.f32 %v4549, %v4565
        %v4574 = vlaneseq
        %v4575 = vshrl.u32 %v4574, 7
        %v4576 = vsub.s32 0, %v4575
        %v4577 = vrot.slane %v4452, %v4576
        %v4578 = vmul.f32 %v4566, %v4577
        %v4579 = vmul.f32 %v4567, %v4577
        %v4580 = vmul.f32 %v4568, %v4577
        %v4581 = vmul.f32 %v4569, %v4577
        %v4582 = vmul.f32 %v4570, %v4577
        %v4583 = vmul.f32 %v4571, %v4577
        %v4584 = vmul.f32 %v4572, %v4577
        %v4585 = vmul.f32 %v4573, %v4577
        %v4586 = vlaneseq
        %v4587 = vshrl.u32 %v4586, 7
        %v4588 = vsub.s32 0, %v4587
        %v4589 = vrot.slane %v4453, %v4588
        %v4590 = vadd.f32 %v4578, %v4589
        %v4591 = vadd.f32 %v4579, %v4589
        %v4592 = vadd.f32 %v4580, %v4589
        %v4593 = vadd.f32 %v4581, %v4589
        %v4594 = vadd.f32 %v4582, %v4589
        %v4595 = vadd.f32 %v4583, %v4589
        %v4596 = vadd.f32 %v4584, %v4589
        %v4597 = vadd.f32 %v4585, %v4589
        %v4598 = vpack.c.bf16 %v4591, %v4590
        %v4599 = vpack.c.bf16 %v4593, %v4592
        %v4600 = vpack.c.bf16 %v4595, %v4594
        %v4601 = vpack.c.bf16 %v4597, %v4596
        %v4602 = vld [vmem:[#allocation4] sm:$0xf]
        %v4603 = vld [vmem:[#allocation4 + $0x4] sm:$0xf]
        %v4604 = vld [vmem:[#allocation4 + $0x8] sm:$0xf]
        %v4605 = vld [vmem:[#allocation4 + $0xc] sm:$0xf]
        %v4606 = vld [vmem:[#allocation4 + $0x10] sm:$0xf]
        %v4607 = vld [vmem:[#allocation4 + $0x14] sm:$0xf]
        %v4608 = vld [vmem:[#allocation4 + $0x18] sm:$0xf]
        %v4609 = vld [vmem:[#allocation4 + $0x1c] sm:$0xf]
        %v4610 = vld [vmem:[#allocation6 + $0x2] sm:$0x1]
        %v4611 = vlaneseq
        %v4612 = vshrl.u32 %v4611, 7
        %v4613 = vsub.s32 0, %v4612
        %v4614 = vrot.slane %v4610, %v4613
        %v4623 = vunpack.c.l.b16 %v4602
        %v4624 = vunpack.c.l.b16 %v4603
        %v4625 = vunpack.c.l.b16 %v4604
        %v4626 = vunpack.c.l.b16 %v4605
        %v4627 = vunpack.c.l.b16 %v4606
        %v4628 = vunpack.c.l.b16 %v4607
        %v4629 = vunpack.c.l.b16 %v4608
        %v4630 = vunpack.c.l.b16 %v4609
        %v4631 = vpack.c.b16 %v4624, %v4623
        %v4632 = vpack.c.b16 %v4626, %v4625
        %v4633 = vpack.c.b16 %v4628, %v4627
        %v4634 = vpack.c.b16 %v4630, %v4629
        %v4640 = vsel %vm372, %v4598, 0
        %v4643 = vsel %vm372, %v4599, 0
        %v4646 = vsel %vm372, %v4600, 0
        %v4649 = vsel %vm372, %v4601, 0
        %4651 = vmatprep.subr.bf16.mxu0 0
        %4652 = vmatpush1.bf16.msra.mxu0 0
        %4653 = vmatprep.subr.bf16.mxu0 0
        %4654 = vmatpush1.bf16.msra.mxu0 0
        %4655 = vmatprep.subr.bf16.mxu0 0
        %4656 = vmatpush1.bf16.msra.mxu0 0
        %4657 = vmatprep.subr.bf16.mxu0 0
        %4658 = vmatpush1.bf16.msra.mxu0 0
        %4659 = vmatprep.subr.bf16.mxu0 0
        %4660 = vmatpush1.bf16.msra.mxu0 %v4634
        %4661 = vmatprep.subr.bf16.mxu0 0
        %4662 = vmatpush1.bf16.msra.mxu0 %v4633
        %4663 = vmatprep.subr.bf16.mxu0 0
        %4664 = vmatpush1.bf16.msra.mxu0 %v4632
        %4665 = vmatprep.subr.bf16.mxu0 0
        %4666 = vmatpush1.bf16.msra.mxu0 %v4631
        %4667 = vmatprep.subr.bf16.mxu0 0
        %4668 = vmatpush2.bf16.msra.mxu0 0
        %4669 = vmatprep.subr.bf16.mxu0 0
        %4670 = vmatpush2.bf16.msra.mxu0 0
        %4671 = vmatprep.subr.bf16.mxu0 0
        %4672 = vmatpush2.bf16.msra.mxu0 0
        %4673 = vmatprep.subr.bf16.mxu0 0
        %4674 = vmatpush2.bf16.msra.mxu0 0
        %4675 = vmatprep.subr.bf16.mxu0 0
        %4676 = vmatpush2.bf16.msra.mxu0 0
        %4677 = vmatprep.subr.bf16.mxu0 0
        %4678 = vmatpush2.bf16.msra.mxu0 0
        %4679 = vmatprep.subr.bf16.mxu0 0
        %4680 = vmatpush2.bf16.msra.mxu0 0
        %4681 = vmatprep.subr.bf16.mxu0 0
        %4682 = vmatpush2.bf16.msra.mxu0 0
        %4683 = vmatprep.mubr.bf16.mxu0 0
        %4684 = vmatmul.mubr.bf16.gmra.mxu0 %v4640
        %v4685 = vpop.f32.mrf.mxu0
        %v4686 = vadd.f32 %v4614, %v4685
        %v4687 = vpop.f32.mrf.mxu0
        %v4688 = vpop.f32.mrf.mxu0
        %v4689 = vadd.f32 %v4614, %v4688
        %v4690 = vpop.f32.mrf.mxu0
        %4691 = vmatprep.mubr.bf16.mxu0 0
        %4692 = vmatmul.mubr.bf16.gmra.mxu0 %v4643
        %v4693 = vpop.f32.mrf.mxu0
        %v4694 = vadd.f32 %v4614, %v4693
        %v4695 = vpop.f32.mrf.mxu0
        %v4696 = vpop.f32.mrf.mxu0
        %v4697 = vadd.f32 %v4614, %v4696
        %v4698 = vpop.f32.mrf.mxu0
        %4699 = vmatprep.mubr.bf16.mxu0 0
        %4700 = vmatmul.mubr.bf16.gmra.mxu0 %v4646
        %v4701 = vpop.f32.mrf.mxu0
        %v4702 = vadd.f32 %v4614, %v4701
        %v4703 = vpop.f32.mrf.mxu0
        %v4704 = vpop.f32.mrf.mxu0
        %v4705 = vadd.f32 %v4614, %v4704
        %v4706 = vpop.f32.mrf.mxu0
        %4707 = vmatprep.mubr.bf16.mxu0 0
        %4708 = vmatmul.mubr.bf16.gmra.mxu0 %v4649
        %v4709 = vpop.f32.mrf.mxu0
        %v4710 = vadd.f32 %v4614, %v4709
        %v4711 = vpop.f32.mrf.mxu0
        %v4712 = vpop.f32.mrf.mxu0
        %v4713 = vadd.f32 %v4614, %v4712
        %v4714 = vpop.f32.mrf.mxu0
        %4715 = vdwg.mxu0
        %vm4716 = vcmp.gt.f32.partialorder %v4686, 0.0
        %vm4717 = vcmp.gt.f32.partialorder %v4689, 0.0
        %vm4718 = vcmp.gt.f32.partialorder %v4694, 0.0
        %vm4719 = vcmp.gt.f32.partialorder %v4697, 0.0
        %vm4720 = vcmp.gt.f32.partialorder %v4702, 0.0
        %vm4721 = vcmp.gt.f32.partialorder %v4705, 0.0
        %vm4722 = vcmp.gt.f32.partialorder %v4710, 0.0
        %vm4723 = vcmp.gt.f32.partialorder %v4713, 0.0
        %v4724 = vmin.f32 %v4686, 0.0
        %v4725 = vmin.f32 %v4689, 0.0
        %v4726 = vmin.f32 %v4694, 0.0
        %v4727 = vmin.f32 %v4697, 0.0
        %v4728 = vmin.f32 %v4702, 0.0
        %v4729 = vmin.f32 %v4705, 0.0
        %v4730 = vmin.f32 %v4710, 0.0
        %v4731 = vmin.f32 %v4713, 0.0
        %v4732 = vmul.f32 %v4724, 1.442695
        %v4733 = vpow.pop %v4732
        %v4734 = vmul.f32 %v4725, 1.442695
        %v4735 = vpow.pop %v4734
        %v4736 = vmul.f32 %v4726, 1.442695
        %v4737 = vpow.pop %v4736
        %v4738 = vmul.f32 %v4727, 1.442695
        %v4739 = vpow.pop %v4738
        %v4740 = vmul.f32 %v4728, 1.442695
        %v4741 = vpow.pop %v4740
        %v4742 = vmul.f32 %v4729, 1.442695
        %v4743 = vpow.pop %v4742
        %v4744 = vmul.f32 %v4730, 1.442695
        %v4745 = vpow.pop %v4744
        %v4746 = vmul.f32 %v4731, 1.442695
        %v4747 = vpow.pop %v4746
        %v4748 = vsub.f32 %v4733, 1.0
        %v4749 = vsub.f32 %v4735, 1.0
        %v4750 = vsub.f32 %v4737, 1.0
        %v4751 = vsub.f32 %v4739, 1.0
        %v4752 = vsub.f32 %v4741, 1.0
        %v4753 = vsub.f32 %v4743, 1.0
        %v4754 = vsub.f32 %v4745, 1.0
        %v4755 = vsub.f32 %v4747, 1.0
        %v4756 = vsel %vm4716, %v4686, %v4748
        %v4757 = vsel %vm4717, %v4689, %v4749
        %v4758 = vsel %vm4718, %v4694, %v4750
        %v4759 = vsel %vm4719, %v4697, %v4751
        %v4760 = vsel %vm4720, %v4702, %v4752
        %v4761 = vsel %vm4721, %v4705, %v4753
        %v4762 = vsel %vm4722, %v4710, %v4754
        %v4763 = vsel %vm4723, %v4713, %v4755
        %v4764 = vpack.c.bf16 %v4757, %v4756
        %v4765 = vpack.c.bf16 %v4759, %v4758
        %v4766 = vpack.c.bf16 %v4761, %v4760
        %v4767 = vpack.c.bf16 %v4763, %v4762
        %s4768 = scalar_lea.vmem [#allocation4], 32
        %v4769 = vld [vmem:[%s4768] sm:$0xf]
        %v4770 = vld [vmem:[%s4768 + $0x4] sm:$0xf]
        %v4771 = vld [vmem:[%s4768 + $0x8] sm:$0xf]
        %v4772 = vld [vmem:[%s4768 + $0xc] sm:$0xf]
        %v4773 = vld [vmem:[%s4768 + $0x10] sm:$0xf]
        %v4774 = vld [vmem:[%s4768 + $0x14] sm:$0xf]
        %v4775 = vld [vmem:[%s4768 + $0x18] sm:$0xf]
        %v4776 = vld [vmem:[%s4768 + $0x1c] sm:$0xf]
        %v4777 = vld [vmem:[#allocation6 + $0x3] sm:$0x1]
        %v4778 = vlaneseq
        %v4779 = vshrl.u32 %v4778, 7
        %v4780 = vsub.s32 0, %v4779
        %v4781 = vrot.slane %v4777, %v4780
        %v4790 = vunpack.c.l.b16 %v4769
        %v4791 = vunpack.c.l.b16 %v4770
        %v4792 = vunpack.c.l.b16 %v4771
        %v4793 = vunpack.c.l.b16 %v4772
        %v4794 = vunpack.c.l.b16 %v4773
        %v4795 = vunpack.c.l.b16 %v4774
        %v4796 = vunpack.c.l.b16 %v4775
        %v4797 = vunpack.c.l.b16 %v4776
        %v4798 = vpack.c.b16 %v4791, %v4790
        %v4799 = vpack.c.b16 %v4793, %v4792
        %v4800 = vpack.c.b16 %v4795, %v4794
        %v4801 = vpack.c.b16 %v4797, %v4796
        %v4807 = vsel %vm372, %v4764, 0
        %v4810 = vsel %vm372, %v4765, 0
        %v4813 = vsel %vm372, %v4766, 0
        %v4816 = vsel %vm372, %v4767, 0
        %4818 = vmatprep.subr.bf16.mxu0 0
        %4819 = vmatpush1.bf16.msra.mxu0 0
        %4820 = vmatprep.subr.bf16.mxu0 0
        %4821 = vmatpush1.bf16.msra.mxu0 0
        %4822 = vmatprep.subr.bf16.mxu0 0
        %4823 = vmatpush1.bf16.msra.mxu0 0
        %4824 = vmatprep.subr.bf16.mxu0 0
        %4825 = vmatpush1.bf16.msra.mxu0 0
        %4826 = vmatprep.subr.bf16.mxu0 0
        %4827 = vmatpush1.bf16.msra.mxu0 %v4801
        %4828 = vmatprep.subr.bf16.mxu0 0
        %4829 = vmatpush1.bf16.msra.mxu0 %v4800
        %4830 = vmatprep.subr.bf16.mxu0 0
        %4831 = vmatpush1.bf16.msra.mxu0 %v4799
        %4832 = vmatprep.subr.bf16.mxu0 0
        %4833 = vmatpush1.bf16.msra.mxu0 %v4798
        %4834 = vmatprep.subr.bf16.mxu0 0
        %4835 = vmatpush2.bf16.msra.mxu0 0
        %4836 = vmatprep.subr.bf16.mxu0 0
        %4837 = vmatpush2.bf16.msra.mxu0 0
        %4838 = vmatprep.subr.bf16.mxu0 0
        %4839 = vmatpush2.bf16.msra.mxu0 0
        %4840 = vmatprep.subr.bf16.mxu0 0
        %4841 = vmatpush2.bf16.msra.mxu0 0
        %4842 = vmatprep.subr.bf16.mxu0 0
        %4843 = vmatpush2.bf16.msra.mxu0 0
        %4844 = vmatprep.subr.bf16.mxu0 0
        %4845 = vmatpush2.bf16.msra.mxu0 0
        %4846 = vmatprep.subr.bf16.mxu0 0
        %4847 = vmatpush2.bf16.msra.mxu0 0
        %4848 = vmatprep.subr.bf16.mxu0 0
        %4849 = vmatpush2.bf16.msra.mxu0 0
        %4850 = vmatprep.mubr.bf16.mxu0 0
        %4851 = vmatmul.mubr.bf16.gmra.mxu0 %v4807
        %v4852 = vpop.f32.mrf.mxu0
        %v4853 = vadd.f32 %v4781, %v4852
        %v4854 = vpop.f32.mrf.mxu0
        %v4855 = vpop.f32.mrf.mxu0
        %v4856 = vadd.f32 %v4781, %v4855
        %v4857 = vpop.f32.mrf.mxu0
        %4858 = vmatprep.mubr.bf16.mxu0 0
        %4859 = vmatmul.mubr.bf16.gmra.mxu0 %v4810
        %v4860 = vpop.f32.mrf.mxu0
        %v4861 = vadd.f32 %v4781, %v4860
        %v4862 = vpop.f32.mrf.mxu0
        %v4863 = vpop.f32.mrf.mxu0
        %v4864 = vadd.f32 %v4781, %v4863
        %v4865 = vpop.f32.mrf.mxu0
        %4866 = vmatprep.mubr.bf16.mxu0 0
        %4867 = vmatmul.mubr.bf16.gmra.mxu0 %v4813
        %v4868 = vpop.f32.mrf.mxu0
        %v4869 = vadd.f32 %v4781, %v4868
        %v4870 = vpop.f32.mrf.mxu0
        %v4871 = vpop.f32.mrf.mxu0
        %v4872 = vadd.f32 %v4781, %v4871
        %v4873 = vpop.f32.mrf.mxu0
        %4874 = vmatprep.mubr.bf16.mxu0 0
        %4875 = vmatmul.mubr.bf16.gmra.mxu0 %v4816
        %v4876 = vpop.f32.mrf.mxu0
        %v4877 = vadd.f32 %v4781, %v4876
        %v4878 = vpop.f32.mrf.mxu0
        %v4879 = vpop.f32.mrf.mxu0
        %v4880 = vadd.f32 %v4781, %v4879
        %v4881 = vpop.f32.mrf.mxu0
        %4882 = vdwg.mxu0
        %v4883 = vadd.f32 %v4590, %v4853
        %v4884 = vadd.f32 %v4591, %v4856
        %v4885 = vadd.f32 %v4592, %v4861
        %v4886 = vadd.f32 %v4593, %v4864
        %v4887 = vadd.f32 %v4594, %v4869
        %v4888 = vadd.f32 %v4595, %v4872
        %v4889 = vadd.f32 %v4596, %v4877
        %v4890 = vadd.f32 %v4597, %v4880
        %v4891 = vld [vmem:[#allocation6 + $0x8] sm:$0x1]
        %v4892 = vld [vmem:[#allocation6 + $0x9] sm:$0x1]
        %v4893 = vsel %vm372, %v4883, 0.0
        %4894 = vadd.xlane.f32.xlu0 %v4893
        %v4895 = vpop.xlane.xlu0 %4894
        %v4896 = vsel %vm372, %v4884, 0.0
        %4897 = vadd.xlane.f32.xlu0 %v4896
        %v4898 = vpop.xlane.xlu0 %4897
        %v4899 = vsel %vm372, %v4885, 0.0
        %4900 = vadd.xlane.f32.xlu0 %v4899
        %v4901 = vpop.xlane.xlu0 %4900
        %v4902 = vsel %vm372, %v4886, 0.0
        %4903 = vadd.xlane.f32.xlu0 %v4902
        %v4904 = vpop.xlane.xlu0 %4903
        %v4905 = vsel %vm372, %v4887, 0.0
        %4906 = vadd.xlane.f32.xlu0 %v4905
        %v4907 = vpop.xlane.xlu0 %4906
        %v4908 = vsel %vm372, %v4888, 0.0
        %4909 = vadd.xlane.f32.xlu0 %v4908
        %v4910 = vpop.xlane.xlu0 %4909
        %v4911 = vsel %vm372, %v4889, 0.0
        %4912 = vadd.xlane.f32.xlu0 %v4911
        %v4913 = vpop.xlane.xlu0 %4912
        %v4914 = vsel %vm372, %v4890, 0.0
        %4915 = vadd.xlane.f32.xlu0 %v4914
        %v4916 = vpop.xlane.xlu0 %4915
        %v4917 = vmul.f32 %v4895, %v2333
        %v4918 = vmul.f32 %v4898, %v2333
        %v4919 = vmul.f32 %v4901, %v2333
        %v4920 = vmul.f32 %v4904, %v2333
        %v4921 = vmul.f32 %v4907, %v2333
        %v4922 = vmul.f32 %v4910, %v2333
        %v4923 = vmul.f32 %v4913, %v2333
        %v4924 = vmul.f32 %v4916, %v2333
        %v4925 = vmul.f32 %v4883, %v4883
        %v4926 = vmul.f32 %v4884, %v4884
        %v4927 = vmul.f32 %v4885, %v4885
        %v4928 = vmul.f32 %v4886, %v4886
        %v4929 = vmul.f32 %v4887, %v4887
        %v4930 = vmul.f32 %v4888, %v4888
        %v4931 = vmul.f32 %v4889, %v4889
        %v4932 = vmul.f32 %v4890, %v4890
        %v4933 = vsel %vm372, %v4925, 0.0
        %4934 = vadd.xlane.f32.xlu0 %v4933
        %v4935 = vpop.xlane.xlu0 %4934
        %v4936 = vsel %vm372, %v4926, 0.0
        %4937 = vadd.xlane.f32.xlu0 %v4936
        %v4938 = vpop.xlane.xlu0 %4937
        %v4939 = vsel %vm372, %v4927, 0.0
        %4940 = vadd.xlane.f32.xlu0 %v4939
        %v4941 = vpop.xlane.xlu0 %4940
        %v4942 = vsel %vm372, %v4928, 0.0
        %4943 = vadd.xlane.f32.xlu0 %v4942
        %v4944 = vpop.xlane.xlu0 %4943
        %v4945 = vsel %vm372, %v4929, 0.0
        %4946 = vadd.xlane.f32.xlu0 %v4945
        %v4947 = vpop.xlane.xlu0 %4946
        %v4948 = vsel %vm372, %v4930, 0.0
        %4949 = vadd.xlane.f32.xlu0 %v4948
        %v4950 = vpop.xlane.xlu0 %4949
        %v4951 = vsel %vm372, %v4931, 0.0
        %4952 = vadd.xlane.f32.xlu0 %v4951
        %v4953 = vpop.xlane.xlu0 %4952
        %v4954 = vsel %vm372, %v4932, 0.0
        %4955 = vadd.xlane.f32.xlu0 %v4954
        %v4956 = vpop.xlane.xlu0 %4955
        %v4957 = vmul.f32 %v4935, %v2333
        %v4958 = vmul.f32 %v4938, %v2333
        %v4959 = vmul.f32 %v4941, %v2333
        %v4960 = vmul.f32 %v4944, %v2333
        %v4961 = vmul.f32 %v4947, %v2333
        %v4962 = vmul.f32 %v4950, %v2333
        %v4963 = vmul.f32 %v4953, %v2333
        %v4964 = vmul.f32 %v4956, %v2333
        %v4965 = vmul.f32 %v4917, %v4917
        %v4966 = vmul.f32 %v4918, %v4918
        %v4967 = vmul.f32 %v4919, %v4919
        %v4968 = vmul.f32 %v4920, %v4920
        %v4969 = vmul.f32 %v4921, %v4921
        %v4970 = vmul.f32 %v4922, %v4922
        %v4971 = vmul.f32 %v4923, %v4923
        %v4972 = vmul.f32 %v4924, %v4924
        %v4973 = vsub.f32 %v4957, %v4965
        %v4974 = vsub.f32 %v4958, %v4966
        %v4975 = vsub.f32 %v4959, %v4967
        %v4976 = vsub.f32 %v4960, %v4968
        %v4977 = vsub.f32 %v4961, %v4969
        %v4978 = vsub.f32 %v4962, %v4970
        %v4979 = vsub.f32 %v4963, %v4971
        %v4980 = vsub.f32 %v4964, %v4972
        %v4981 = vsub.f32 %v4883, %v4917
        %v4982 = vsub.f32 %v4884, %v4918
        %v4983 = vsub.f32 %v4885, %v4919
        %v4984 = vsub.f32 %v4886, %v4920
        %v4985 = vsub.f32 %v4887, %v4921
        %v4986 = vsub.f32 %v4888, %v4922
        %v4987 = vsub.f32 %v4889, %v4923
        %v4988 = vsub.f32 %v4890, %v4924
        %v4989 = vadd.f32 %v4973, 1e-05
        %v4990 = vadd.f32 %v4974, 1e-05
        %v4991 = vadd.f32 %v4975, 1e-05
        %v4992 = vadd.f32 %v4976, 1e-05
        %v4993 = vadd.f32 %v4977, 1e-05
        %v4994 = vadd.f32 %v4978, 1e-05
        %v4995 = vadd.f32 %v4979, 1e-05
        %v4996 = vadd.f32 %v4980, 1e-05
        %v4997 = vrsqrt.pop %v4989
        %v4998 = vrsqrt.pop %v4990
        %v4999 = vrsqrt.pop %v4991
        %v5000 = vrsqrt.pop %v4992
        %v5001 = vrsqrt.pop %v4993
        %v5002 = vrsqrt.pop %v4994
        %v5003 = vrsqrt.pop %v4995
        %v5004 = vrsqrt.pop %v4996
        %v5005 = vmul.f32 %v4981, %v4997
        %v5006 = vmul.f32 %v4982, %v4998
        %v5007 = vmul.f32 %v4983, %v4999
        %v5008 = vmul.f32 %v4984, %v5000
        %v5009 = vmul.f32 %v4985, %v5001
        %v5010 = vmul.f32 %v4986, %v5002
        %v5011 = vmul.f32 %v4987, %v5003
        %v5012 = vmul.f32 %v4988, %v5004
        %v5013 = vlaneseq
        %v5014 = vshrl.u32 %v5013, 7
        %v5015 = vsub.s32 0, %v5014
        %v5016 = vrot.slane %v4891, %v5015
        %v5017 = vmul.f32 %v5005, %v5016
        %v5018 = vmul.f32 %v5006, %v5016
        %v5019 = vmul.f32 %v5007, %v5016
        %v5020 = vmul.f32 %v5008, %v5016
        %v5021 = vmul.f32 %v5009, %v5016
        %v5022 = vmul.f32 %v5010, %v5016
        %v5023 = vmul.f32 %v5011, %v5016
        %v5024 = vmul.f32 %v5012, %v5016
        %v5025 = vlaneseq
        %v5026 = vshrl.u32 %v5025, 7
        %v5027 = vsub.s32 0, %v5026
        %v5028 = vrot.slane %v4892, %v5027
        %v5029 = vadd.f32 %v5017, %v5028
        %v5030 = vadd.f32 %v5018, %v5028
        %v5031 = vadd.f32 %v5019, %v5028
        %v5032 = vadd.f32 %v5020, %v5028
        %v5033 = vadd.f32 %v5021, %v5028
        %v5034 = vadd.f32 %v5022, %v5028
        %v5035 = vadd.f32 %v5023, %v5028
        %v5036 = vadd.f32 %v5024, %v5028
        %5037 = vst.msk [vmem:[%s297] sm:$0xff] %vm372, %v5029
        %5038 = vst.msk [vmem:[%s297 + $0x8] sm:$0xff] %vm372, %v5030
        %5039 = vst.msk [vmem:[%s297 + $0x10] sm:$0xff] %vm372, %v5031
        %5040 = vst.msk [vmem:[%s297 + $0x18] sm:$0xff] %vm372, %v5032
        %5041 = vst.msk [vmem:[%s297 + $0x20] sm:$0xff] %vm372, %v5033
        %5042 = vst.msk [vmem:[%s297 + $0x28] sm:$0xff] %vm372, %v5034
        %5043 = vst.msk [vmem:[%s297 + $0x30] sm:$0xff] %vm372, %v5035
        %5044 = vst.msk [vmem:[%s297 + $0x38] sm:$0xff] %vm372, %v5036
        %s5045 = smul.u32 8, %s19
        %p5046 = scmp.lt.s32.totalorder %s5045, 15
        %s5047 = scalar_select %p5046, %s5045, 15
        %s5048 = smul.addr %s5047, 8
        %s5049 = scalar_lea.vmem %s6, %s5048
        // Predicated region
        $region57: #{tpu_custom_call.1} parent=43 // pred_check
          %p5050 = pneg %p168
        $region58: #{tpu_custom_call.1} parent=43 // pred_check_branch
          %5052 = sbr.rel (%p5050) target = $region60
        $region59: #{tpu_custom_call.1} parent=43 // pred_region
          %s5053 = smul.u32 8, %s19
        $region60: #{tpu_custom_call.1} parent=43 // pred_fallthru
          _
      $region44: #{tpu_custom_call.1} parent=5 // pred_fallthru
        _
      %p5054 = scmp.le.s32.totalorder 2, %s14
      // Predicated region
      $region61: #{tpu_custom_call.1} parent=5 // pred_check
        %p5055 = pneg %p5054
      $region62: #{tpu_custom_call.1} parent=5 // pred_check_branch
        %5057 = sbr.rel (%p5055) target = $region64
      $region63: #{tpu_custom_call.1} parent=5 // pred_region
        %s5058 = ssub.s32 %s14, 2
        // Predicated region
        $region65: #{tpu_custom_call.1} parent=63 // pred_check
          %p5059 = pneg %p174
        $region66: #{tpu_custom_call.1} parent=63 // pred_check_branch
          %5061 = sbr.rel (%p5059) target = $region68
        $region67: #{tpu_custom_call.1} parent=63 // pred_region
          %s5062 = smul.u32 8, %s20
          %p5063 = scmp.lt.s32.totalorder %s5062, 15
          %s5064 = scalar_select %p5063, %s5062, 15
          %s5065 = smul.addr %s5064, 8
          %s5066 = scalar_lea.vmem %s6, %s5065
        $region68: #{tpu_custom_call.1} parent=63 // pred_fallthru
          _
      $region64: #{tpu_custom_call.1} parent=5 // pred_fallthru
        _
    $region6: #{tpu_custom_call.1} parent=1 // loop_footer
      %s18 = sadd.s32 1, %s14
    $region7: #{tpu_custom_call.1} parent=1 // loop_footer_branch
      %13 = sbr.rel target = $region3
    $region8: #{tpu_custom_call.1} parent=1 // loop_exit
      _
    %5067 = vsyncpa [#allocation3], 1
    %s5068 = scalar_lea.sflag [#allocation3], 1
    %5069 = vsyncpa %s5068, 1
    %5070 = vsyncpa [#allocation5], 1

</llo_original>
